<compile_context>
chip_gen: v5e
topology: v5e:2x2
jax: 0.10.0
libtpu: 0.0.40
codegen_flags: <defaults>
</compile_context>

<pallas_src>
import jax
import jax.numpy as jnp
import numpy as np
from jax import lax
from jax.experimental import pallas as pl
from jax.experimental.pallas import tpu as pltpu


# --------------------------------------------------------------------------
# Fused kernel: gate (1x1 convs + BN + LIP) + gated 3x3/s2 conv + BN + ReLU
# --------------------------------------------------------------------------
def aagu_kernel(scal_ref, wg1_ref, wg2_ref, g1_ref, g2_ref, xt_ref,
                gpool_ref, gtap_ref, wt_ref, bn2b_ref, out_ref):
    # ---- appearance gate --------------------------------------------------
    b_g1, b_g2 = scal_ref[0], scal_ref[1]
    bn1_a, bn1_b = scal_ref[2], scal_ref[3]
    wcat_lip, wcat_g2, b_cat = scal_ref[4], scal_ref[5], scal_ref[6]

    g1v = g1_ref[0]                      # (C1, H1*W1)   lane-dense (256)
    g2v = g2_ref[0]                      # (C2, H2*W2)
    xv = xt_ref[0]                       # (H2*W2, Cx)   lane-dense (384)

    # conv_g1 (1x1 -> 1ch) + folded inference BN, flat row layout (1, H1*W1)
    y = jnp.dot(wg1_ref[...], g1v, preferred_element_type=jnp.float32) + b_g1
    y = y * bn1_a + bn1_b

    # lip2d(y, logit=y) = avg_pool(y*e^y) / (avg_pool(e^y) + 1e-8).
    # The 3x3/stride2/pad1 average pool (1/9 included) is a single matmul
    # against a precomputed selection matrix, directly in flat layout.
    w = jnp.exp(y)
    num = jnp.dot(y * w, gpool_ref[...], preferred_element_type=jnp.float32)
    den = jnp.dot(w, gpool_ref[...], preferred_element_type=jnp.float32)
    lip = num / (den + 1e-8)             # (1, H2*W2)

    # conv_g2 (1x1 -> 1ch)
    g2c = jnp.dot(wg2_ref[...], g2v, preferred_element_type=jnp.float32) + b_g2

    # conv_concat([lip, g2c]) + ReLU, then the residual gate 1 + g12
    g12 = jnp.maximum(wcat_lip * lip + wcat_g2 * g2c + b_cat, 0.0)
    gate = 1.0 + g12                     # (1, H2*W2)

    # ---- gated 3x3 stride-2 conv + folded BN + ReLU -------------------------
    n_taps = gtap_ref.shape[0]
    howo = gtap_ref.shape[1]
    co = wt_ref.shape[2]

    acc = jnp.zeros((howo, co), jnp.float32)
    for t in range(n_taps):              # 9 taps of the 3x3 kernel, unrolled
        # Fold the gate into the 0/1 gather matrix (scales its columns), so
        # slab[p, c] = gate[q_t(p)] * x[q_t(p), c]  (zero for padded taps).
        gsel = gtap_ref[t] * gate                                        # (HoWo, HW)
        slab = jnp.dot(gsel, xv, preferred_element_type=jnp.float32)     # (HoWo, Cx)
        acc = acc + jnp.dot(slab.astype(jnp.bfloat16), wt_ref[t],
                            preferred_element_type=jnp.float32)          # (HoWo, Co)

    acc = acc + bn2b_ref[...]            # remaining additive BN term
    out_ref[0] = jnp.maximum(acc, 0.0).astype(out_ref.dtype)


# --------------------------------------------------------------------------
# Wrapper / glue
# --------------------------------------------------------------------------
def aagu_forward(x, g1, g2, p):
    N, Cx, H2, W2 = x.shape
    _, C1, H1, W1 = g1.shape
    _, C2, _, _ = g2.shape
    Ho = (H2 + 2 - 3) // 2 + 1
    Wo = (W2 + 2 - 3) // 2 + 1
    Co = p["w_conv"].shape[0]
    HW, P1, HoWo = H2 * W2, H1 * W1, Ho * Wo

    # ----- small gate-stage parameters --------------------------------------
    bn1_a = p["bn1_gamma"] / jnp.sqrt(p["bn1_var"] + 1e-5)
    bn1_b = p["bn1_beta"] - p["bn1_mean"] * bn1_a
    scal = jnp.concatenate([
        p["b_g1"].reshape(-1),        # 0
        p["b_g2"].reshape(-1),        # 1
        bn1_a.reshape(-1),            # 2
        bn1_b.reshape(-1),            # 3
        p["w_cat"].reshape(-1),       # 4 (lip branch), 5 (g2 branch)
        p["b_cat"].reshape(-1),       # 6
    ]).astype(jnp.float32)
    wg1 = p["w_g1"].reshape(1, C1).astype(jnp.float32)
    wg2 = p["w_g2"].reshape(1, C2).astype(jnp.float32)

    # ----- combined LIP-pool selection matrix (3x3, s2, p1, /9 folded) ------
    ih = jnp.arange(H2)[:, None]
    rr = jnp.arange(H1)[None, :]
    pr = ((rr >= 2 * ih - 1) & (rr <= 2 * ih + 1)).astype(jnp.float32)   # (H2, H1)
    jw = jnp.arange(W2)[:, None]
    ss = jnp.arange(W1)[None, :]
    pc = ((ss >= 2 * jw - 1) & (ss <= 2 * jw + 1)).astype(jnp.float32)   # (W2, W1)
    gpool = (jnp.einsum("ir,js->rsij", pr, pc) / 9.0).reshape(P1, HW)

    # ----- per-tap 0/1 spatial gather matrices for the 3x3 s2 p1 conv -------
    oi = jnp.arange(Ho)[:, None]
    oj = jnp.arange(Wo)[:, None]
    qr = jnp.arange(H2)[None, :]
    qs = jnp.arange(W2)[None, :]
    gts = []
    for kh in range(3):
        for kw in range(3):
            rm = (qr == (2 * oi - 1 + kh)).astype(jnp.float32)           # (Ho, H2)
            sm = (qs == (2 * oj - 1 + kw)).astype(jnp.float32)           # (Wo, W2)
            gts.append(jnp.einsum("ir,js->ijrs", rm, sm).reshape(HoWo, HW))
    gtap = jnp.stack(gts, axis=0)                                        # (9, HoWo, HW)

    # ----- conv weights: fold BN scale, tap-major, transposed, bf16 ---------
    bn2_a = p["bn2_gamma"] / jnp.sqrt(p["bn2_var"] + 1e-5)               # (Co,)
    bn2_b = (p["bn2_beta"] - p["bn2_mean"] * bn2_a).reshape(1, Co).astype(jnp.float32)
    w_fold = p["w_conv"] * bn2_a[:, None, None, None]                    # (Co, Cin, 3, 3)
    # wt[t, c, o] = w_fold[o, c, kh, kw]  with t = kh*3 + kw
    wt = jnp.transpose(w_fold, (2, 3, 1, 0)).reshape(9, Cx, Co).astype(jnp.bfloat16)

    # ----- lane-dense input layouts ------------------------------------------
    g1f = g1.reshape(N, C1, P1).astype(jnp.float32)                      # (N, C1, 256)
    g2f = g2.reshape(N, C2, HW).astype(jnp.float32)                      # (N, C2, 64)
    xt = jnp.transpose(x, (0, 2, 3, 1)).reshape(N, HW, Cx).astype(jnp.float32)

    out_t = pl.pallas_call(
        aagu_kernel,
        out_shape=jax.ShapeDtypeStruct((N, HoWo, Co), jnp.float32),
        grid_spec=pltpu.PrefetchScalarGridSpec(
            num_scalar_prefetch=0,
            grid=(N,),
            in_specs=[
                pl.BlockSpec(memory_space=pltpu.MemorySpace.SMEM),       # scal
                pl.BlockSpec((1, C1), lambda n: (0, 0)),                 # wg1
                pl.BlockSpec((1, C2), lambda n: (0, 0)),                 # wg2
                pl.BlockSpec((1, C1, P1), lambda n: (n, 0, 0)),          # g1f
                pl.BlockSpec((1, C2, HW), lambda n: (n, 0, 0)),          # g2f
                pl.BlockSpec((1, HW, Cx), lambda n: (n, 0, 0)),          # xt
                pl.BlockSpec((P1, HW), lambda n: (0, 0)),                # gpool
                pl.BlockSpec((9, HoWo, HW), lambda n: (0, 0, 0)),        # gtap
                pl.BlockSpec((9, Cx, Co), lambda n: (0, 0, 0)),          # wt (bf16)
                pl.BlockSpec((1, Co), lambda n: (0, 0)),                 # bn2_b
            ],
            out_specs=pl.BlockSpec((1, HoWo, Co), lambda n: (n, 0, 0)),
        ),
        compiler_params=pltpu.CompilerParams(
            dimension_semantics=("parallel",),
            vmem_limit_bytes=32 * 1024 * 1024),
    )(scal, wg1, wg2, g1f, g2f, xt, gpool, gtap, wt, bn2_b)

    # (N, Ho*Wo, Co) -> (N, Co, Ho, Wo)
    return jnp.transpose(out_t.reshape(N, Ho, Wo, Co), (0, 3, 1, 2))


# --------------------------------------------------------------------------
# Pure-JAX reference (same eval-mode BN semantics) for validation
# --------------------------------------------------------------------------
def reference_forward(x, g1, g2, p):
    dn = ("NCHW", "OIHW", "NCHW")
    hi = lax.Precision.HIGHEST

    def conv1x1(inp, w, b):
        out = lax.conv_general_dilated(inp, w, (1, 1), "VALID",
                                       dimension_numbers=dn, precision=hi)
        return out + b.reshape(1, -1, 1, 1)

    def avgpool(a):
        s = lax.reduce_window(a, 0.0, lax.add, (1, 1, 3, 3), (1, 1, 2, 2),
                              [(0, 0), (0, 0), (1, 1), (1, 1)])
        return s / 9.0

    def bn(a, gamma, beta, mean, var):
        shp = (1, -1, 1, 1)
        return ((a - mean.reshape(shp)) / jnp.sqrt(var.reshape(shp) + 1e-5)
                * gamma.reshape(shp) + beta.reshape(shp))

    g1c = conv1x1(g1, p["w_g1"].reshape(1, -1, 1, 1), p["b_g1"])
    g2c = conv1x1(g2, p["w_g2"].reshape(1, -1, 1, 1), p["b_g2"])
    y = bn(g1c, p["bn1_gamma"], p["bn1_beta"], p["bn1_mean"], p["bn1_var"])
    w = jnp.exp(y)
    lip = avgpool(y * w) / (avgpool(w) + 1e-8)
    cat = jnp.concatenate([lip, g2c], axis=1)
    g12 = jnp.maximum(conv1x1(cat, p["w_cat"].reshape(1, 2, 1, 1), p["b_cat"]), 0.0)
    wx = x + x * g12
    out = lax.conv_general_dilated(wx, p["w_conv"], (2, 2), [(1, 1), (1, 1)],
                                   dimension_numbers=dn, precision=hi)
    out = bn(out, p["bn2_gamma"], p["bn2_beta"], p["bn2_mean"], p["bn2_var"])
    return jnp.maximum(out, 0.0)


def init_params(key, c1, c2, cx=384, co=192):
    ks = jax.random.split(key, 12)
    return dict(
        w_g1=0.2 * jax.random.normal(ks[0], (c1,), jnp.float32),
        b_g1=0.1 * jax.random.normal(ks[1], (1,), jnp.float32),
        w_g2=0.2 * jax.random.normal(ks[2], (c2,), jnp.float32),
        b_g2=0.1 * jax.random.normal(ks[3], (1,), jnp.float32),
        w_cat=0.5 * jax.random.normal(ks[4], (2,), jnp.float32),
        b_cat=0.1 * jax.random.normal(ks[5], (1,), jnp.float32),
        bn1_gamma=1.0 + 0.1 * jax.random.normal(ks[6], (1,), jnp.float32),
        bn1_beta=0.1 * jax.random.normal(ks[7], (1,), jnp.float32),
        bn1_mean=0.05 * jax.random.normal(ks[8], (1,), jnp.float32),
        bn1_var=jnp.ones((1,), jnp.float32),
        w_conv=0.05 * jax.random.normal(ks[9], (co, cx, 3, 3), jnp.float32),
        bn2_gamma=1.0 + 0.1 * jax.random.normal(ks[10], (co,), jnp.float32),
        bn2_beta=0.1 * jax.random.normal(ks[11], (co,), jnp.float32),
        bn2_mean=jnp.zeros((co,), jnp.float32),
        bn2_var=jnp.ones((co,), jnp.float32),
    )


if __name__ == "__main__":
    key = jax.random.PRNGKey(0)
    k_x, k_g1, k_g2, k_p = jax.random.split(key, 4)

    N = 2
    C1, C2 = 8, 8            # in_channels1, in_channels2
    Cx, Co = 384, 192        # fixed by the module's final conv
    H1, W1 = 16, 16          # g1 spatial (2x of x/g2, as required by the cat)
    H2, W2 = 8, 8            # x / g2 spatial

    x = jax.random.normal(k_x, (N, Cx, H2, W2), jnp.float32)
    g1 = jax.random.normal(k_g1, (N, C1, H1, W1), jnp.float32)
    g2 = jax.random.normal(k_g2, (N, C2, H2, W2), jnp.float32)
    params = init_params(k_p, C1, C2, Cx, Co)

    out = aagu_forward(x, g1, g2, params)
    out = jax.block_until_ready(out)
    assert out.shape == (N, Co, H2 // 2, W2 // 2)

    # bf16 MXU inputs (weights + gated activations) introduce ~1e-2-level
    # absolute error on a 3456-term contraction; tolerance relaxed accordingly.
    ref = reference_forward(x, g1, g2, params)
    np.testing.assert_allclose(np.asarray(out), np.asarray(ref),
                               rtol=2e-2, atol=6e-2)

    print("KERNEL_OK")
</pallas_src>

<mosaic_0001>
module attributes {stable_mosaic.version = 11 : i64} {
  func.func @aagu_kernel(%arg0: i32, %arg1: memref<7xf32, #tpu.memory_space<smem>>, %arg2: memref<1x8xf32, #tpu.memory_space<vmem>>, %arg3: memref<1x8xf32, #tpu.memory_space<vmem>>, %arg4: memref<1x8x256xf32, #tpu.memory_space<vmem>>, %arg5: memref<1x8x64xf32, #tpu.memory_space<vmem>>, %arg6: memref<1x64x384xf32, #tpu.memory_space<vmem>>, %arg7: memref<256x64xf32, #tpu.memory_space<vmem>>, %arg8: memref<9x16x64xf32, #tpu.memory_space<vmem>>, %arg9: memref<9x384x192xbf16, #tpu.memory_space<vmem>>, %arg10: memref<1x192xf32, #tpu.memory_space<vmem>>, %arg11: memref<1x16x192xf32, #tpu.memory_space<vmem>>) attributes {dimension_semantics = [#tpu.dimension_semantics<parallel>], iteration_bounds = array<i64: 2>, scalar_prefetch = 0 : i64, scratch_operands = 0 : i64, tpu.core_type = #tpu.core_type<tc>, window_params = [{transform_indices = @transform_0, window_bounds = array<i64: 7>}, {pipeline_mode = #tpu.pipeline_mode<synchronous>, transform_indices = @transform_1, window_bounds = array<i64: 1, 8>}, {pipeline_mode = #tpu.pipeline_mode<synchronous>, transform_indices = @transform_2, window_bounds = array<i64: 1, 8>}, {transform_indices = @transform_3, window_bounds = array<i64: 1, 8, 256>}, {transform_indices = @transform_4, window_bounds = array<i64: 1, 8, 64>}, {transform_indices = @transform_5, window_bounds = array<i64: 1, 64, 384>}, {pipeline_mode = #tpu.pipeline_mode<synchronous>, transform_indices = @transform_6, window_bounds = array<i64: 256, 64>}, {pipeline_mode = #tpu.pipeline_mode<synchronous>, transform_indices = @transform_7, window_bounds = array<i64: 9, 16, 64>}, {pipeline_mode = #tpu.pipeline_mode<synchronous>, transform_indices = @transform_8, window_bounds = array<i64: 9, 384, 192>}, {pipeline_mode = #tpu.pipeline_mode<synchronous>, transform_indices = @transform_9, window_bounds = array<i64: 1, 192>}, {transform_indices = @transform_10, window_bounds = array<i64: 1, 16, 192>}]} {
    %c0 = arith.constant 0 : index
    %0 = memref.load %arg1[%c0] : memref<7xf32, #tpu.memory_space<smem>>
    %c1 = arith.constant 1 : index
    %1 = memref.load %arg1[%c1] : memref<7xf32, #tpu.memory_space<smem>>
    %c2 = arith.constant 2 : index
    %2 = memref.load %arg1[%c2] : memref<7xf32, #tpu.memory_space<smem>>
    %c3 = arith.constant 3 : index
    %3 = memref.load %arg1[%c3] : memref<7xf32, #tpu.memory_space<smem>>
    %c4 = arith.constant 4 : index
    %4 = memref.load %arg1[%c4] : memref<7xf32, #tpu.memory_space<smem>>
    %c5 = arith.constant 5 : index
    %5 = memref.load %arg1[%c5] : memref<7xf32, #tpu.memory_space<smem>>
    %c6 = arith.constant 6 : index
    %6 = memref.load %arg1[%c6] : memref<7xf32, #tpu.memory_space<smem>>
    %c0_0 = arith.constant 0 : index
    %c0_1 = arith.constant 0 : index
    %c0_2 = arith.constant 0 : index
    %7 = vector.load %arg4[%c0_0, %c0_1, %c0_2] : memref<1x8x256xf32, #tpu.memory_space<vmem>>, vector<1x8x256xf32>
    %8 = vector.shape_cast %7 : vector<1x8x256xf32> to vector<8x256xf32>
    %c0_3 = arith.constant 0 : index
    %c0_4 = arith.constant 0 : index
    %c0_5 = arith.constant 0 : index
    %9 = vector.load %arg5[%c0_3, %c0_4, %c0_5] : memref<1x8x64xf32, #tpu.memory_space<vmem>>, vector<1x8x64xf32>
    %10 = vector.shape_cast %9 : vector<1x8x64xf32> to vector<8x64xf32>
    %c0_6 = arith.constant 0 : index
    %c0_7 = arith.constant 0 : index
    %c0_8 = arith.constant 0 : index
    %11 = vector.load %arg6[%c0_6, %c0_7, %c0_8] : memref<1x64x384xf32, #tpu.memory_space<vmem>>, vector<1x64x384xf32>
    %12 = vector.shape_cast %11 : vector<1x64x384xf32> to vector<64x384xf32>
    %c0_9 = arith.constant 0 : index
    %c0_10 = arith.constant 0 : index
    %13 = vector.load %arg2[%c0_9, %c0_10] : memref<1x8xf32, #tpu.memory_space<vmem>>, vector<1x8xf32>
    %cst = arith.constant dense<0.000000e+00> : vector<1x256xf32>
    %14 = tpu.matmul %13, %8, %cst {dimension_numbers = #tpu.dot_dimension_numbers<[1], [0], [0], [1], [0, 0, 1, 1], [], []>} : vector<1x8xf32>, vector<8x256xf32>, vector<1x256xf32> -> vector<1x256xf32>
    %15 = vector.broadcast %0 : f32 to vector<1x256xf32>
    %16 = arith.addf %14, %15 : vector<1x256xf32>
    %17 = vector.broadcast %2 : f32 to vector<1x256xf32>
    %18 = arith.mulf %16, %17 : vector<1x256xf32>
    %19 = vector.broadcast %3 : f32 to vector<1x256xf32>
    %20 = arith.addf %18, %19 : vector<1x256xf32>
    %21 = math.exp %20 : vector<1x256xf32>
    %22 = arith.mulf %20, %21 : vector<1x256xf32>
    %c0_11 = arith.constant 0 : index
    %c0_12 = arith.constant 0 : index
    %23 = vector.load %arg7[%c0_11, %c0_12] : memref<256x64xf32, #tpu.memory_space<vmem>>, vector<256x64xf32>
    %cst_13 = arith.constant dense<0.000000e+00> : vector<1x64xf32>
    %24 = tpu.matmul %22, %23, %cst_13 {dimension_numbers = #tpu.dot_dimension_numbers<[1], [0], [0], [1], [0, 0, 1, 1], [], []>} : vector<1x256xf32>, vector<256x64xf32>, vector<1x64xf32> -> vector<1x64xf32>
    %c0_14 = arith.constant 0 : index
    %c0_15 = arith.constant 0 : index
    %25 = vector.load %arg7[%c0_14, %c0_15] : memref<256x64xf32, #tpu.memory_space<vmem>>, vector<256x64xf32>
    %cst_16 = arith.constant dense<0.000000e+00> : vector<1x64xf32>
    %26 = tpu.matmul %21, %25, %cst_16 {dimension_numbers = #tpu.dot_dimension_numbers<[1], [0], [0], [1], [0, 0, 1, 1], [], []>} : vector<1x256xf32>, vector<256x64xf32>, vector<1x64xf32> -> vector<1x64xf32>
    %cst_17 = arith.constant 9.99999993E-9 : f32
    %27 = vector.broadcast %cst_17 : f32 to vector<1x64xf32>
    %28 = arith.addf %26, %27 : vector<1x64xf32>
    %29 = arith.divf %24, %28 : vector<1x64xf32>
    %c0_18 = arith.constant 0 : index
    %c0_19 = arith.constant 0 : index
    %30 = vector.load %arg3[%c0_18, %c0_19] : memref<1x8xf32, #tpu.memory_space<vmem>>, vector<1x8xf32>
    %cst_20 = arith.constant dense<0.000000e+00> : vector<1x64xf32>
    %31 = tpu.matmul %30, %10, %cst_20 {dimension_numbers = #tpu.dot_dimension_numbers<[1], [0], [0], [1], [0, 0, 1, 1], [], []>} : vector<1x8xf32>, vector<8x64xf32>, vector<1x64xf32> -> vector<1x64xf32>
    %32 = vector.broadcast %1 : f32 to vector<1x64xf32>
    %33 = arith.addf %31, %32 : vector<1x64xf32>
    %34 = vector.broadcast %4 : f32 to vector<1x64xf32>
    %35 = arith.mulf %34, %29 : vector<1x64xf32>
    %36 = vector.broadcast %5 : f32 to vector<1x64xf32>
    %37 = arith.mulf %36, %33 : vector<1x64xf32>
    %38 = arith.addf %35, %37 : vector<1x64xf32>
    %39 = vector.broadcast %6 : f32 to vector<1x64xf32>
    %40 = arith.addf %38, %39 : vector<1x64xf32>
    %cst_21 = arith.constant 0.000000e+00 : f32
    %41 = vector.broadcast %cst_21 : f32 to vector<1x64xf32>
    %42 = arith.maximumf %40, %41 : vector<1x64xf32>
    %cst_22 = arith.constant 1.000000e+00 : f32
    %43 = vector.broadcast %cst_22 : f32 to vector<1x64xf32>
    %44 = arith.addf %43, %42 : vector<1x64xf32>
    %cst_23 = arith.constant 0.000000e+00 : f32
    %45 = vector.broadcast %cst_23 : f32 to vector<16x192xf32>
    %c0_24 = arith.constant 0 : index
    %c0_25 = arith.constant 0 : index
    %c0_26 = arith.constant 0 : index
    %46 = vector.load %arg8[%c0_24, %c0_25, %c0_26] : memref<9x16x64xf32, #tpu.memory_space<vmem>>, vector<1x16x64xf32>
    %47 = vector.shape_cast %46 : vector<1x16x64xf32> to vector<16x64xf32>
    %48 = vector.broadcast %44 : vector<1x64xf32> to vector<16x64xf32>
    %49 = arith.mulf %47, %48 : vector<16x64xf32>
    %cst_27 = arith.constant dense<0.000000e+00> : vector<16x384xf32>
    %50 = tpu.matmul %49, %12, %cst_27 {dimension_numbers = #tpu.dot_dimension_numbers<[1], [0], [0], [1], [0, 0, 1, 1], [], []>} : vector<16x64xf32>, vector<64x384xf32>, vector<16x384xf32> -> vector<16x384xf32>
    %51 = arith.truncf %50 : vector<16x384xf32> to vector<16x384xbf16>
    %c0_28 = arith.constant 0 : index
    %c0_29 = arith.constant 0 : index
    %c0_30 = arith.constant 0 : index
    %52 = vector.load %arg9[%c0_28, %c0_29, %c0_30] : memref<9x384x192xbf16, #tpu.memory_space<vmem>>, vector<1x384x192xbf16>
    %53 = vector.shape_cast %52 : vector<1x384x192xbf16> to vector<384x192xbf16>
    %cst_31 = arith.constant dense<0.000000e+00> : vector<16x192xf32>
    %54 = tpu.matmul %51, %53, %cst_31 {dimension_numbers = #tpu.dot_dimension_numbers<[1], [0], [0], [1], [0, 0, 1, 1], [], []>} : vector<16x384xbf16>, vector<384x192xbf16>, vector<16x192xf32> -> vector<16x192xf32>
    %55 = arith.addf %45, %54 : vector<16x192xf32>
    %c1_32 = arith.constant 1 : index
    %c0_33 = arith.constant 0 : index
    %c0_34 = arith.constant 0 : index
    %56 = vector.load %arg8[%c1_32, %c0_33, %c0_34] : memref<9x16x64xf32, #tpu.memory_space<vmem>>, vector<1x16x64xf32>
    %57 = vector.shape_cast %56 : vector<1x16x64xf32> to vector<16x64xf32>
    %58 = vector.broadcast %44 : vector<1x64xf32> to vector<16x64xf32>
    %59 = arith.mulf %57, %58 : vector<16x64xf32>
    %cst_35 = arith.constant dense<0.000000e+00> : vector<16x384xf32>
    %60 = tpu.matmul %59, %12, %cst_35 {dimension_numbers = #tpu.dot_dimension_numbers<[1], [0], [0], [1], [0, 0, 1, 1], [], []>} : vector<16x64xf32>, vector<64x384xf32>, vector<16x384xf32> -> vector<16x384xf32>
    %61 = arith.truncf %60 : vector<16x384xf32> to vector<16x384xbf16>
    %c1_36 = arith.constant 1 : index
    %c0_37 = arith.constant 0 : index
    %c0_38 = arith.constant 0 : index
    %62 = vector.load %arg9[%c1_36, %c0_37, %c0_38] : memref<9x384x192xbf16, #tpu.memory_space<vmem>>, vector<1x384x192xbf16>
    %63 = vector.shape_cast %62 : vector<1x384x192xbf16> to vector<384x192xbf16>
    %cst_39 = arith.constant dense<0.000000e+00> : vector<16x192xf32>
    %64 = tpu.matmul %61, %63, %cst_39 {dimension_numbers = #tpu.dot_dimension_numbers<[1], [0], [0], [1], [0, 0, 1, 1], [], []>} : vector<16x384xbf16>, vector<384x192xbf16>, vector<16x192xf32> -> vector<16x192xf32>
    %65 = arith.addf %55, %64 : vector<16x192xf32>
    %c2_40 = arith.constant 2 : index
    %c0_41 = arith.constant 0 : index
    %c0_42 = arith.constant 0 : index
    %66 = vector.load %arg8[%c2_40, %c0_41, %c0_42] : memref<9x16x64xf32, #tpu.memory_space<vmem>>, vector<1x16x64xf32>
    %67 = vector.shape_cast %66 : vector<1x16x64xf32> to vector<16x64xf32>
    %68 = vector.broadcast %44 : vector<1x64xf32> to vector<16x64xf32>
    %69 = arith.mulf %67, %68 : vector<16x64xf32>
    %cst_43 = arith.constant dense<0.000000e+00> : vector<16x384xf32>
    %70 = tpu.matmul %69, %12, %cst_43 {dimension_numbers = #tpu.dot_dimension_numbers<[1], [0], [0], [1], [0, 0, 1, 1], [], []>} : vector<16x64xf32>, vector<64x384xf32>, vector<16x384xf32> -> vector<16x384xf32>
    %71 = arith.truncf %70 : vector<16x384xf32> to vector<16x384xbf16>
    %c2_44 = arith.constant 2 : index
    %c0_45 = arith.constant 0 : index
    %c0_46 = arith.constant 0 : index
    %72 = vector.load %arg9[%c2_44, %c0_45, %c0_46] : memref<9x384x192xbf16, #tpu.memory_space<vmem>>, vector<1x384x192xbf16>
    %73 = vector.shape_cast %72 : vector<1x384x192xbf16> to vector<384x192xbf16>
    %cst_47 = arith.constant dense<0.000000e+00> : vector<16x192xf32>
    %74 = tpu.matmul %71, %73, %cst_47 {dimension_numbers = #tpu.dot_dimension_numbers<[1], [0], [0], [1], [0, 0, 1, 1], [], []>} : vector<16x384xbf16>, vector<384x192xbf16>, vector<16x192xf32> -> vector<16x192xf32>
    %75 = arith.addf %65, %74 : vector<16x192xf32>
    %c3_48 = arith.constant 3 : index
    %c0_49 = arith.constant 0 : index
    %c0_50 = arith.constant 0 : index
    %76 = vector.load %arg8[%c3_48, %c0_49, %c0_50] : memref<9x16x64xf32, #tpu.memory_space<vmem>>, vector<1x16x64xf32>
    %77 = vector.shape_cast %76 : vector<1x16x64xf32> to vector<16x64xf32>
    %78 = vector.broadcast %44 : vector<1x64xf32> to vector<16x64xf32>
    %79 = arith.mulf %77, %78 : vector<16x64xf32>
    %cst_51 = arith.constant dense<0.000000e+00> : vector<16x384xf32>
    %80 = tpu.matmul %79, %12, %cst_51 {dimension_numbers = #tpu.dot_dimension_numbers<[1], [0], [0], [1], [0, 0, 1, 1], [], []>} : vector<16x64xf32>, vector<64x384xf32>, vector<16x384xf32> -> vector<16x384xf32>
    %81 = arith.truncf %80 : vector<16x384xf32> to vector<16x384xbf16>
    %c3_52 = arith.constant 3 : index
    %c0_53 = arith.constant 0 : index
    %c0_54 = arith.constant 0 : index
    %82 = vector.load %arg9[%c3_52, %c0_53, %c0_54] : memref<9x384x192xbf16, #tpu.memory_space<vmem>>, vector<1x384x192xbf16>
    %83 = vector.shape_cast %82 : vector<1x384x192xbf16> to vector<384x192xbf16>
    %cst_55 = arith.constant dense<0.000000e+00> : vector<16x192xf32>
    %84 = tpu.matmul %81, %83, %cst_55 {dimension_numbers = #tpu.dot_dimension_numbers<[1], [0], [0], [1], [0, 0, 1, 1], [], []>} : vector<16x384xbf16>, vector<384x192xbf16>, vector<16x192xf32> -> vector<16x192xf32>
    %85 = arith.addf %75, %84 : vector<16x192xf32>
    %c4_56 = arith.constant 4 : index
    %c0_57 = arith.constant 0 : index
    %c0_58 = arith.constant 0 : index
    %86 = vector.load %arg8[%c4_56, %c0_57, %c0_58] : memref<9x16x64xf32, #tpu.memory_space<vmem>>, vector<1x16x64xf32>
    %87 = vector.shape_cast %86 : vector<1x16x64xf32> to vector<16x64xf32>
    %88 = vector.broadcast %44 : vector<1x64xf32> to vector<16x64xf32>
    %89 = arith.mulf %87, %88 : vector<16x64xf32>
    %cst_59 = arith.constant dense<0.000000e+00> : vector<16x384xf32>
    %90 = tpu.matmul %89, %12, %cst_59 {dimension_numbers = #tpu.dot_dimension_numbers<[1], [0], [0], [1], [0, 0, 1, 1], [], []>} : vector<16x64xf32>, vector<64x384xf32>, vector<16x384xf32> -> vector<16x384xf32>
    %91 = arith.truncf %90 : vector<16x384xf32> to vector<16x384xbf16>
    %c4_60 = arith.constant 4 : index
    %c0_61 = arith.constant 0 : index
    %c0_62 = arith.constant 0 : index
    %92 = vector.load %arg9[%c4_60, %c0_61, %c0_62] : memref<9x384x192xbf16, #tpu.memory_space<vmem>>, vector<1x384x192xbf16>
    %93 = vector.shape_cast %92 : vector<1x384x192xbf16> to vector<384x192xbf16>
    %cst_63 = arith.constant dense<0.000000e+00> : vector<16x192xf32>
    %94 = tpu.matmul %91, %93, %cst_63 {dimension_numbers = #tpu.dot_dimension_numbers<[1], [0], [0], [1], [0, 0, 1, 1], [], []>} : vector<16x384xbf16>, vector<384x192xbf16>, vector<16x192xf32> -> vector<16x192xf32>
    %95 = arith.addf %85, %94 : vector<16x192xf32>
    %c5_64 = arith.constant 5 : index
    %c0_65 = arith.constant 0 : index
    %c0_66 = arith.constant 0 : index
    %96 = vector.load %arg8[%c5_64, %c0_65, %c0_66] : memref<9x16x64xf32, #tpu.memory_space<vmem>>, vector<1x16x64xf32>
    %97 = vector.shape_cast %96 : vector<1x16x64xf32> to vector<16x64xf32>
    %98 = vector.broadcast %44 : vector<1x64xf32> to vector<16x64xf32>
    %99 = arith.mulf %97, %98 : vector<16x64xf32>
    %cst_67 = arith.constant dense<0.000000e+00> : vector<16x384xf32>
    %100 = tpu.matmul %99, %12, %cst_67 {dimension_numbers = #tpu.dot_dimension_numbers<[1], [0], [0], [1], [0, 0, 1, 1], [], []>} : vector<16x64xf32>, vector<64x384xf32>, vector<16x384xf32> -> vector<16x384xf32>
    %101 = arith.truncf %100 : vector<16x384xf32> to vector<16x384xbf16>
    %c5_68 = arith.constant 5 : index
    %c0_69 = arith.constant 0 : index
    %c0_70 = arith.constant 0 : index
    %102 = vector.load %arg9[%c5_68, %c0_69, %c0_70] : memref<9x384x192xbf16, #tpu.memory_space<vmem>>, vector<1x384x192xbf16>
    %103 = vector.shape_cast %102 : vector<1x384x192xbf16> to vector<384x192xbf16>
    %cst_71 = arith.constant dense<0.000000e+00> : vector<16x192xf32>
    %104 = tpu.matmul %101, %103, %cst_71 {dimension_numbers = #tpu.dot_dimension_numbers<[1], [0], [0], [1], [0, 0, 1, 1], [], []>} : vector<16x384xbf16>, vector<384x192xbf16>, vector<16x192xf32> -> vector<16x192xf32>
    %105 = arith.addf %95, %104 : vector<16x192xf32>
    %c6_72 = arith.constant 6 : index
    %c0_73 = arith.constant 0 : index
    %c0_74 = arith.constant 0 : index
    %106 = vector.load %arg8[%c6_72, %c0_73, %c0_74] : memref<9x16x64xf32, #tpu.memory_space<vmem>>, vector<1x16x64xf32>
    %107 = vector.shape_cast %106 : vector<1x16x64xf32> to vector<16x64xf32>
    %108 = vector.broadcast %44 : vector<1x64xf32> to vector<16x64xf32>
    %109 = arith.mulf %107, %108 : vector<16x64xf32>
    %cst_75 = arith.constant dense<0.000000e+00> : vector<16x384xf32>
    %110 = tpu.matmul %109, %12, %cst_75 {dimension_numbers = #tpu.dot_dimension_numbers<[1], [0], [0], [1], [0, 0, 1, 1], [], []>} : vector<16x64xf32>, vector<64x384xf32>, vector<16x384xf32> -> vector<16x384xf32>
    %111 = arith.truncf %110 : vector<16x384xf32> to vector<16x384xbf16>
    %c6_76 = arith.constant 6 : index
    %c0_77 = arith.constant 0 : index
    %c0_78 = arith.constant 0 : index
    %112 = vector.load %arg9[%c6_76, %c0_77, %c0_78] : memref<9x384x192xbf16, #tpu.memory_space<vmem>>, vector<1x384x192xbf16>
    %113 = vector.shape_cast %112 : vector<1x384x192xbf16> to vector<384x192xbf16>
    %cst_79 = arith.constant dense<0.000000e+00> : vector<16x192xf32>
    %114 = tpu.matmul %111, %113, %cst_79 {dimension_numbers = #tpu.dot_dimension_numbers<[1], [0], [0], [1], [0, 0, 1, 1], [], []>} : vector<16x384xbf16>, vector<384x192xbf16>, vector<16x192xf32> -> vector<16x192xf32>
    %115 = arith.addf %105, %114 : vector<16x192xf32>
    %c7 = arith.constant 7 : index
    %c0_80 = arith.constant 0 : index
    %c0_81 = arith.constant 0 : index
    %116 = vector.load %arg8[%c7, %c0_80, %c0_81] : memref<9x16x64xf32, #tpu.memory_space<vmem>>, vector<1x16x64xf32>
    %117 = vector.shape_cast %116 : vector<1x16x64xf32> to vector<16x64xf32>
    %118 = vector.broadcast %44 : vector<1x64xf32> to vector<16x64xf32>
    %119 = arith.mulf %117, %118 : vector<16x64xf32>
    %cst_82 = arith.constant dense<0.000000e+00> : vector<16x384xf32>
    %120 = tpu.matmul %119, %12, %cst_82 {dimension_numbers = #tpu.dot_dimension_numbers<[1], [0], [0], [1], [0, 0, 1, 1], [], []>} : vector<16x64xf32>, vector<64x384xf32>, vector<16x384xf32> -> vector<16x384xf32>
    %121 = arith.truncf %120 : vector<16x384xf32> to vector<16x384xbf16>
    %c7_83 = arith.constant 7 : index
    %c0_84 = arith.constant 0 : index
    %c0_85 = arith.constant 0 : index
    %122 = vector.load %arg9[%c7_83, %c0_84, %c0_85] : memref<9x384x192xbf16, #tpu.memory_space<vmem>>, vector<1x384x192xbf16>
    %123 = vector.shape_cast %122 : vector<1x384x192xbf16> to vector<384x192xbf16>
    %cst_86 = arith.constant dense<0.000000e+00> : vector<16x192xf32>
    %124 = tpu.matmul %121, %123, %cst_86 {dimension_numbers = #tpu.dot_dimension_numbers<[1], [0], [0], [1], [0, 0, 1, 1], [], []>} : vector<16x384xbf16>, vector<384x192xbf16>, vector<16x192xf32> -> vector<16x192xf32>
    %125 = arith.addf %115, %124 : vector<16x192xf32>
    %c8 = arith.constant 8 : index
    %c0_87 = arith.constant 0 : index
    %c0_88 = arith.constant 0 : index
    %126 = vector.load %arg8[%c8, %c0_87, %c0_88] : memref<9x16x64xf32, #tpu.memory_space<vmem>>, vector<1x16x64xf32>
    %127 = vector.shape_cast %126 : vector<1x16x64xf32> to vector<16x64xf32>
    %128 = vector.broadcast %44 : vector<1x64xf32> to vector<16x64xf32>
    %129 = arith.mulf %127, %128 : vector<16x64xf32>
    %cst_89 = arith.constant dense<0.000000e+00> : vector<16x384xf32>
    %130 = tpu.matmul %129, %12, %cst_89 {dimension_numbers = #tpu.dot_dimension_numbers<[1], [0], [0], [1], [0, 0, 1, 1], [], []>} : vector<16x64xf32>, vector<64x384xf32>, vector<16x384xf32> -> vector<16x384xf32>
    %131 = arith.truncf %130 : vector<16x384xf32> to vector<16x384xbf16>
    %c8_90 = arith.constant 8 : index
    %c0_91 = arith.constant 0 : index
    %c0_92 = arith.constant 0 : index
    %132 = vector.load %arg9[%c8_90, %c0_91, %c0_92] : memref<9x384x192xbf16, #tpu.memory_space<vmem>>, vector<1x384x192xbf16>
    %133 = vector.shape_cast %132 : vector<1x384x192xbf16> to vector<384x192xbf16>
    %cst_93 = arith.constant dense<0.000000e+00> : vector<16x192xf32>
    %134 = tpu.matmul %131, %133, %cst_93 {dimension_numbers = #tpu.dot_dimension_numbers<[1], [0], [0], [1], [0, 0, 1, 1], [], []>} : vector<16x384xbf16>, vector<384x192xbf16>, vector<16x192xf32> -> vector<16x192xf32>
    %135 = arith.addf %125, %134 : vector<16x192xf32>
    %c0_94 = arith.constant 0 : index
    %c0_95 = arith.constant 0 : index
    %136 = vector.load %arg10[%c0_94, %c0_95] : memref<1x192xf32, #tpu.memory_space<vmem>>, vector<1x192xf32>
    %137 = vector.broadcast %136 : vector<1x192xf32> to vector<16x192xf32>
    %138 = arith.addf %135, %137 : vector<16x192xf32>
    %cst_96 = arith.constant 0.000000e+00 : f32
    %139 = vector.broadcast %cst_96 : f32 to vector<16x192xf32>
    %140 = arith.maximumf %138, %139 : vector<16x192xf32>
    %c0_97 = arith.constant 0 : index
    %c0_98 = arith.constant 0 : index
    %c0_99 = arith.constant 0 : index
    %141 = vector.load %arg11[%c0_97, %c0_98, %c0_99] : memref<1x16x192xf32, #tpu.memory_space<vmem>>, vector<1x16x192xf32>
    %142 = vector.shape_cast %141 : vector<1x16x192xf32> to vector<16x192xf32>
    %143 = vector.shape_cast %140 : vector<16x192xf32> to vector<1x16x192xf32>
    tpu.vector_store %arg11[%c0_97, %c0_98, %c0_99], %143 {strides = array<i32>} : memref<1x16x192xf32, #tpu.memory_space<vmem>>, vector<1x16x192xf32>,
    return
  }
  func.func @transform_0(%arg0: i32) -> i32 {
    %c0_i32 = arith.constant 0 : i32
    %c0_i32_0 = arith.constant 0 : i32
    return %c0_i32 : i32
  }
  func.func @transform_1(%arg0: i32) -> (i32, i32) {
    %c0_i32 = arith.constant 0 : i32
    %c0_i32_0 = arith.constant 0 : i32
    %c0_i32_1 = arith.constant 0 : i32
    return %c0_i32, %c0_i32_0 : i32, i32
  }
  func.func @transform_2(%arg0: i32) -> (i32, i32) {
    %c0_i32 = arith.constant 0 : i32
    %c0_i32_0 = arith.constant 0 : i32
    %c0_i32_1 = arith.constant 0 : i32
    return %c0_i32, %c0_i32_0 : i32, i32
  }
  func.func @transform_3(%arg0: i32) -> (i32, i32, i32) {
    %c0_i32 = arith.constant 0 : i32
    %c0_i32_0 = arith.constant 0 : i32
    %c0_i32_1 = arith.constant 0 : i32
    return %arg0, %c0_i32, %c0_i32_0 : i32, i32, i32
  }
  func.func @transform_4(%arg0: i32) -> (i32, i32, i32) {
    %c0_i32 = arith.constant 0 : i32
    %c0_i32_0 = arith.constant 0 : i32
    %c0_i32_1 = arith.constant 0 : i32
    return %arg0, %c0_i32, %c0_i32_0 : i32, i32, i32
  }
  func.func @transform_5(%arg0: i32) -> (i32, i32, i32) {
    %c0_i32 = arith.constant 0 : i32
    %c0_i32_0 = arith.constant 0 : i32
    %c0_i32_1 = arith.constant 0 : i32
    return %arg0, %c0_i32, %c0_i32_0 : i32, i32, i32
  }
  func.func @transform_6(%arg0: i32) -> (i32, i32) {
    %c0_i32 = arith.constant 0 : i32
    %c0_i32_0 = arith.constant 0 : i32
    %c0_i32_1 = arith.constant 0 : i32
    return %c0_i32, %c0_i32_0 : i32, i32
  }
  func.func @transform_7(%arg0: i32) -> (i32, i32, i32) {
    %c0_i32 = arith.constant 0 : i32
    %c0_i32_0 = arith.constant 0 : i32
    %c0_i32_1 = arith.constant 0 : i32
    %c0_i32_2 = arith.constant 0 : i32
    return %c0_i32, %c0_i32_0, %c0_i32_1 : i32, i32, i32
  }
  func.func @transform_8(%arg0: i32) -> (i32, i32, i32) {
    %c0_i32 = arith.constant 0 : i32
    %c0_i32_0 = arith.constant 0 : i32
    %c0_i32_1 = arith.constant 0 : i32
    %c0_i32_2 = arith.constant 0 : i32
    return %c0_i32, %c0_i32_0, %c0_i32_1 : i32, i32, i32
  }
  func.func @transform_9(%arg0: i32) -> (i32, i32) {
    %c0_i32 = arith.constant 0 : i32
    %c0_i32_0 = arith.constant 0 : i32
    %c0_i32_1 = arith.constant 0 : i32
    return %c0_i32, %c0_i32_0 : i32, i32
  }
  func.func @transform_10(%arg0: i32) -> (i32, i32, i32) {
    %c0_i32 = arith.constant 0 : i32
    %c0_i32_0 = arith.constant 0 : i32
    %c0_i32_1 = arith.constant 0 : i32
    return %arg0, %c0_i32, %c0_i32_0 : i32, i32, i32
  }
}

</mosaic_0001>

<llo_original>
// kernel: tpu_custom_call.1
$region0: #{tpu_custom_call.1}
  #allocation0 [shape = 'u32[]', space=smem, size = 0x4, offset = 0x4, fixed_abs, tag = 'smem constant byte address 0x4 - core index']
  #allocation1 [shape = 'u32[72,128]{1,0:T(1,128)}', space=vmem, size = 0x9000, scoped, tag = 'internal scratch']
  %s0 = inlined_call_operand.vmem [shape: f32[7], index: 0, kind: input, shape index: {}]
  %s1 = inlined_call_operand.vmem [shape: f32[1,8], index: 1, kind: input, shape index: {}]
  %s2 = inlined_call_operand.vmem [shape: f32[1,8], index: 2, kind: input, shape index: {}]
  %s3 = inlined_call_operand.vmem [shape: f32[2,8,256], index: 3, kind: input, shape index: {}]
  %s4 = inlined_call_operand.vmem [shape: f32[2,8,64], index: 4, kind: input, shape index: {}]
  %s5 = inlined_call_operand.vmem [shape: f32[2,64,384], index: 5, kind: input, shape index: {}]
  %s6 = inlined_call_operand.vmem [shape: f32[256,64], index: 6, kind: input, shape index: {}]
  %s7 = inlined_call_operand.vmem [shape: f32[9,16,64], index: 7, kind: input, shape index: {}]
  %s8 = inlined_call_operand.vmem [shape: bf16[9,384,192], index: 8, kind: input, shape index: {}]
  %s9 = inlined_call_operand.vmem [shape: f32[1,192], index: 9, kind: input, shape index: {}]
  %s10 = inlined_call_operand.hbm [shape: f32[2,16,192], index: 10, kind: output, shape index: {}]
  %s11 = sld [smem:[#allocation0]]
  $region77: #{tpu_custom_call.1} parent=0
    _
  %s13 = ssub.s32 1, %s11
  %s14 = scalar_select 0, %s13, %s11
  $region1: #{tpu_custom_call.1} parent=0
    #allocation2 [shape = 'u8[512]{0}', space=smem, size = 0x200, scoped, tag = 'input window, operand 0, single buffered']
    #allocation3 [shape = 's32[2]{0}', space=sflag, size = 0x8, scoped, tag = 'scoped memory for tpu_custom_call.1']
    #allocation4 [shape = 's32[2]{0}', space=sflag, size = 0x8, scoped, tag = 'scoped memory for tpu_custom_call.1']
    #allocation5 [shape = 'u8[32768]{0}', space=vmem, size = 0x8000, scoped, tag = 'output window, operand 0']
    %15 = vsyncpa [#allocation4], 0
    %16 = vsyncpa [#allocation3], 0
    %s17 = scalar_lea.sflag [#allocation3], 1
    %18 = vsyncpa %s17, 0
    loop: start=0, step=1, limit=4
    $region2: #{tpu_custom_call.1} parent=1 // loop_pre_header
      _
    $region3: #{tpu_custom_call.1} parent=1 // loop_header
      %s20 = sphi 0, %s24
      %p21 = scmp.ge.s32.totalorder %s20, 4
      %s28 = sphi 0, %s28
      %s30 = sphi 0, %s28
      %s31 = sphi 0, %s30
      %s45 = sphi 0, %s31
      %s49 = sphi 0, %s49
      %s51 = sphi 0, %s49
      %s52 = sphi 0, %s51
      %s66 = sphi 0, %s52
      %s70 = sphi 0, %s70
      %s72 = sphi 0, %s70
      %s73 = sphi 0, %s72
      %s87 = sphi 0, %s73
      %s93 = sphi 0, %s95
      %s96 = sphi 0, %s93
      %s97 = sphi 0, %s96
      %s113 = sphi 0, %s97
      %s119 = sphi 0, %s121
      %s122 = sphi 0, %s119
      %s123 = sphi 0, %s122
      %s139 = sphi 0, %s123
      %s145 = sphi 0, %s147
      %s148 = sphi 0, %s145
      %s149 = sphi 0, %s148
      %s165 = sphi 0, %s149
      %s169 = sphi 0, %s169
      %s171 = sphi 0, %s169
      %s172 = sphi 0, %s171
      %s186 = sphi 0, %s172
      %s190 = sphi 0, %s190
      %s192 = sphi 0, %s190
      %s193 = sphi 0, %s192
      %s207 = sphi 0, %s193
      %s211 = sphi 0, %s211
      %s213 = sphi 0, %s211
      %s214 = sphi 0, %s213
      %s228 = sphi 0, %s214
      %s232 = sphi 0, %s232
      %s234 = sphi 0, %s232
      %s235 = sphi 0, %s234
      %s249 = sphi 0, %s235
      %s255 = sphi 0, %s257
      %s258 = sphi 0, %s255
      %s259 = sphi 0, %s258
      %s275 = sphi 0, %s259
    $region4: #{tpu_custom_call.1} parent=1 // loop_header_branch
      %23 = sbr.rel (%p21) target = $region8
    $region5: #{tpu_custom_call.1} parent=1 // loop_body
      %s25 = ssub.s32 %s20, 1
      %s26 = ssub.s32 %s20, 2
      %s27 = sadd.s32 %s20, 1
      %s29 = sadd.s32 %s28, 1
      %p32 = scmp.eq.s32.totalorder %s20, 1
      %p33 = scmp.ne.s32.totalorder %s28, %s30
      %p34 = scmp.eq.s32.totalorder %s20, 0
      %p35 = por %p33, %p34
      %p36 = scmp.ne.s32.totalorder %s28, %s30
      %p37 = scmp.eq.s32.totalorder %s25, 1
      %p38 = por %p36, %p37
      %p39 = scmp.ne.s32.totalorder %s30, %s31
      %p40 = scmp.eq.s32.totalorder %s25, 0
      %p41 = por %p39, %p40
      %p42 = scmp.ne.s32.totalorder %s30, %s31
      %p43 = scmp.eq.s32.totalorder %s26, 1
      %p44 = por %p42, %p43
      %p46 = scmp.ne.s32.totalorder %s31, %s45
      %p47 = scmp.eq.s32.totalorder %s26, 0
      %p48 = por %p46, %p47
      %s50 = sadd.s32 %s49, 1
      %p53 = scmp.eq.s32.totalorder %s20, 1
      %p54 = scmp.ne.s32.totalorder %s49, %s51
      %p55 = scmp.eq.s32.totalorder %s20, 0
      %p56 = por %p54, %p55
      %p57 = scmp.ne.s32.totalorder %s49, %s51
      %p58 = scmp.eq.s32.totalorder %s25, 1
      %p59 = por %p57, %p58
      %p60 = scmp.ne.s32.totalorder %s51, %s52
      %p61 = scmp.eq.s32.totalorder %s25, 0
      %p62 = por %p60, %p61
      %p63 = scmp.ne.s32.totalorder %s51, %s52
      %p64 = scmp.eq.s32.totalorder %s26, 1
      %p65 = por %p63, %p64
      %p67 = scmp.ne.s32.totalorder %s52, %s66
      %p68 = scmp.eq.s32.totalorder %s26, 0
      %p69 = por %p67, %p68
      %s71 = sadd.s32 %s70, 1
      %p74 = scmp.eq.s32.totalorder %s20, 1
      %p75 = scmp.ne.s32.totalorder %s70, %s72
      %p76 = scmp.eq.s32.totalorder %s20, 0
      %p77 = por %p75, %p76
      %p78 = scmp.ne.s32.totalorder %s70, %s72
      %p79 = scmp.eq.s32.totalorder %s25, 1
      %p80 = por %p78, %p79
      %p81 = scmp.ne.s32.totalorder %s72, %s73
      %p82 = scmp.eq.s32.totalorder %s25, 0
      %p83 = por %p81, %p82
      %p84 = scmp.ne.s32.totalorder %s72, %s73
      %p85 = scmp.eq.s32.totalorder %s26, 1
      %p86 = por %p84, %p85
      %p88 = scmp.ne.s32.totalorder %s73, %s87
      %p89 = scmp.eq.s32.totalorder %s26, 0
      %p90 = por %p88, %p89
      %s91 = ssub.s32 %s20, %s27
      %p92 = scmp.eq.s32.totalorder %s91, 0
      %s94 = sadd.s32 %s93, 1
      %s95 = scalar_select %p92, %s93, %s94
      %p98 = pneg %p92
      %p99 = scmp.eq.s32.totalorder %s20, 1
      %p100 = por %p98, %p99
      %p101 = scmp.ne.s32.totalorder %s93, %s96
      %p102 = scmp.eq.s32.totalorder %s20, 0
      %p103 = por %p101, %p102
      %p104 = scmp.ne.s32.totalorder %s93, %s96
      %p105 = scmp.eq.s32.totalorder %s25, 1
      %p106 = por %p104, %p105
      %p107 = scmp.ne.s32.totalorder %s96, %s97
      %p108 = scmp.eq.s32.totalorder %s25, 0
      %p109 = por %p107, %p108
      %p110 = scmp.ne.s32.totalorder %s96, %s97
      %p111 = scmp.eq.s32.totalorder %s26, 1
      %p112 = por %p110, %p111
      %p114 = scmp.ne.s32.totalorder %s97, %s113
      %p115 = scmp.eq.s32.totalorder %s26, 0
      %p116 = por %p114, %p115
      %s117 = ssub.s32 %s20, %s27
      %p118 = scmp.eq.s32.totalorder %s117, 0
      %s120 = sadd.s32 %s119, 1
      %s121 = scalar_select %p118, %s119, %s120
      %p124 = pneg %p118
      %p125 = scmp.eq.s32.totalorder %s20, 1
      %p126 = por %p124, %p125
      %p127 = scmp.ne.s32.totalorder %s119, %s122
      %p128 = scmp.eq.s32.totalorder %s20, 0
      %p129 = por %p127, %p128
      %p130 = scmp.ne.s32.totalorder %s119, %s122
      %p131 = scmp.eq.s32.totalorder %s25, 1
      %p132 = por %p130, %p131
      %p133 = scmp.ne.s32.totalorder %s122, %s123
      %p134 = scmp.eq.s32.totalorder %s25, 0
      %p135 = por %p133, %p134
      %p136 = scmp.ne.s32.totalorder %s122, %s123
      %p137 = scmp.eq.s32.totalorder %s26, 1
      %p138 = por %p136, %p137
      %p140 = scmp.ne.s32.totalorder %s123, %s139
      %p141 = scmp.eq.s32.totalorder %s26, 0
      %p142 = por %p140, %p141
      %s143 = ssub.s32 %s20, %s27
      %p144 = scmp.eq.s32.totalorder %s143, 0
      %s146 = sadd.s32 %s145, 1
      %s147 = scalar_select %p144, %s145, %s146
      %p150 = pneg %p144
      %p151 = scmp.eq.s32.totalorder %s20, 1
      %p152 = por %p150, %p151
      %p153 = scmp.ne.s32.totalorder %s145, %s148
      %p154 = scmp.eq.s32.totalorder %s20, 0
      %p155 = por %p153, %p154
      %p156 = scmp.ne.s32.totalorder %s145, %s148
      %p157 = scmp.eq.s32.totalorder %s25, 1
      %p158 = por %p156, %p157
      %p159 = scmp.ne.s32.totalorder %s148, %s149
      %p160 = scmp.eq.s32.totalorder %s25, 0
      %p161 = por %p159, %p160
      %p162 = scmp.ne.s32.totalorder %s148, %s149
      %p163 = scmp.eq.s32.totalorder %s26, 1
      %p164 = por %p162, %p163
      %p166 = scmp.ne.s32.totalorder %s149, %s165
      %p167 = scmp.eq.s32.totalorder %s26, 0
      %p168 = por %p166, %p167
      %s170 = sadd.s32 %s169, 1
      %p173 = scmp.eq.s32.totalorder %s20, 1
      %p174 = scmp.ne.s32.totalorder %s169, %s171
      %p175 = scmp.eq.s32.totalorder %s20, 0
      %p176 = por %p174, %p175
      %p177 = scmp.ne.s32.totalorder %s169, %s171
      %p178 = scmp.eq.s32.totalorder %s25, 1
      %p179 = por %p177, %p178
      %p180 = scmp.ne.s32.totalorder %s171, %s172
      %p181 = scmp.eq.s32.totalorder %s25, 0
      %p182 = por %p180, %p181
      %p183 = scmp.ne.s32.totalorder %s171, %s172
      %p184 = scmp.eq.s32.totalorder %s26, 1
      %p185 = por %p183, %p184
      %p187 = scmp.ne.s32.totalorder %s172, %s186
      %p188 = scmp.eq.s32.totalorder %s26, 0
      %p189 = por %p187, %p188
      %s191 = sadd.s32 %s190, 1
      %p194 = scmp.eq.s32.totalorder %s20, 1
      %p195 = scmp.ne.s32.totalorder %s190, %s192
      %p196 = scmp.eq.s32.totalorder %s20, 0
      %p197 = por %p195, %p196
      %p198 = scmp.ne.s32.totalorder %s190, %s192
      %p199 = scmp.eq.s32.totalorder %s25, 1
      %p200 = por %p198, %p199
      %p201 = scmp.ne.s32.totalorder %s192, %s193
      %p202 = scmp.eq.s32.totalorder %s25, 0
      %p203 = por %p201, %p202
      %p204 = scmp.ne.s32.totalorder %s192, %s193
      %p205 = scmp.eq.s32.totalorder %s26, 1
      %p206 = por %p204, %p205
      %p208 = scmp.ne.s32.totalorder %s193, %s207
      %p209 = scmp.eq.s32.totalorder %s26, 0
      %p210 = por %p208, %p209
      %s212 = sadd.s32 %s211, 1
      %p215 = scmp.eq.s32.totalorder %s20, 1
      %p216 = scmp.ne.s32.totalorder %s211, %s213
      %p217 = scmp.eq.s32.totalorder %s20, 0
      %p218 = por %p216, %p217
      %p219 = scmp.ne.s32.totalorder %s211, %s213
      %p220 = scmp.eq.s32.totalorder %s25, 1
      %p221 = por %p219, %p220
      %p222 = scmp.ne.s32.totalorder %s213, %s214
      %p223 = scmp.eq.s32.totalorder %s25, 0
      %p224 = por %p222, %p223
      %p225 = scmp.ne.s32.totalorder %s213, %s214
      %p226 = scmp.eq.s32.totalorder %s26, 1
      %p227 = por %p225, %p226
      %p229 = scmp.ne.s32.totalorder %s214, %s228
      %p230 = scmp.eq.s32.totalorder %s26, 0
      %p231 = por %p229, %p230
      %s233 = sadd.s32 %s232, 1
      %p236 = scmp.eq.s32.totalorder %s20, 1
      %p237 = scmp.ne.s32.totalorder %s232, %s234
      %p238 = scmp.eq.s32.totalorder %s20, 0
      %p239 = por %p237, %p238
      %p240 = scmp.ne.s32.totalorder %s232, %s234
      %p241 = scmp.eq.s32.totalorder %s25, 1
      %p242 = por %p240, %p241
      %p243 = scmp.ne.s32.totalorder %s234, %s235
      %p244 = scmp.eq.s32.totalorder %s25, 0
      %p245 = por %p243, %p244
      %p246 = scmp.ne.s32.totalorder %s234, %s235
      %p247 = scmp.eq.s32.totalorder %s26, 1
      %p248 = por %p246, %p247
      %p250 = scmp.ne.s32.totalorder %s235, %s249
      %p251 = scmp.eq.s32.totalorder %s26, 0
      %p252 = por %p250, %p251
      %s253 = ssub.s32 %s20, %s27
      %p254 = scmp.eq.s32.totalorder %s253, 0
      %s256 = sadd.s32 %s255, 1
      %s257 = scalar_select %p254, %s255, %s256
      %p260 = pneg %p254
      %p261 = scmp.eq.s32.totalorder %s20, 1
      %p262 = por %p260, %p261
      %p263 = scmp.ne.s32.totalorder %s255, %s258
      %p264 = scmp.eq.s32.totalorder %s20, 0
      %p265 = por %p263, %p264
      %p266 = scmp.ne.s32.totalorder %s255, %s258
      %p267 = scmp.eq.s32.totalorder %s25, 1
      %p268 = por %p266, %p267
      %p269 = scmp.ne.s32.totalorder %s258, %s259
      %p270 = scmp.eq.s32.totalorder %s25, 0
      %p271 = por %p269, %p270
      %p272 = scmp.ne.s32.totalorder %s258, %s259
      %p273 = scmp.eq.s32.totalorder %s26, 1
      %p274 = por %p272, %p273
      %p276 = scmp.ne.s32.totalorder %s259, %s275
      %p277 = scmp.eq.s32.totalorder %s26, 0
      %p278 = por %p276, %p277
      %p279 = scmp.le.s32.totalorder 1, %s20
      %p280 = scmp.lt.s32.totalorder %s20, 3
      %p281 = pnand %p279, %p280
      %p282 = pneg %p281
      // Predicated region
      $region9: #{tpu_custom_call.1} parent=5 // pred_check
        _
      $region10: #{tpu_custom_call.1} parent=5 // pred_check_branch
        %284 = sbr.rel (%p281) target = $region12
      $region11: #{tpu_custom_call.1} parent=5 // pred_region
        %s285 = ssub.s32 %s20, 1
        // Predicated region
        $region13: #{tpu_custom_call.1} parent=11 // pred_check
          %p286 = pneg %p41
        $region14: #{tpu_custom_call.1} parent=11 // pred_check_branch
          %288 = sbr.rel (%p286) target = $region16
        $region15: #{tpu_custom_call.1} parent=11 // pred_region
          %290 = vsyncadd [#allocation4], 0
          %s292 = sshll.u32 %s0, 4
          %s293 = int_to_ptr.vmem [resolvable:$true] %s292
          %295 = dma.vmem_to_smem %s293, 16, [#allocation2], [#allocation4]
        $region16: #{tpu_custom_call.1} parent=11 // pred_fallthru
          _
        // Predicated region
        $region17: #{tpu_custom_call.1} parent=11 // pred_check
          %p296 = pneg %p62
        $region18: #{tpu_custom_call.1} parent=11 // pred_check_branch
          %298 = sbr.rel (%p296) target = $region20
        $region19: #{tpu_custom_call.1} parent=11 // pred_region
          _
        $region20: #{tpu_custom_call.1} parent=11 // pred_fallthru
          _
        // Predicated region
        $region21: #{tpu_custom_call.1} parent=11 // pred_check
          %p299 = pneg %p83
        $region22: #{tpu_custom_call.1} parent=11 // pred_check_branch
          %301 = sbr.rel (%p299) target = $region24
        $region23: #{tpu_custom_call.1} parent=11 // pred_region
          _
        $region24: #{tpu_custom_call.1} parent=11 // pred_fallthru
          _
        // Predicated region
        $region25: #{tpu_custom_call.1} parent=11 // pred_check
          %p302 = pneg %p182
        $region26: #{tpu_custom_call.1} parent=11 // pred_check_branch
          %304 = sbr.rel (%p302) target = $region28
        $region27: #{tpu_custom_call.1} parent=11 // pred_region
          _
        $region28: #{tpu_custom_call.1} parent=11 // pred_fallthru
          _
        // Predicated region
        $region29: #{tpu_custom_call.1} parent=11 // pred_check
          %p305 = pneg %p203
        $region30: #{tpu_custom_call.1} parent=11 // pred_check_branch
          %307 = sbr.rel (%p305) target = $region32
        $region31: #{tpu_custom_call.1} parent=11 // pred_region
          _
        $region32: #{tpu_custom_call.1} parent=11 // pred_fallthru
          _
        // Predicated region
        $region33: #{tpu_custom_call.1} parent=11 // pred_check
          %p308 = pneg %p224
        $region34: #{tpu_custom_call.1} parent=11 // pred_check_branch
          %310 = sbr.rel (%p308) target = $region36
        $region35: #{tpu_custom_call.1} parent=11 // pred_region
          _
        $region36: #{tpu_custom_call.1} parent=11 // pred_fallthru
          _
        // Predicated region
        $region37: #{tpu_custom_call.1} parent=11 // pred_check
          %p311 = pneg %p245
        $region38: #{tpu_custom_call.1} parent=11 // pred_check_branch
          %313 = sbr.rel (%p311) target = $region40
        $region39: #{tpu_custom_call.1} parent=11 // pred_region
          _
        $region40: #{tpu_custom_call.1} parent=11 // pred_fallthru
          _
      $region12: #{tpu_custom_call.1} parent=5 // pred_fallthru
        _
      %p314 = scmp.lt.s32.totalorder %s20, 2
      // Predicated region
      $region41: #{tpu_custom_call.1} parent=5 // pred_check
        %p315 = pneg %p314
      $region42: #{tpu_custom_call.1} parent=5 // pred_check_branch
        %317 = sbr.rel (%p315) target = $region44
      $region43: #{tpu_custom_call.1} parent=5 // pred_region
        // Predicated region
        $region45: #{tpu_custom_call.1} parent=43 // pred_check
          %p318 = pneg %p103
        $region46: #{tpu_custom_call.1} parent=43 // pred_check_branch
          %320 = sbr.rel (%p318) target = $region48
        $region47: #{tpu_custom_call.1} parent=43 // pred_region
          %p321 = scmp.lt.s32.totalorder %s20, 1
          %s322 = scalar_select %p321, %s20, 1
          %s323 = smul.addr %s322, 2
          %s324 = smul.addr %s323, 8
          %s325 = scalar_lea.vmem %s3, %s324
        $region48: #{tpu_custom_call.1} parent=43 // pred_fallthru
          _
        // Predicated region
        $region49: #{tpu_custom_call.1} parent=43 // pred_check
          %p326 = pneg %p129
        $region50: #{tpu_custom_call.1} parent=43 // pred_check_branch
          %328 = sbr.rel (%p326) target = $region52
        $region51: #{tpu_custom_call.1} parent=43 // pred_region
          %p329 = scmp.lt.s32.totalorder %s20, 1
          %s330 = scalar_select %p329, %s20, 1
          %s331 = smul.addr %s330, 8
          %s332 = scalar_lea.vmem %s4, %s331
        $region52: #{tpu_custom_call.1} parent=43 // pred_fallthru
          _
        // Predicated region
        $region53: #{tpu_custom_call.1} parent=43 // pred_check
          %p333 = pneg %p155
        $region54: #{tpu_custom_call.1} parent=43 // pred_check_branch
          %335 = sbr.rel (%p333) target = $region56
        $region55: #{tpu_custom_call.1} parent=43 // pred_region
          %p336 = scmp.lt.s32.totalorder %s20, 1
          %s337 = scalar_select %p336, %s20, 1
          %s338 = smul.addr %s337, 24
          %s339 = smul.addr %s338, 8
          %s340 = scalar_lea.vmem %s5, %s339
        $region56: #{tpu_custom_call.1} parent=43 // pred_fallthru
          _
      $region44: #{tpu_custom_call.1} parent=5 // pred_fallthru
        _
      %p341 = scmp.le.s32.totalorder 1, %s20
      %p342 = scmp.lt.s32.totalorder %s20, 3
      %p343 = pnand %p341, %p342
      %p344 = pneg %p343
      // Predicated region
      $region57: #{tpu_custom_call.1} parent=5 // pred_check
        _
      $region58: #{tpu_custom_call.1} parent=5 // pred_check_branch
        %346 = sbr.rel (%p343) target = $region60
      $region59: #{tpu_custom_call.1} parent=5 // pred_region
        %s347 = ssub.s32 %s20, 1
        // Predicated region
        $region61: #{tpu_custom_call.1} parent=59 // pred_check
          %p348 = pneg %p41
        $region62: #{tpu_custom_call.1} parent=59 // pred_check_branch
          %350 = sbr.rel (%p348) target = $region64
        $region63: #{tpu_custom_call.1} parent=59 // pred_region
          %352 = dma.done [#allocation4], 16
        $region64: #{tpu_custom_call.1} parent=59 // pred_fallthru
          _
        %353 = sfence
        %p354 = pneg %p41
        %p355 = pneg %p38
        %p356 = pneg %p62
        %p357 = pneg %p59
        %p358 = pneg %p83
        %p359 = pneg %p80
        %p360 = scmp.lt.s32.totalorder %s25, 1
        %s361 = scalar_select %p360, %s25, 1
        %s362 = smul.addr %s361, 2
        %s363 = smul.addr %s362, 8
        %s364 = scalar_lea.vmem %s3, %s363
        %p365 = pneg %p109
        %p366 = pneg %p106
        %p367 = scmp.lt.s32.totalorder %s25, 1
        %s368 = scalar_select %p367, %s25, 1
        %s369 = smul.addr %s368, 8
        %s370 = scalar_lea.vmem %s4, %s369
        %p371 = pneg %p135
        %p372 = pneg %p132
        %p373 = scmp.lt.s32.totalorder %s25, 1
        %s374 = scalar_select %p373, %s25, 1
        %s375 = smul.addr %s374, 24
        %s376 = smul.addr %s375, 8
        %s377 = scalar_lea.vmem %s5, %s376
        %p378 = pneg %p161
        %p379 = pneg %p158
        %p380 = pneg %p182
        %p381 = pneg %p179
        %p382 = pneg %p203
        %p383 = pneg %p200
        %p384 = pneg %p224
        %p385 = pneg %p221
        %p386 = pneg %p245
        %p387 = pneg %p242
        %p388 = pneg %p271
        %p389 = pneg %p268
        %s390 = sand.u32 %s258, 1
        %s391 = scalar_lea.sflag [#allocation3], %s390
        %s392 = sand.u32 %s258, 1
        %s393 = smul.addr %s392, 32
        %s394 = scalar_lea.vmem [#allocation5], %s393
        %p395 = scmp.lt.s32.totalorder %s25, 1
        %s396 = scalar_select %p395, %s25, 1
        %s397 = smul.addr %s396, 2
        %s398 = smul.addr %s397, 8
        %s399 = scalar_lea.vmem %s3, %s398
        %p400 = scmp.lt.s32.totalorder %s25, 1
        %s401 = scalar_select %p400, %s25, 1
        %s402 = smul.addr %s401, 8
        %s403 = scalar_lea.vmem %s4, %s402
        %p404 = scmp.lt.s32.totalorder %s25, 1
        %s405 = scalar_select %p404, %s25, 1
        %s406 = smul.addr %s405, 24
        %s407 = smul.addr %s406, 8
        %s408 = scalar_lea.vmem %s5, %s407
        %s409 = sld [smem:[#allocation2]]
        %s410 = sld [smem:[#allocation2 + $0x1]]
        %s411 = sld [smem:[#allocation2 + $0x2]]
        %s412 = sld [smem:[#allocation2 + $0x3]]
        %s413 = sld [smem:[#allocation2 + $0x4]]
        %s414 = sld [smem:[#allocation2 + $0x5]]
        %s415 = sld [smem:[#allocation2 + $0x6]]
        %v416 = vld [vmem:[%s399] sm:$0xff]
        %v417 = vld [vmem:[%s399 + $0x8] sm:$0xff]
        %v418 = vld [vmem:[%s403] sm:$0xff]
        %v419 = vld [vmem:[%s408] sm:$0xff]
        %v420 = vld [vmem:[%s408 + $0x8] sm:$0xff]
        %v421 = vld [vmem:[%s408 + $0x10] sm:$0xff]
        %v422 = vld [vmem:[%s408 + $0x18] sm:$0xff]
        %v423 = vld [vmem:[%s408 + $0x20] sm:$0xff]
        %v424 = vld [vmem:[%s408 + $0x28] sm:$0xff]
        %v425 = vld [vmem:[%s408 + $0x30] sm:$0xff]
        %v426 = vld [vmem:[%s408 + $0x38] sm:$0xff]
        %v427 = vld [vmem:[%s408 + $0x40] sm:$0xff]
        %v428 = vld [vmem:[%s408 + $0x48] sm:$0xff]
        %v429 = vld [vmem:[%s408 + $0x50] sm:$0xff]
        %v430 = vld [vmem:[%s408 + $0x58] sm:$0xff]
        %v431 = vld [vmem:[%s408 + $0x60] sm:$0xff]
        %v432 = vld [vmem:[%s408 + $0x68] sm:$0xff]
        %v433 = vld [vmem:[%s408 + $0x70] sm:$0xff]
        %v434 = vld [vmem:[%s408 + $0x78] sm:$0xff]
        %v435 = vld [vmem:[%s408 + $0x80] sm:$0xff]
        %v436 = vld [vmem:[%s408 + $0x88] sm:$0xff]
        %v437 = vld [vmem:[%s408 + $0x90] sm:$0xff]
        %v438 = vld [vmem:[%s408 + $0x98] sm:$0xff]
        %v439 = vld [vmem:[%s408 + $0xa0] sm:$0xff]
        %v440 = vld [vmem:[%s408 + $0xa8] sm:$0xff]
        %v441 = vld [vmem:[%s408 + $0xb0] sm:$0xff]
        %v442 = vld [vmem:[%s408 + $0xb8] sm:$0xff]
        %v443 = vld [vmem:[%s1] sm:$0x1]
        %v444 = vstv %s409
        %vm445 = vcmask 64512
        %v447 = vsel %vm445, %v443, 0
        %449 = vmatpush.msra.mxu0 0.0
        %450 = vmatpush.msra.mxu0 0.0
        %451 = vmatpush.msra.mxu0 0.0
        %452 = vmatpush.msra.mxu0 0.0
        %453 = vmatpush.msra.mxu0 0.0
        %454 = vmatpush.msra.mxu0 0.0
        %455 = vmatpush.msra.mxu0 0.0
        %456 = vmatpush.msra.mxu0 0.0
        %457 = vmatpush.msra.mxu0 0.0
        %458 = vmatpush.msra.mxu0 0.0
        %459 = vmatpush.msra.mxu0 0.0
        %460 = vmatpush.msra.mxu0 0.0
        %461 = vmatpush.msra.mxu0 0.0
        %462 = vmatpush.msra.mxu0 0.0
        %463 = vmatpush.msra.mxu0 0.0
        %464 = vmatpush.msra.mxu0 %v416
        %465 = vmatmul.f32.gmra.mxu0 %v447
        %v466 = vpop.f32.mrf.mxu0
        %v467 = vadd.f32 %v444, %v466
        %468 = vdwg.mxu0
        %469 = vmatpush.msra.mxu0 0.0
        %470 = vmatpush.msra.mxu0 0.0
        %471 = vmatpush.msra.mxu0 0.0
        %472 = vmatpush.msra.mxu0 0.0
        %473 = vmatpush.msra.mxu0 0.0
        %474 = vmatpush.msra.mxu0 0.0
        %475 = vmatpush.msra.mxu0 0.0
        %476 = vmatpush.msra.mxu0 0.0
        %477 = vmatpush.msra.mxu0 0.0
        %478 = vmatpush.msra.mxu0 0.0
        %479 = vmatpush.msra.mxu0 0.0
        %480 = vmatpush.msra.mxu0 0.0
        %481 = vmatpush.msra.mxu0 0.0
        %482 = vmatpush.msra.mxu0 0.0
        %483 = vmatpush.msra.mxu0 0.0
        %484 = vmatpush.msra.mxu0 %v417
        %485 = vmatmul.f32.gmra.mxu0 %v447
        %v486 = vpop.f32.mrf.mxu0
        %v487 = vadd.f32 %v444, %v486
        %488 = vdwg.mxu0
        %v489 = vstv %s411
        %v490 = vmul.f32 %v467, %v489
        %v491 = vmul.f32 %v487, %v489
        %v492 = vstv %s412
        %v493 = vadd.f32 %v490, %v492
        %v494 = vadd.f32 %v491, %v492
        %v495 = vmul.f32 %v493, 1.442695
        %v496 = vpow.pop %v495
        %v497 = vmul.f32 %v494, 1.442695
        %v498 = vpow.pop %v497
        %v499 = vmul.f32 %v493, %v496
        %v500 = vmul.f32 %v494, %v498
        %v501 = vld [vmem:[%s6] sm:$0xff]
        %v502 = vld [vmem:[%s6 + $0x8] sm:$0xff]
        %v503 = vld [vmem:[%s6 + $0x10] sm:$0xff]
        %v504 = vld [vmem:[%s6 + $0x18] sm:$0xff]
        %v505 = vld [vmem:[%s6 + $0x20] sm:$0xff]
        %v506 = vld [vmem:[%s6 + $0x28] sm:$0xff]
        %v507 = vld [vmem:[%s6 + $0x30] sm:$0xff]
        %v508 = vld [vmem:[%s6 + $0x38] sm:$0xff]
        %v509 = vld [vmem:[%s6 + $0x40] sm:$0xff]
        %v510 = vld [vmem:[%s6 + $0x48] sm:$0xff]
        %v511 = vld [vmem:[%s6 + $0x50] sm:$0xff]
        %v512 = vld [vmem:[%s6 + $0x58] sm:$0xff]
        %v513 = vld [vmem:[%s6 + $0x60] sm:$0xff]
        %v514 = vld [vmem:[%s6 + $0x68] sm:$0xff]
        %v515 = vld [vmem:[%s6 + $0x70] sm:$0xff]
        %v516 = vld [vmem:[%s6 + $0x78] sm:$0xff]
        %v517 = vld [vmem:[%s6 + $0x80] sm:$0xff]
        %v518 = vld [vmem:[%s6 + $0x88] sm:$0xff]
        %v519 = vld [vmem:[%s6 + $0x90] sm:$0xff]
        %v520 = vld [vmem:[%s6 + $0x98] sm:$0xff]
        %v521 = vld [vmem:[%s6 + $0xa0] sm:$0xff]
        %v522 = vld [vmem:[%s6 + $0xa8] sm:$0xff]
        %v523 = vld [vmem:[%s6 + $0xb0] sm:$0xff]
        %v524 = vld [vmem:[%s6 + $0xb8] sm:$0xff]
        %v525 = vld [vmem:[%s6 + $0xc0] sm:$0xff]
        %v526 = vld [vmem:[%s6 + $0xc8] sm:$0xff]
        %v527 = vld [vmem:[%s6 + $0xd0] sm:$0xff]
        %v528 = vld [vmem:[%s6 + $0xd8] sm:$0xff]
        %v529 = vld [vmem:[%s6 + $0xe0] sm:$0xff]
        %v530 = vld [vmem:[%s6 + $0xe8] sm:$0xff]
        %v531 = vld [vmem:[%s6 + $0xf0] sm:$0xff]
        %v532 = vld [vmem:[%s6 + $0xf8] sm:$0xff]
        %533 = vmatpush.msra.mxu0 %v516
        %534 = vmatpush.msra.mxu0 %v515
        %535 = vmatpush.msra.mxu0 %v514
        %536 = vmatpush.msra.mxu0 %v513
        %537 = vmatpush.msra.mxu0 %v512
        %538 = vmatpush.msra.mxu0 %v511
        %539 = vmatpush.msra.mxu0 %v510
        %540 = vmatpush.msra.mxu0 %v509
        %541 = vmatpush.msra.mxu0 %v508
        %542 = vmatpush.msra.mxu0 %v507
        %543 = vmatpush.msra.mxu0 %v506
        %544 = vmatpush.msra.mxu0 %v505
        %545 = vmatpush.msra.mxu0 %v504
        %546 = vmatpush.msra.mxu0 %v503
        %547 = vmatpush.msra.mxu0 %v502
        %548 = vmatpush.msra.mxu0 %v501
        %549 = vmatmul.f32.gmra.mxu0 %v499
        %v550 = vpop.f32.mrf.mxu0
        %v551 = vadd.f32 0.0, %v550
        %552 = vdwg.mxu0
        %553 = vmatpush.msra.mxu0 %v532
        %554 = vmatpush.msra.mxu0 %v531
        %555 = vmatpush.msra.mxu0 %v530
        %556 = vmatpush.msra.mxu0 %v529
        %557 = vmatpush.msra.mxu0 %v528
        %558 = vmatpush.msra.mxu0 %v527
        %559 = vmatpush.msra.mxu0 %v526
        %560 = vmatpush.msra.mxu0 %v525
        %561 = vmatpush.msra.mxu0 %v524
        %562 = vmatpush.msra.mxu0 %v523
        %563 = vmatpush.msra.mxu0 %v522
        %564 = vmatpush.msra.mxu0 %v521
        %565 = vmatpush.msra.mxu0 %v520
        %566 = vmatpush.msra.mxu0 %v519
        %567 = vmatpush.msra.mxu0 %v518
        %568 = vmatpush.msra.mxu0 %v517
        %569 = vmatmul.f32.gmra.mxu0 %v500
        %v570 = vpop.f32.mrf.mxu0
        %v571 = vadd.f32 %v551, %v570
        %572 = vdwg.mxu0
        %573 = vmatpush.msra.mxu0 %v516
        %574 = vmatpush.msra.mxu0 %v515
        %575 = vmatpush.msra.mxu0 %v514
        %576 = vmatpush.msra.mxu0 %v513
        %577 = vmatpush.msra.mxu0 %v512
        %578 = vmatpush.msra.mxu0 %v511
        %579 = vmatpush.msra.mxu0 %v510
        %580 = vmatpush.msra.mxu0 %v509
        %581 = vmatpush.msra.mxu0 %v508
        %582 = vmatpush.msra.mxu0 %v507
        %583 = vmatpush.msra.mxu0 %v506
        %584 = vmatpush.msra.mxu0 %v505
        %585 = vmatpush.msra.mxu0 %v504
        %586 = vmatpush.msra.mxu0 %v503
        %587 = vmatpush.msra.mxu0 %v502
        %588 = vmatpush.msra.mxu0 %v501
        %589 = vmatmul.f32.gmra.mxu0 %v496
        %v590 = vpop.f32.mrf.mxu0
        %v591 = vadd.f32 1e-08, %v590
        %592 = vdwg.mxu0
        %593 = vmatpush.msra.mxu0 %v532
        %594 = vmatpush.msra.mxu0 %v531
        %595 = vmatpush.msra.mxu0 %v530
        %596 = vmatpush.msra.mxu0 %v529
        %597 = vmatpush.msra.mxu0 %v528
        %598 = vmatpush.msra.mxu0 %v527
        %599 = vmatpush.msra.mxu0 %v526
        %600 = vmatpush.msra.mxu0 %v525
        %601 = vmatpush.msra.mxu0 %v524
        %602 = vmatpush.msra.mxu0 %v523
        %603 = vmatpush.msra.mxu0 %v522
        %604 = vmatpush.msra.mxu0 %v521
        %605 = vmatpush.msra.mxu0 %v520
        %606 = vmatpush.msra.mxu0 %v519
        %607 = vmatpush.msra.mxu0 %v518
        %608 = vmatpush.msra.mxu0 %v517
        %609 = vmatmul.f32.gmra.mxu0 %v498
        %v610 = vpop.f32.mrf.mxu0
        %v611 = vadd.f32 %v591, %v610
        %612 = vdwg.mxu0
        %v613 = vrcp.pop %v611
        %v614 = vmul.f32 %v611, %v613
        %v615 = vsub.f32 1.0, %v614
        %v616 = vmul.f32 %v613, %v615
        %v617 = vadd.f32 %v613, %v616
        %vm618 = vweird.f32 %v611
        %vm619 = vweird.f32 %v613
        %vm620 = vmor %vm618, %vm619
        %v621 = vsel %vm620, %v613, %v617
        %v622 = vand.u32 2147483647, %v611
        %vm623 = vcmp.eq.f32.partialorder %v622, 8.507059e+37
        %v624 = vand.u32 %v611, 2147483648
        %v625 = vor.u32 1.1754944e-38, %v624
        %v626 = vsel %vm623, %v625, %v621
        %v627 = vmul.f32 %v571, %v626
        %v628 = vld [vmem:[%s2] sm:$0x1]
        %v629 = vstv %s410
        %v631 = vsel %vm445, %v628, 0
        %633 = vmatpush.msra.mxu0 0.0
        %634 = vmatpush.msra.mxu0 0.0
        %635 = vmatpush.msra.mxu0 0.0
        %636 = vmatpush.msra.mxu0 0.0
        %637 = vmatpush.msra.mxu0 0.0
        %638 = vmatpush.msra.mxu0 0.0
        %639 = vmatpush.msra.mxu0 0.0
        %640 = vmatpush.msra.mxu0 0.0
        %641 = vmatpush.msra.mxu0 0.0
        %642 = vmatpush.msra.mxu0 0.0
        %643 = vmatpush.msra.mxu0 0.0
        %644 = vmatpush.msra.mxu0 0.0
        %645 = vmatpush.msra.mxu0 0.0
        %646 = vmatpush.msra.mxu0 0.0
        %647 = vmatpush.msra.mxu0 0.0
        %648 = vmatpush.msra.mxu0 %v418
        %649 = vmatmul.f32.gmra.mxu0 %v631
        %v650 = vpop.f32.mrf.mxu0
        %v651 = vadd.f32 %v629, %v650
        %652 = vdwg.mxu0
        %v653 = vstv %s413
        %v654 = vmul.f32 %v653, %v627
        %v655 = vstv %s414
        %v656 = vmul.f32 %v655, %v651
        %v657 = vadd.f32 %v654, %v656
        %v658 = vstv %s415
        %v659 = vadd.f32 %v657, %v658
        %v660 = vmax.f32 %v659, 0.0
        %v661 = vadd.f32 %v660, 1.0
        %v662 = vld [vmem:[%s7] sm:$0xff]
        %v663 = vld [vmem:[%s7 + $0x8] sm:$0xff]
        %v664 = vperm.slane %v661, 0
        %v665 = vmul.f32 %v662, %v664
        %v666 = vmul.f32 %v663, %v664
        %vm667 = vcmask 523264
        %v669 = vsel %vm667, %v665, 0
        %v672 = vsel %vm667, %v666, 0
        %674 = vmatpush.msra.mxu0 0.0
        %675 = vmatpush.msra.mxu0 0.0
        %676 = vmatpush.msra.mxu0 0.0
        %677 = vmatpush.msra.mxu0 0.0
        %678 = vmatpush.msra.mxu0 0.0
        %679 = vmatpush.msra.mxu0 0.0
        %680 = vmatpush.msra.mxu0 0.0
        %681 = vmatpush.msra.mxu0 0.0
        %682 = vmatpush.msra.mxu0 %v440
        %683 = vmatpush.msra.mxu0 %v437
        %684 = vmatpush.msra.mxu0 %v434
        %685 = vmatpush.msra.mxu0 %v431
        %686 = vmatpush.msra.mxu0 %v428
        %687 = vmatpush.msra.mxu0 %v425
        %688 = vmatpush.msra.mxu0 %v422
        %689 = vmatpush.msra.mxu0 %v419
        %690 = vmatmul.f32.gmra.mxu0 %v669
        %v691 = vpop.f32.mrf.mxu0
        %v692 = vadd.f32 0.0, %v691
        %693 = vmatmul.f32.gmra.mxu0 %v672
        %v694 = vpop.f32.mrf.mxu0
        %v695 = vadd.f32 0.0, %v694
        %696 = vdwg.mxu0
        %697 = vmatpush.msra.mxu0 0.0
        %698 = vmatpush.msra.mxu0 0.0
        %699 = vmatpush.msra.mxu0 0.0
        %700 = vmatpush.msra.mxu0 0.0
        %701 = vmatpush.msra.mxu0 0.0
        %702 = vmatpush.msra.mxu0 0.0
        %703 = vmatpush.msra.mxu0 0.0
        %704 = vmatpush.msra.mxu0 0.0
        %705 = vmatpush.msra.mxu0 %v441
        %706 = vmatpush.msra.mxu0 %v438
        %707 = vmatpush.msra.mxu0 %v435
        %708 = vmatpush.msra.mxu0 %v432
        %709 = vmatpush.msra.mxu0 %v429
        %710 = vmatpush.msra.mxu0 %v426
        %711 = vmatpush.msra.mxu0 %v423
        %712 = vmatpush.msra.mxu0 %v420
        %713 = vmatmul.f32.gmra.mxu0 %v669
        %v714 = vpop.f32.mrf.mxu0
        %v715 = vadd.f32 0.0, %v714
        %716 = vmatmul.f32.gmra.mxu0 %v672
        %v717 = vpop.f32.mrf.mxu0
        %v718 = vadd.f32 0.0, %v717
        %719 = vdwg.mxu0
        %720 = vmatpush.msra.mxu0 0.0
        %721 = vmatpush.msra.mxu0 0.0
        %722 = vmatpush.msra.mxu0 0.0
        %723 = vmatpush.msra.mxu0 0.0
        %724 = vmatpush.msra.mxu0 0.0
        %725 = vmatpush.msra.mxu0 0.0
        %726 = vmatpush.msra.mxu0 0.0
        %727 = vmatpush.msra.mxu0 0.0
        %728 = vmatpush.msra.mxu0 %v442
        %729 = vmatpush.msra.mxu0 %v439
        %730 = vmatpush.msra.mxu0 %v436
        %731 = vmatpush.msra.mxu0 %v433
        %732 = vmatpush.msra.mxu0 %v430
        %733 = vmatpush.msra.mxu0 %v427
        %734 = vmatpush.msra.mxu0 %v424
        %735 = vmatpush.msra.mxu0 %v421
        %736 = vmatmul.f32.gmra.mxu0 %v669
        %v737 = vpop.f32.mrf.mxu0
        %v738 = vadd.f32 0.0, %v737
        %739 = vmatmul.f32.gmra.mxu0 %v672
        %v740 = vpop.f32.mrf.mxu0
        %v741 = vadd.f32 0.0, %v740
        %742 = vdwg.mxu0
        %v743 = vpack.c.bf16 %v695, %v692
        %v744 = vpack.c.bf16 %v718, %v715
        %v745 = vpack.c.bf16 %v741, %v738
        %v746 = vld [vmem:[%s8] sm:$0xff]
        %v747 = vld [vmem:[%s8 + $0x8] sm:$0xff]
        %v748 = vld [vmem:[%s8 + $0x10] sm:$0xff]
        %v749 = vld [vmem:[%s8 + $0x18] sm:$0xff]
        %v750 = vld [vmem:[%s8 + $0x20] sm:$0xff]
        %v751 = vld [vmem:[%s8 + $0x28] sm:$0xff]
        %v752 = vld [vmem:[%s8 + $0x30] sm:$0xff]
        %v753 = vld [vmem:[%s8 + $0x38] sm:$0xff]
        %v754 = vld [vmem:[%s8 + $0x40] sm:$0xff]
        %v755 = vld [vmem:[%s8 + $0x48] sm:$0xff]
        %v756 = vld [vmem:[%s8 + $0x50] sm:$0xff]
        %v757 = vld [vmem:[%s8 + $0x58] sm:$0xff]
        %v758 = vld [vmem:[%s8 + $0x60] sm:$0xff]
        %v759 = vld [vmem:[%s8 + $0x68] sm:$0xff]
        %v760 = vld [vmem:[%s8 + $0x70] sm:$0xff]
        %v761 = vld [vmem:[%s8 + $0x78] sm:$0xff]
        %v762 = vld [vmem:[%s8 + $0x80] sm:$0xff]
        %v763 = vld [vmem:[%s8 + $0x88] sm:$0xff]
        %v764 = vld [vmem:[%s8 + $0x90] sm:$0xff]
        %v765 = vld [vmem:[%s8 + $0x98] sm:$0xff]
        %v766 = vld [vmem:[%s8 + $0xa0] sm:$0xff]
        %v767 = vld [vmem:[%s8 + $0xa8] sm:$0xff]
        %v768 = vld [vmem:[%s8 + $0xb0] sm:$0xff]
        %v769 = vld [vmem:[%s8 + $0xb8] sm:$0xff]
        %v770 = vld [vmem:[%s8 + $0xc0] sm:$0xff]
        %v771 = vld [vmem:[%s8 + $0xc8] sm:$0xff]
        %v772 = vld [vmem:[%s8 + $0xd0] sm:$0xff]
        %v773 = vld [vmem:[%s8 + $0xd8] sm:$0xff]
        %v774 = vld [vmem:[%s8 + $0xe0] sm:$0xff]
        %v775 = vld [vmem:[%s8 + $0xe8] sm:$0xff]
        %v776 = vld [vmem:[%s8 + $0xf0] sm:$0xff]
        %v777 = vld [vmem:[%s8 + $0xf8] sm:$0xff]
        %v778 = vld [vmem:[%s8 + $0x100] sm:$0xff]
        %v779 = vld [vmem:[%s8 + $0x108] sm:$0xff]
        %v780 = vld [vmem:[%s8 + $0x110] sm:$0xff]
        %v781 = vld [vmem:[%s8 + $0x118] sm:$0xff]
        %v782 = vld [vmem:[%s8 + $0x120] sm:$0xff]
        %v783 = vld [vmem:[%s8 + $0x128] sm:$0xff]
        %v784 = vld [vmem:[%s8 + $0x130] sm:$0xff]
        %v785 = vld [vmem:[%s8 + $0x138] sm:$0xff]
        %v786 = vld [vmem:[%s8 + $0x140] sm:$0xff]
        %v787 = vld [vmem:[%s8 + $0x148] sm:$0xff]
        %v788 = vld [vmem:[%s8 + $0x150] sm:$0xff]
        %v789 = vld [vmem:[%s8 + $0x158] sm:$0xff]
        %v790 = vld [vmem:[%s8 + $0x160] sm:$0xff]
        %v791 = vld [vmem:[%s8 + $0x168] sm:$0xff]
        %v792 = vld [vmem:[%s8 + $0x170] sm:$0xff]
        %v793 = vld [vmem:[%s8 + $0x178] sm:$0xff]
        %s794 = scalar_lea.vmem %s7, 16
        %v795 = vld [vmem:[%s794] sm:$0xff]
        %v796 = vld [vmem:[%s794 + $0x8] sm:$0xff]
        %v797 = vmul.f32 %v795, %v664
        %v798 = vmul.f32 %v796, %v664
        %v800 = vsel %vm667, %v797, 0
        %v803 = vsel %vm667, %v798, 0
        %805 = vmatpush.msra.mxu0 0.0
        %806 = vmatpush.msra.mxu0 0.0
        %807 = vmatpush.msra.mxu0 0.0
        %808 = vmatpush.msra.mxu0 0.0
        %809 = vmatpush.msra.mxu0 0.0
        %810 = vmatpush.msra.mxu0 0.0
        %811 = vmatpush.msra.mxu0 0.0
        %812 = vmatpush.msra.mxu0 0.0
        %813 = vmatpush.msra.mxu0 %v440
        %814 = vmatpush.msra.mxu0 %v437
        %815 = vmatpush.msra.mxu0 %v434
        %816 = vmatpush.msra.mxu0 %v431
        %817 = vmatpush.msra.mxu0 %v428
        %818 = vmatpush.msra.mxu0 %v425
        %819 = vmatpush.msra.mxu0 %v422
        %820 = vmatpush.msra.mxu0 %v419
        %821 = vmatmul.f32.gmra.mxu0 %v800
        %v822 = vpop.f32.mrf.mxu0
        %v823 = vadd.f32 0.0, %v822
        %824 = vmatmul.f32.gmra.mxu0 %v803
        %v825 = vpop.f32.mrf.mxu0
        %v826 = vadd.f32 0.0, %v825
        %827 = vdwg.mxu0
        %828 = vmatpush.msra.mxu0 0.0
        %829 = vmatpush.msra.mxu0 0.0
        %830 = vmatpush.msra.mxu0 0.0
        %831 = vmatpush.msra.mxu0 0.0
        %832 = vmatpush.msra.mxu0 0.0
        %833 = vmatpush.msra.mxu0 0.0
        %834 = vmatpush.msra.mxu0 0.0
        %835 = vmatpush.msra.mxu0 0.0
        %836 = vmatpush.msra.mxu0 %v441
        %837 = vmatpush.msra.mxu0 %v438
        %838 = vmatpush.msra.mxu0 %v435
        %839 = vmatpush.msra.mxu0 %v432
        %840 = vmatpush.msra.mxu0 %v429
        %841 = vmatpush.msra.mxu0 %v426
        %842 = vmatpush.msra.mxu0 %v423
        %843 = vmatpush.msra.mxu0 %v420
        %844 = vmatmul.f32.gmra.mxu0 %v800
        %v845 = vpop.f32.mrf.mxu0
        %v846 = vadd.f32 0.0, %v845
        %847 = vmatmul.f32.gmra.mxu0 %v803
        %v848 = vpop.f32.mrf.mxu0
        %v849 = vadd.f32 0.0, %v848
        %850 = vdwg.mxu0
        %851 = vmatpush.msra.mxu0 0.0
        %852 = vmatpush.msra.mxu0 0.0
        %853 = vmatpush.msra.mxu0 0.0
        %854 = vmatpush.msra.mxu0 0.0
        %855 = vmatpush.msra.mxu0 0.0
        %856 = vmatpush.msra.mxu0 0.0
        %857 = vmatpush.msra.mxu0 0.0
        %858 = vmatpush.msra.mxu0 0.0
        %859 = vmatpush.msra.mxu0 %v442
        %860 = vmatpush.msra.mxu0 %v439
        %861 = vmatpush.msra.mxu0 %v436
        %862 = vmatpush.msra.mxu0 %v433
        %863 = vmatpush.msra.mxu0 %v430
        %864 = vmatpush.msra.mxu0 %v427
        %865 = vmatpush.msra.mxu0 %v424
        %866 = vmatpush.msra.mxu0 %v421
        %867 = vmatmul.f32.gmra.mxu0 %v800
        %v868 = vpop.f32.mrf.mxu0
        %v869 = vadd.f32 0.0, %v868
        %870 = vmatmul.f32.gmra.mxu0 %v803
        %v871 = vpop.f32.mrf.mxu0
        %v872 = vadd.f32 0.0, %v871
        %873 = vdwg.mxu0
        %v874 = vpack.c.bf16 %v826, %v823
        %v875 = vpack.c.bf16 %v849, %v846
        %v876 = vpack.c.bf16 %v872, %v869
        %s877 = scalar_lea.vmem %s8, 384
        %v878 = vld [vmem:[%s877] sm:$0xff]
        %v879 = vld [vmem:[%s877 + $0x8] sm:$0xff]
        %v880 = vld [vmem:[%s877 + $0x10] sm:$0xff]
        %v881 = vld [vmem:[%s877 + $0x18] sm:$0xff]
        %v882 = vld [vmem:[%s877 + $0x20] sm:$0xff]
        %v883 = vld [vmem:[%s877 + $0x28] sm:$0xff]
        %v884 = vld [vmem:[%s877 + $0x30] sm:$0xff]
        %v885 = vld [vmem:[%s877 + $0x38] sm:$0xff]
        %v886 = vld [vmem:[%s877 + $0x40] sm:$0xff]
        %v887 = vld [vmem:[%s877 + $0x48] sm:$0xff]
        %v888 = vld [vmem:[%s877 + $0x50] sm:$0xff]
        %v889 = vld [vmem:[%s877 + $0x58] sm:$0xff]
        %v890 = vld [vmem:[%s877 + $0x60] sm:$0xff]
        %v891 = vld [vmem:[%s877 + $0x68] sm:$0xff]
        %v892 = vld [vmem:[%s877 + $0x70] sm:$0xff]
        %v893 = vld [vmem:[%s877 + $0x78] sm:$0xff]
        %v894 = vld [vmem:[%s877 + $0x80] sm:$0xff]
        %v895 = vld [vmem:[%s877 + $0x88] sm:$0xff]
        %v896 = vld [vmem:[%s877 + $0x90] sm:$0xff]
        %v897 = vld [vmem:[%s877 + $0x98] sm:$0xff]
        %v898 = vld [vmem:[%s877 + $0xa0] sm:$0xff]
        %v899 = vld [vmem:[%s877 + $0xa8] sm:$0xff]
        %v900 = vld [vmem:[%s877 + $0xb0] sm:$0xff]
        %v901 = vld [vmem:[%s877 + $0xb8] sm:$0xff]
        %v902 = vld [vmem:[%s877 + $0xc0] sm:$0xff]
        %v903 = vld [vmem:[%s877 + $0xc8] sm:$0xff]
        %v904 = vld [vmem:[%s877 + $0xd0] sm:$0xff]
        %v905 = vld [vmem:[%s877 + $0xd8] sm:$0xff]
        %v906 = vld [vmem:[%s877 + $0xe0] sm:$0xff]
        %v907 = vld [vmem:[%s877 + $0xe8] sm:$0xff]
        %v908 = vld [vmem:[%s877 + $0xf0] sm:$0xff]
        %v909 = vld [vmem:[%s877 + $0xf8] sm:$0xff]
        %v910 = vld [vmem:[%s877 + $0x100] sm:$0xff]
        %v911 = vld [vmem:[%s877 + $0x108] sm:$0xff]
        %v912 = vld [vmem:[%s877 + $0x110] sm:$0xff]
        %v913 = vld [vmem:[%s877 + $0x118] sm:$0xff]
        %v914 = vld [vmem:[%s877 + $0x120] sm:$0xff]
        %v915 = vld [vmem:[%s877 + $0x128] sm:$0xff]
        %v916 = vld [vmem:[%s877 + $0x130] sm:$0xff]
        %v917 = vld [vmem:[%s877 + $0x138] sm:$0xff]
        %v918 = vld [vmem:[%s877 + $0x140] sm:$0xff]
        %v919 = vld [vmem:[%s877 + $0x148] sm:$0xff]
        %v920 = vld [vmem:[%s877 + $0x150] sm:$0xff]
        %v921 = vld [vmem:[%s877 + $0x158] sm:$0xff]
        %v922 = vld [vmem:[%s877 + $0x160] sm:$0xff]
        %v923 = vld [vmem:[%s877 + $0x168] sm:$0xff]
        %v924 = vld [vmem:[%s877 + $0x170] sm:$0xff]
        %v925 = vld [vmem:[%s877 + $0x178] sm:$0xff]
        %v974 = vunpack.c.l.b16 %v878
        %v975 = vunpack.c.h.b16 %v878
        %v976 = vunpack.c.l.b16 %v879
        %v977 = vunpack.c.h.b16 %v879
        %v978 = vunpack.c.l.b16 %v880
        %v979 = vunpack.c.h.b16 %v880
        %v980 = vunpack.c.l.b16 %v881
        %v981 = vunpack.c.h.b16 %v881
        %v982 = vunpack.c.l.b16 %v882
        %v983 = vunpack.c.h.b16 %v882
        %v984 = vunpack.c.l.b16 %v883
        %v985 = vunpack.c.h.b16 %v883
        %v986 = vunpack.c.l.b16 %v884
        %v987 = vunpack.c.h.b16 %v884
        %v988 = vunpack.c.l.b16 %v885
        %v989 = vunpack.c.h.b16 %v885
        %v990 = vunpack.c.l.b16 %v886
        %v991 = vunpack.c.h.b16 %v886
        %v992 = vunpack.c.l.b16 %v887
        %v993 = vunpack.c.h.b16 %v887
        %v994 = vunpack.c.l.b16 %v888
        %v995 = vunpack.c.h.b16 %v888
        %v996 = vunpack.c.l.b16 %v889
        %v997 = vunpack.c.h.b16 %v889
        %v998 = vunpack.c.l.b16 %v890
        %v999 = vunpack.c.h.b16 %v890
        %v1000 = vunpack.c.l.b16 %v891
        %v1001 = vunpack.c.h.b16 %v891
        %v1002 = vunpack.c.l.b16 %v892
        %v1003 = vunpack.c.h.b16 %v892
        %v1004 = vunpack.c.l.b16 %v893
        %v1005 = vunpack.c.h.b16 %v893
        %v1006 = vunpack.c.l.b16 %v894
        %v1007 = vunpack.c.h.b16 %v894
        %v1008 = vunpack.c.l.b16 %v895
        %v1009 = vunpack.c.h.b16 %v895
        %v1010 = vunpack.c.l.b16 %v896
        %v1011 = vunpack.c.h.b16 %v896
        %v1012 = vunpack.c.l.b16 %v897
        %v1013 = vunpack.c.h.b16 %v897
        %v1014 = vunpack.c.l.b16 %v898
        %v1015 = vunpack.c.h.b16 %v898
        %v1016 = vunpack.c.l.b16 %v899
        %v1017 = vunpack.c.h.b16 %v899
        %v1018 = vunpack.c.l.b16 %v900
        %v1019 = vunpack.c.h.b16 %v900
        %v1020 = vunpack.c.l.b16 %v901
        %v1021 = vunpack.c.h.b16 %v901
        %v1022 = vunpack.c.l.b16 %v902
        %v1023 = vunpack.c.h.b16 %v902
        %v1024 = vunpack.c.l.b16 %v903
        %v1025 = vunpack.c.h.b16 %v903
        %v1026 = vunpack.c.l.b16 %v904
        %v1027 = vunpack.c.h.b16 %v904
        %v1028 = vunpack.c.l.b16 %v905
        %v1029 = vunpack.c.h.b16 %v905
        %v1030 = vunpack.c.l.b16 %v906
        %v1031 = vunpack.c.h.b16 %v906
        %v1032 = vunpack.c.l.b16 %v907
        %v1033 = vunpack.c.h.b16 %v907
        %v1034 = vunpack.c.l.b16 %v908
        %v1035 = vunpack.c.h.b16 %v908
        %v1036 = vunpack.c.l.b16 %v909
        %v1037 = vunpack.c.h.b16 %v909
        %v1038 = vunpack.c.l.b16 %v910
        %v1039 = vunpack.c.h.b16 %v910
        %v1040 = vunpack.c.l.b16 %v911
        %v1041 = vunpack.c.h.b16 %v911
        %v1042 = vunpack.c.l.b16 %v912
        %v1043 = vunpack.c.h.b16 %v912
        %v1044 = vunpack.c.l.b16 %v913
        %v1045 = vunpack.c.h.b16 %v913
        %v1046 = vunpack.c.l.b16 %v914
        %v1047 = vunpack.c.h.b16 %v914
        %v1048 = vunpack.c.l.b16 %v915
        %v1049 = vunpack.c.h.b16 %v915
        %v1050 = vunpack.c.l.b16 %v916
        %v1051 = vunpack.c.h.b16 %v916
        %v1052 = vunpack.c.l.b16 %v917
        %v1053 = vunpack.c.h.b16 %v917
        %v1054 = vunpack.c.l.b16 %v918
        %v1055 = vunpack.c.h.b16 %v918
        %v1056 = vunpack.c.l.b16 %v919
        %v1057 = vunpack.c.h.b16 %v919
        %v1058 = vunpack.c.l.b16 %v920
        %v1059 = vunpack.c.h.b16 %v920
        %v1060 = vunpack.c.l.b16 %v921
        %v1061 = vunpack.c.h.b16 %v921
        %v1062 = vunpack.c.l.b16 %v922
        %v1063 = vunpack.c.h.b16 %v922
        %v1064 = vunpack.c.l.b16 %v923
        %v1065 = vunpack.c.h.b16 %v923
        %v1066 = vunpack.c.l.b16 %v924
        %v1067 = vunpack.c.h.b16 %v924
        %v1068 = vunpack.c.l.b16 %v925
        %v1069 = vunpack.c.h.b16 %v925
        %v1070 = vpack.c.b16 %v976, %v974
        %v1071 = vpack.c.b16 %v977, %v975
        %v1072 = vpack.c.b16 %v980, %v978
        %v1073 = vpack.c.b16 %v981, %v979
        %v1074 = vpack.c.b16 %v984, %v982
        %v1075 = vpack.c.b16 %v985, %v983
        %v1076 = vpack.c.b16 %v988, %v986
        %v1077 = vpack.c.b16 %v989, %v987
        %v1078 = vpack.c.b16 %v992, %v990
        %v1079 = vpack.c.b16 %v993, %v991
        %v1080 = vpack.c.b16 %v996, %v994
        %v1081 = vpack.c.b16 %v997, %v995
        %v1082 = vpack.c.b16 %v1000, %v998
        %v1083 = vpack.c.b16 %v1001, %v999
        %v1084 = vpack.c.b16 %v1004, %v1002
        %v1085 = vpack.c.b16 %v1005, %v1003
        %v1086 = vpack.c.b16 %v1008, %v1006
        %v1087 = vpack.c.b16 %v1009, %v1007
        %v1088 = vpack.c.b16 %v1012, %v1010
        %v1089 = vpack.c.b16 %v1013, %v1011
        %v1090 = vpack.c.b16 %v1016, %v1014
        %v1091 = vpack.c.b16 %v1017, %v1015
        %v1092 = vpack.c.b16 %v1020, %v1018
        %v1093 = vpack.c.b16 %v1021, %v1019
        %v1094 = vpack.c.b16 %v1024, %v1022
        %v1095 = vpack.c.b16 %v1025, %v1023
        %v1096 = vpack.c.b16 %v1028, %v1026
        %v1097 = vpack.c.b16 %v1029, %v1027
        %v1098 = vpack.c.b16 %v1032, %v1030
        %v1099 = vpack.c.b16 %v1033, %v1031
        %v1100 = vpack.c.b16 %v1036, %v1034
        %v1101 = vpack.c.b16 %v1037, %v1035
        %v1102 = vpack.c.b16 %v1040, %v1038
        %v1103 = vpack.c.b16 %v1041, %v1039
        %v1104 = vpack.c.b16 %v1044, %v1042
        %v1105 = vpack.c.b16 %v1045, %v1043
        %v1106 = vpack.c.b16 %v1048, %v1046
        %v1107 = vpack.c.b16 %v1049, %v1047
        %v1108 = vpack.c.b16 %v1052, %v1050
        %v1109 = vpack.c.b16 %v1053, %v1051
        %v1110 = vpack.c.b16 %v1056, %v1054
        %v1111 = vpack.c.b16 %v1057, %v1055
        %v1112 = vpack.c.b16 %v1060, %v1058
        %v1113 = vpack.c.b16 %v1061, %v1059
        %v1114 = vpack.c.b16 %v1064, %v1062
        %v1115 = vpack.c.b16 %v1065, %v1063
        %v1116 = vpack.c.b16 %v1068, %v1066
        %v1117 = vpack.c.b16 %v1069, %v1067
        %1166 = vmatpush.bf16.msra.mxu0 %v1084
        %1167 = vmatpush.bf16.msra.mxu0 %v1082
        %1168 = vmatpush.bf16.msra.mxu0 %v1080
        %1169 = vmatpush.bf16.msra.mxu0 %v1078
        %1170 = vmatpush.bf16.msra.mxu0 %v1076
        %1171 = vmatpush.bf16.msra.mxu0 %v1074
        %1172 = vmatpush.bf16.msra.mxu0 %v1072
        %1173 = vmatpush.bf16.msra.mxu0 %v1070
        %1174 = vmatmul.bf16.gmra.mxu0 %v874
        %v1175 = vpop.f32.mrf.mxu0
        %v1176 = vadd.f32 0.0, %v1175
        %v1177 = vpop.f32.mrf.mxu0
        %v1178 = vadd.f32 0.0, %v1177
        %1179 = vdwg.mxu0
        %1180 = vmatpush.bf16.msra.mxu0 %v1100
        %1181 = vmatpush.bf16.msra.mxu0 %v1098
        %1182 = vmatpush.bf16.msra.mxu0 %v1096
        %1183 = vmatpush.bf16.msra.mxu0 %v1094
        %1184 = vmatpush.bf16.msra.mxu0 %v1092
        %1185 = vmatpush.bf16.msra.mxu0 %v1090
        %1186 = vmatpush.bf16.msra.mxu0 %v1088
        %1187 = vmatpush.bf16.msra.mxu0 %v1086
        %1188 = vmatmul.bf16.gmra.mxu0 %v875
        %v1189 = vpop.f32.mrf.mxu0
        %v1190 = vadd.f32 %v1176, %v1189
        %v1191 = vpop.f32.mrf.mxu0
        %v1192 = vadd.f32 %v1178, %v1191
        %1193 = vdwg.mxu0
        %1194 = vmatpush.bf16.msra.mxu0 %v1116
        %1195 = vmatpush.bf16.msra.mxu0 %v1114
        %1196 = vmatpush.bf16.msra.mxu0 %v1112
        %1197 = vmatpush.bf16.msra.mxu0 %v1110
        %1198 = vmatpush.bf16.msra.mxu0 %v1108
        %1199 = vmatpush.bf16.msra.mxu0 %v1106
        %1200 = vmatpush.bf16.msra.mxu0 %v1104
        %1201 = vmatpush.bf16.msra.mxu0 %v1102
        %1202 = vmatmul.bf16.gmra.mxu0 %v876
        %v1203 = vpop.f32.mrf.mxu0
        %v1204 = vadd.f32 %v1190, %v1203
        %v1205 = vpop.f32.mrf.mxu0
        %v1206 = vadd.f32 %v1192, %v1205
        %1207 = vdwg.mxu0
        %1208 = vmatpush.bf16.msra.mxu0 %v1085
        %1209 = vmatpush.bf16.msra.mxu0 %v1083
        %1210 = vmatpush.bf16.msra.mxu0 %v1081
        %1211 = vmatpush.bf16.msra.mxu0 %v1079
        %1212 = vmatpush.bf16.msra.mxu0 %v1077
        %1213 = vmatpush.bf16.msra.mxu0 %v1075
        %1214 = vmatpush.bf16.msra.mxu0 %v1073
        %1215 = vmatpush.bf16.msra.mxu0 %v1071
        %1216 = vmatmul.bf16.gmra.mxu0 %v874
        %v1217 = vpop.f32.mrf.mxu0
        %v1218 = vadd.f32 0.0, %v1217
        %v1219 = vpop.f32.mrf.mxu0
        %v1220 = vadd.f32 0.0, %v1219
        %1221 = vdwg.mxu0
        %1222 = vmatpush.bf16.msra.mxu0 %v1101
        %1223 = vmatpush.bf16.msra.mxu0 %v1099
        %1224 = vmatpush.bf16.msra.mxu0 %v1097
        %1225 = vmatpush.bf16.msra.mxu0 %v1095
        %1226 = vmatpush.bf16.msra.mxu0 %v1093
        %1227 = vmatpush.bf16.msra.mxu0 %v1091
        %1228 = vmatpush.bf16.msra.mxu0 %v1089
        %1229 = vmatpush.bf16.msra.mxu0 %v1087
        %1230 = vmatmul.bf16.gmra.mxu0 %v875
        %v1231 = vpop.f32.mrf.mxu0
        %v1232 = vadd.f32 %v1218, %v1231
        %v1233 = vpop.f32.mrf.mxu0
        %v1234 = vadd.f32 %v1220, %v1233
        %1235 = vdwg.mxu0
        %1236 = vmatpush.bf16.msra.mxu0 %v1117
        %1237 = vmatpush.bf16.msra.mxu0 %v1115
        %1238 = vmatpush.bf16.msra.mxu0 %v1113
        %1239 = vmatpush.bf16.msra.mxu0 %v1111
        %1240 = vmatpush.bf16.msra.mxu0 %v1109
        %1241 = vmatpush.bf16.msra.mxu0 %v1107
        %1242 = vmatpush.bf16.msra.mxu0 %v1105
        %1243 = vmatpush.bf16.msra.mxu0 %v1103
        %1244 = vmatmul.bf16.gmra.mxu0 %v876
        %v1245 = vpop.f32.mrf.mxu0
        %v1246 = vadd.f32 %v1232, %v1245
        %v1247 = vpop.f32.mrf.mxu0
        %v1248 = vadd.f32 %v1234, %v1247
        %1249 = vdwg.mxu0
        %v1298 = vunpack.c.l.b16 %v746
        %v1299 = vunpack.c.h.b16 %v746
        %v1300 = vunpack.c.l.b16 %v747
        %v1301 = vunpack.c.h.b16 %v747
        %v1302 = vunpack.c.l.b16 %v748
        %v1303 = vunpack.c.h.b16 %v748
        %v1304 = vunpack.c.l.b16 %v749
        %v1305 = vunpack.c.h.b16 %v749
        %v1306 = vunpack.c.l.b16 %v750
        %v1307 = vunpack.c.h.b16 %v750
        %v1308 = vunpack.c.l.b16 %v751
        %v1309 = vunpack.c.h.b16 %v751
        %v1310 = vunpack.c.l.b16 %v752
        %v1311 = vunpack.c.h.b16 %v752
        %v1312 = vunpack.c.l.b16 %v753
        %v1313 = vunpack.c.h.b16 %v753
        %v1314 = vunpack.c.l.b16 %v754
        %v1315 = vunpack.c.h.b16 %v754
        %v1316 = vunpack.c.l.b16 %v755
        %v1317 = vunpack.c.h.b16 %v755
        %v1318 = vunpack.c.l.b16 %v756
        %v1319 = vunpack.c.h.b16 %v756
        %v1320 = vunpack.c.l.b16 %v757
        %v1321 = vunpack.c.h.b16 %v757
        %v1322 = vunpack.c.l.b16 %v758
        %v1323 = vunpack.c.h.b16 %v758
        %v1324 = vunpack.c.l.b16 %v759
        %v1325 = vunpack.c.h.b16 %v759
        %v1326 = vunpack.c.l.b16 %v760
        %v1327 = vunpack.c.h.b16 %v760
        %v1328 = vunpack.c.l.b16 %v761
        %v1329 = vunpack.c.h.b16 %v761
        %v1330 = vunpack.c.l.b16 %v762
        %v1331 = vunpack.c.h.b16 %v762
        %v1332 = vunpack.c.l.b16 %v763
        %v1333 = vunpack.c.h.b16 %v763
        %v1334 = vunpack.c.l.b16 %v764
        %v1335 = vunpack.c.h.b16 %v764
        %v1336 = vunpack.c.l.b16 %v765
        %v1337 = vunpack.c.h.b16 %v765
        %v1338 = vunpack.c.l.b16 %v766
        %v1339 = vunpack.c.h.b16 %v766
        %v1340 = vunpack.c.l.b16 %v767
        %v1341 = vunpack.c.h.b16 %v767
        %v1342 = vunpack.c.l.b16 %v768
        %v1343 = vunpack.c.h.b16 %v768
        %v1344 = vunpack.c.l.b16 %v769
        %v1345 = vunpack.c.h.b16 %v769
        %v1346 = vunpack.c.l.b16 %v770
        %v1347 = vunpack.c.h.b16 %v770
        %v1348 = vunpack.c.l.b16 %v771
        %v1349 = vunpack.c.h.b16 %v771
        %v1350 = vunpack.c.l.b16 %v772
        %v1351 = vunpack.c.h.b16 %v772
        %v1352 = vunpack.c.l.b16 %v773
        %v1353 = vunpack.c.h.b16 %v773
        %v1354 = vunpack.c.l.b16 %v774
        %v1355 = vunpack.c.h.b16 %v774
        %v1356 = vunpack.c.l.b16 %v775
        %v1357 = vunpack.c.h.b16 %v775
        %v1358 = vunpack.c.l.b16 %v776
        %v1359 = vunpack.c.h.b16 %v776
        %v1360 = vunpack.c.l.b16 %v777
        %v1361 = vunpack.c.h.b16 %v777
        %v1362 = vunpack.c.l.b16 %v778
        %v1363 = vunpack.c.h.b16 %v778
        %v1364 = vunpack.c.l.b16 %v779
        %v1365 = vunpack.c.h.b16 %v779
        %v1366 = vunpack.c.l.b16 %v780
        %v1367 = vunpack.c.h.b16 %v780
        %v1368 = vunpack.c.l.b16 %v781
        %v1369 = vunpack.c.h.b16 %v781
        %v1370 = vunpack.c.l.b16 %v782
        %v1371 = vunpack.c.h.b16 %v782
        %v1372 = vunpack.c.l.b16 %v783
        %v1373 = vunpack.c.h.b16 %v783
        %v1374 = vunpack.c.l.b16 %v784
        %v1375 = vunpack.c.h.b16 %v784
        %v1376 = vunpack.c.l.b16 %v785
        %v1377 = vunpack.c.h.b16 %v785
        %v1378 = vunpack.c.l.b16 %v786
        %v1379 = vunpack.c.h.b16 %v786
        %v1380 = vunpack.c.l.b16 %v787
        %v1381 = vunpack.c.h.b16 %v787
        %v1382 = vunpack.c.l.b16 %v788
        %v1383 = vunpack.c.h.b16 %v788
        %v1384 = vunpack.c.l.b16 %v789
        %v1385 = vunpack.c.h.b16 %v789
        %v1386 = vunpack.c.l.b16 %v790
        %v1387 = vunpack.c.h.b16 %v790
        %v1388 = vunpack.c.l.b16 %v791
        %v1389 = vunpack.c.h.b16 %v791
        %v1390 = vunpack.c.l.b16 %v792
        %v1391 = vunpack.c.h.b16 %v792
        %v1392 = vunpack.c.l.b16 %v793
        %v1393 = vunpack.c.h.b16 %v793
        %v1394 = vpack.c.b16 %v1300, %v1298
        %v1395 = vpack.c.b16 %v1301, %v1299
        %v1396 = vpack.c.b16 %v1304, %v1302
        %v1397 = vpack.c.b16 %v1305, %v1303
        %v1398 = vpack.c.b16 %v1308, %v1306
        %v1399 = vpack.c.b16 %v1309, %v1307
        %v1400 = vpack.c.b16 %v1312, %v1310
        %v1401 = vpack.c.b16 %v1313, %v1311
        %v1402 = vpack.c.b16 %v1316, %v1314
        %v1403 = vpack.c.b16 %v1317, %v1315
        %v1404 = vpack.c.b16 %v1320, %v1318
        %v1405 = vpack.c.b16 %v1321, %v1319
        %v1406 = vpack.c.b16 %v1324, %v1322
        %v1407 = vpack.c.b16 %v1325, %v1323
        %v1408 = vpack.c.b16 %v1328, %v1326
        %v1409 = vpack.c.b16 %v1329, %v1327
        %v1410 = vpack.c.b16 %v1332, %v1330
        %v1411 = vpack.c.b16 %v1333, %v1331
        %v1412 = vpack.c.b16 %v1336, %v1334
        %v1413 = vpack.c.b16 %v1337, %v1335
        %v1414 = vpack.c.b16 %v1340, %v1338
        %v1415 = vpack.c.b16 %v1341, %v1339
        %v1416 = vpack.c.b16 %v1344, %v1342
        %v1417 = vpack.c.b16 %v1345, %v1343
        %v1418 = vpack.c.b16 %v1348, %v1346
        %v1419 = vpack.c.b16 %v1349, %v1347
        %v1420 = vpack.c.b16 %v1352, %v1350
        %v1421 = vpack.c.b16 %v1353, %v1351
        %v1422 = vpack.c.b16 %v1356, %v1354
        %v1423 = vpack.c.b16 %v1357, %v1355
        %v1424 = vpack.c.b16 %v1360, %v1358
        %v1425 = vpack.c.b16 %v1361, %v1359
        %v1426 = vpack.c.b16 %v1364, %v1362
        %v1427 = vpack.c.b16 %v1365, %v1363
        %v1428 = vpack.c.b16 %v1368, %v1366
        %v1429 = vpack.c.b16 %v1369, %v1367
        %v1430 = vpack.c.b16 %v1372, %v1370
        %v1431 = vpack.c.b16 %v1373, %v1371
        %v1432 = vpack.c.b16 %v1376, %v1374
        %v1433 = vpack.c.b16 %v1377, %v1375
        %v1434 = vpack.c.b16 %v1380, %v1378
        %v1435 = vpack.c.b16 %v1381, %v1379
        %v1436 = vpack.c.b16 %v1384, %v1382
        %v1437 = vpack.c.b16 %v1385, %v1383
        %v1438 = vpack.c.b16 %v1388, %v1386
        %v1439 = vpack.c.b16 %v1389, %v1387
        %v1440 = vpack.c.b16 %v1392, %v1390
        %v1441 = vpack.c.b16 %v1393, %v1391
        %1490 = vmatpush.bf16.msra.mxu0 %v1408
        %1491 = vmatpush.bf16.msra.mxu0 %v1406
        %1492 = vmatpush.bf16.msra.mxu0 %v1404
        %1493 = vmatpush.bf16.msra.mxu0 %v1402
        %1494 = vmatpush.bf16.msra.mxu0 %v1400
        %1495 = vmatpush.bf16.msra.mxu0 %v1398
        %1496 = vmatpush.bf16.msra.mxu0 %v1396
        %1497 = vmatpush.bf16.msra.mxu0 %v1394
        %1498 = vmatmul.bf16.gmra.mxu0 %v743
        %v1499 = vpop.f32.mrf.mxu0
        %v1500 = vadd.f32 %v1204, %v1499
        %v1501 = vpop.f32.mrf.mxu0
        %v1502 = vadd.f32 %v1206, %v1501
        %1503 = vdwg.mxu0
        %1504 = vmatpush.bf16.msra.mxu0 %v1424
        %1505 = vmatpush.bf16.msra.mxu0 %v1422
        %1506 = vmatpush.bf16.msra.mxu0 %v1420
        %1507 = vmatpush.bf16.msra.mxu0 %v1418
        %1508 = vmatpush.bf16.msra.mxu0 %v1416
        %1509 = vmatpush.bf16.msra.mxu0 %v1414
        %1510 = vmatpush.bf16.msra.mxu0 %v1412
        %1511 = vmatpush.bf16.msra.mxu0 %v1410
        %1512 = vmatmul.bf16.gmra.mxu0 %v744
        %v1513 = vpop.f32.mrf.mxu0
        %v1514 = vadd.f32 %v1500, %v1513
        %v1515 = vpop.f32.mrf.mxu0
        %v1516 = vadd.f32 %v1502, %v1515
        %1517 = vdwg.mxu0
        %1518 = vmatpush.bf16.msra.mxu0 %v1440
        %1519 = vmatpush.bf16.msra.mxu0 %v1438
        %1520 = vmatpush.bf16.msra.mxu0 %v1436
        %1521 = vmatpush.bf16.msra.mxu0 %v1434
        %1522 = vmatpush.bf16.msra.mxu0 %v1432
        %1523 = vmatpush.bf16.msra.mxu0 %v1430
        %1524 = vmatpush.bf16.msra.mxu0 %v1428
        %1525 = vmatpush.bf16.msra.mxu0 %v1426
        %1526 = vmatmul.bf16.gmra.mxu0 %v745
        %v1527 = vpop.f32.mrf.mxu0
        %v1528 = vadd.f32 %v1514, %v1527
        %v1529 = vpop.f32.mrf.mxu0
        %v1530 = vadd.f32 %v1516, %v1529
        %1531 = vdwg.mxu0
        %1532 = vmatpush.bf16.msra.mxu0 %v1409
        %1533 = vmatpush.bf16.msra.mxu0 %v1407
        %1534 = vmatpush.bf16.msra.mxu0 %v1405
        %1535 = vmatpush.bf16.msra.mxu0 %v1403
        %1536 = vmatpush.bf16.msra.mxu0 %v1401
        %1537 = vmatpush.bf16.msra.mxu0 %v1399
        %1538 = vmatpush.bf16.msra.mxu0 %v1397
        %1539 = vmatpush.bf16.msra.mxu0 %v1395
        %1540 = vmatmul.bf16.gmra.mxu0 %v743
        %v1541 = vpop.f32.mrf.mxu0
        %v1542 = vadd.f32 %v1246, %v1541
        %v1543 = vpop.f32.mrf.mxu0
        %v1544 = vadd.f32 %v1248, %v1543
        %1545 = vdwg.mxu0
        %1546 = vmatpush.bf16.msra.mxu0 %v1425
        %1547 = vmatpush.bf16.msra.mxu0 %v1423
        %1548 = vmatpush.bf16.msra.mxu0 %v1421
        %1549 = vmatpush.bf16.msra.mxu0 %v1419
        %1550 = vmatpush.bf16.msra.mxu0 %v1417
        %1551 = vmatpush.bf16.msra.mxu0 %v1415
        %1552 = vmatpush.bf16.msra.mxu0 %v1413
        %1553 = vmatpush.bf16.msra.mxu0 %v1411
        %1554 = vmatmul.bf16.gmra.mxu0 %v744
        %v1555 = vpop.f32.mrf.mxu0
        %v1556 = vadd.f32 %v1542, %v1555
        %v1557 = vpop.f32.mrf.mxu0
        %v1558 = vadd.f32 %v1544, %v1557
        %1559 = vdwg.mxu0
        %1560 = vmatpush.bf16.msra.mxu0 %v1441
        %1561 = vmatpush.bf16.msra.mxu0 %v1439
        %1562 = vmatpush.bf16.msra.mxu0 %v1437
        %1563 = vmatpush.bf16.msra.mxu0 %v1435
        %1564 = vmatpush.bf16.msra.mxu0 %v1433
        %1565 = vmatpush.bf16.msra.mxu0 %v1431
        %1566 = vmatpush.bf16.msra.mxu0 %v1429
        %1567 = vmatpush.bf16.msra.mxu0 %v1427
        %1568 = vmatmul.bf16.gmra.mxu0 %v745
        %v1569 = vpop.f32.mrf.mxu0
        %v1570 = vadd.f32 %v1556, %v1569
        %v1571 = vpop.f32.mrf.mxu0
        %v1572 = vadd.f32 %v1558, %v1571
        %1573 = vdwg.mxu0
        %s1574 = scalar_lea.vmem %s7, 32
        %v1575 = vld [vmem:[%s1574] sm:$0xff]
        %v1576 = vld [vmem:[%s1574 + $0x8] sm:$0xff]
        %v1577 = vmul.f32 %v1575, %v664
        %v1578 = vmul.f32 %v1576, %v664
        %v1580 = vsel %vm667, %v1577, 0
        %v1583 = vsel %vm667, %v1578, 0
        %1585 = vmatpush.msra.mxu0 0.0
        %1586 = vmatpush.msra.mxu0 0.0
        %1587 = vmatpush.msra.mxu0 0.0
        %1588 = vmatpush.msra.mxu0 0.0
        %1589 = vmatpush.msra.mxu0 0.0
        %1590 = vmatpush.msra.mxu0 0.0
        %1591 = vmatpush.msra.mxu0 0.0
        %1592 = vmatpush.msra.mxu0 0.0
        %1593 = vmatpush.msra.mxu0 %v440
        %1594 = vmatpush.msra.mxu0 %v437
        %1595 = vmatpush.msra.mxu0 %v434
        %1596 = vmatpush.msra.mxu0 %v431
        %1597 = vmatpush.msra.mxu0 %v428
        %1598 = vmatpush.msra.mxu0 %v425
        %1599 = vmatpush.msra.mxu0 %v422
        %1600 = vmatpush.msra.mxu0 %v419
        %1601 = vmatmul.f32.gmra.mxu0 %v1580
        %v1602 = vpop.f32.mrf.mxu0
        %v1603 = vadd.f32 0.0, %v1602
        %1604 = vmatmul.f32.gmra.mxu0 %v1583
        %v1605 = vpop.f32.mrf.mxu0
        %v1606 = vadd.f32 0.0, %v1605
        %1607 = vdwg.mxu0
        %1608 = vmatpush.msra.mxu0 0.0
        %1609 = vmatpush.msra.mxu0 0.0
        %1610 = vmatpush.msra.mxu0 0.0
        %1611 = vmatpush.msra.mxu0 0.0
        %1612 = vmatpush.msra.mxu0 0.0
        %1613 = vmatpush.msra.mxu0 0.0
        %1614 = vmatpush.msra.mxu0 0.0
        %1615 = vmatpush.msra.mxu0 0.0
        %1616 = vmatpush.msra.mxu0 %v441
        %1617 = vmatpush.msra.mxu0 %v438
        %1618 = vmatpush.msra.mxu0 %v435
        %1619 = vmatpush.msra.mxu0 %v432
        %1620 = vmatpush.msra.mxu0 %v429
        %1621 = vmatpush.msra.mxu0 %v426
        %1622 = vmatpush.msra.mxu0 %v423
        %1623 = vmatpush.msra.mxu0 %v420
        %1624 = vmatmul.f32.gmra.mxu0 %v1580
        %v1625 = vpop.f32.mrf.mxu0
        %v1626 = vadd.f32 0.0, %v1625
        %1627 = vmatmul.f32.gmra.mxu0 %v1583
        %v1628 = vpop.f32.mrf.mxu0
        %v1629 = vadd.f32 0.0, %v1628
        %1630 = vdwg.mxu0
        %1631 = vmatpush.msra.mxu0 0.0
        %1632 = vmatpush.msra.mxu0 0.0
        %1633 = vmatpush.msra.mxu0 0.0
        %1634 = vmatpush.msra.mxu0 0.0
        %1635 = vmatpush.msra.mxu0 0.0
        %1636 = vmatpush.msra.mxu0 0.0
        %1637 = vmatpush.msra.mxu0 0.0
        %1638 = vmatpush.msra.mxu0 0.0
        %1639 = vmatpush.msra.mxu0 %v442
        %1640 = vmatpush.msra.mxu0 %v439
        %1641 = vmatpush.msra.mxu0 %v436
        %1642 = vmatpush.msra.mxu0 %v433
        %1643 = vmatpush.msra.mxu0 %v430
        %1644 = vmatpush.msra.mxu0 %v427
        %1645 = vmatpush.msra.mxu0 %v424
        %1646 = vmatpush.msra.mxu0 %v421
        %1647 = vmatmul.f32.gmra.mxu0 %v1580
        %v1648 = vpop.f32.mrf.mxu0
        %v1649 = vadd.f32 0.0, %v1648
        %1650 = vmatmul.f32.gmra.mxu0 %v1583
        %v1651 = vpop.f32.mrf.mxu0
        %v1652 = vadd.f32 0.0, %v1651
        %1653 = vdwg.mxu0
        %v1654 = vpack.c.bf16 %v1606, %v1603
        %v1655 = vpack.c.bf16 %v1629, %v1626
        %v1656 = vpack.c.bf16 %v1652, %v1649
        %s1657 = scalar_lea.vmem %s8, 768
        %v1658 = vld [vmem:[%s1657] sm:$0xff]
        %v1659 = vld [vmem:[%s1657 + $0x8] sm:$0xff]
        %v1660 = vld [vmem:[%s1657 + $0x10] sm:$0xff]
        %v1661 = vld [vmem:[%s1657 + $0x18] sm:$0xff]
        %v1662 = vld [vmem:[%s1657 + $0x20] sm:$0xff]
        %v1663 = vld [vmem:[%s1657 + $0x28] sm:$0xff]
        %v1664 = vld [vmem:[%s1657 + $0x30] sm:$0xff]
        %v1665 = vld [vmem:[%s1657 + $0x38] sm:$0xff]
        %v1666 = vld [vmem:[%s1657 + $0x40] sm:$0xff]
        %v1667 = vld [vmem:[%s1657 + $0x48] sm:$0xff]
        %v1668 = vld [vmem:[%s1657 + $0x50] sm:$0xff]
        %v1669 = vld [vmem:[%s1657 + $0x58] sm:$0xff]
        %v1670 = vld [vmem:[%s1657 + $0x60] sm:$0xff]
        %v1671 = vld [vmem:[%s1657 + $0x68] sm:$0xff]
        %v1672 = vld [vmem:[%s1657 + $0x70] sm:$0xff]
        %v1673 = vld [vmem:[%s1657 + $0x78] sm:$0xff]
        %v1674 = vld [vmem:[%s1657 + $0x80] sm:$0xff]
        %v1675 = vld [vmem:[%s1657 + $0x88] sm:$0xff]
        %v1676 = vld [vmem:[%s1657 + $0x90] sm:$0xff]
        %v1677 = vld [vmem:[%s1657 + $0x98] sm:$0xff]
        %v1678 = vld [vmem:[%s1657 + $0xa0] sm:$0xff]
        %v1679 = vld [vmem:[%s1657 + $0xa8] sm:$0xff]
        %v1680 = vld [vmem:[%s1657 + $0xb0] sm:$0xff]
        %v1681 = vld [vmem:[%s1657 + $0xb8] sm:$0xff]
        %v1682 = vld [vmem:[%s1657 + $0xc0] sm:$0xff]
        %v1683 = vld [vmem:[%s1657 + $0xc8] sm:$0xff]
        %v1684 = vld [vmem:[%s1657 + $0xd0] sm:$0xff]
        %v1685 = vld [vmem:[%s1657 + $0xd8] sm:$0xff]
        %v1686 = vld [vmem:[%s1657 + $0xe0] sm:$0xff]
        %v1687 = vld [vmem:[%s1657 + $0xe8] sm:$0xff]
        %v1688 = vld [vmem:[%s1657 + $0xf0] sm:$0xff]
        %v1689 = vld [vmem:[%s1657 + $0xf8] sm:$0xff]
        %v1690 = vld [vmem:[%s1657 + $0x100] sm:$0xff]
        %v1691 = vld [vmem:[%s1657 + $0x108] sm:$0xff]
        %v1692 = vld [vmem:[%s1657 + $0x110] sm:$0xff]
        %v1693 = vld [vmem:[%s1657 + $0x118] sm:$0xff]
        %v1694 = vld [vmem:[%s1657 + $0x120] sm:$0xff]
        %v1695 = vld [vmem:[%s1657 + $0x128] sm:$0xff]
        %v1696 = vld [vmem:[%s1657 + $0x130] sm:$0xff]
        %v1697 = vld [vmem:[%s1657 + $0x138] sm:$0xff]
        %v1698 = vld [vmem:[%s1657 + $0x140] sm:$0xff]
        %v1699 = vld [vmem:[%s1657 + $0x148] sm:$0xff]
        %v1700 = vld [vmem:[%s1657 + $0x150] sm:$0xff]
        %v1701 = vld [vmem:[%s1657 + $0x158] sm:$0xff]
        %v1702 = vld [vmem:[%s1657 + $0x160] sm:$0xff]
        %v1703 = vld [vmem:[%s1657 + $0x168] sm:$0xff]
        %v1704 = vld [vmem:[%s1657 + $0x170] sm:$0xff]
        %v1705 = vld [vmem:[%s1657 + $0x178] sm:$0xff]
        %v1754 = vunpack.c.l.b16 %v1658
        %v1755 = vunpack.c.h.b16 %v1658
        %v1756 = vunpack.c.l.b16 %v1659
        %v1757 = vunpack.c.h.b16 %v1659
        %v1758 = vunpack.c.l.b16 %v1660
        %v1759 = vunpack.c.h.b16 %v1660
        %v1760 = vunpack.c.l.b16 %v1661
        %v1761 = vunpack.c.h.b16 %v1661
        %v1762 = vunpack.c.l.b16 %v1662
        %v1763 = vunpack.c.h.b16 %v1662
        %v1764 = vunpack.c.l.b16 %v1663
        %v1765 = vunpack.c.h.b16 %v1663
        %v1766 = vunpack.c.l.b16 %v1664
        %v1767 = vunpack.c.h.b16 %v1664
        %v1768 = vunpack.c.l.b16 %v1665
        %v1769 = vunpack.c.h.b16 %v1665
        %v1770 = vunpack.c.l.b16 %v1666
        %v1771 = vunpack.c.h.b16 %v1666
        %v1772 = vunpack.c.l.b16 %v1667
        %v1773 = vunpack.c.h.b16 %v1667
        %v1774 = vunpack.c.l.b16 %v1668
        %v1775 = vunpack.c.h.b16 %v1668
        %v1776 = vunpack.c.l.b16 %v1669
        %v1777 = vunpack.c.h.b16 %v1669
        %v1778 = vunpack.c.l.b16 %v1670
        %v1779 = vunpack.c.h.b16 %v1670
        %v1780 = vunpack.c.l.b16 %v1671
        %v1781 = vunpack.c.h.b16 %v1671
        %v1782 = vunpack.c.l.b16 %v1672
        %v1783 = vunpack.c.h.b16 %v1672
        %v1784 = vunpack.c.l.b16 %v1673
        %v1785 = vunpack.c.h.b16 %v1673
        %v1786 = vunpack.c.l.b16 %v1674
        %v1787 = vunpack.c.h.b16 %v1674
        %v1788 = vunpack.c.l.b16 %v1675
        %v1789 = vunpack.c.h.b16 %v1675
        %v1790 = vunpack.c.l.b16 %v1676
        %v1791 = vunpack.c.h.b16 %v1676
        %v1792 = vunpack.c.l.b16 %v1677
        %v1793 = vunpack.c.h.b16 %v1677
        %v1794 = vunpack.c.l.b16 %v1678
        %v1795 = vunpack.c.h.b16 %v1678
        %v1796 = vunpack.c.l.b16 %v1679
        %v1797 = vunpack.c.h.b16 %v1679
        %v1798 = vunpack.c.l.b16 %v1680
        %v1799 = vunpack.c.h.b16 %v1680
        %v1800 = vunpack.c.l.b16 %v1681
        %v1801 = vunpack.c.h.b16 %v1681
        %v1802 = vunpack.c.l.b16 %v1682
        %v1803 = vunpack.c.h.b16 %v1682
        %v1804 = vunpack.c.l.b16 %v1683
        %v1805 = vunpack.c.h.b16 %v1683
        %v1806 = vunpack.c.l.b16 %v1684
        %v1807 = vunpack.c.h.b16 %v1684
        %v1808 = vunpack.c.l.b16 %v1685
        %v1809 = vunpack.c.h.b16 %v1685
        %v1810 = vunpack.c.l.b16 %v1686
        %v1811 = vunpack.c.h.b16 %v1686
        %v1812 = vunpack.c.l.b16 %v1687
        %v1813 = vunpack.c.h.b16 %v1687
        %v1814 = vunpack.c.l.b16 %v1688
        %v1815 = vunpack.c.h.b16 %v1688
        %v1816 = vunpack.c.l.b16 %v1689
        %v1817 = vunpack.c.h.b16 %v1689
        %v1818 = vunpack.c.l.b16 %v1690
        %v1819 = vunpack.c.h.b16 %v1690
        %v1820 = vunpack.c.l.b16 %v1691
        %v1821 = vunpack.c.h.b16 %v1691
        %v1822 = vunpack.c.l.b16 %v1692
        %v1823 = vunpack.c.h.b16 %v1692
        %v1824 = vunpack.c.l.b16 %v1693
        %v1825 = vunpack.c.h.b16 %v1693
        %v1826 = vunpack.c.l.b16 %v1694
        %v1827 = vunpack.c.h.b16 %v1694
        %v1828 = vunpack.c.l.b16 %v1695
        %v1829 = vunpack.c.h.b16 %v1695
        %v1830 = vunpack.c.l.b16 %v1696
        %v1831 = vunpack.c.h.b16 %v1696
        %v1832 = vunpack.c.l.b16 %v1697
        %v1833 = vunpack.c.h.b16 %v1697
        %v1834 = vunpack.c.l.b16 %v1698
        %v1835 = vunpack.c.h.b16 %v1698
        %v1836 = vunpack.c.l.b16 %v1699
        %v1837 = vunpack.c.h.b16 %v1699
        %v1838 = vunpack.c.l.b16 %v1700
        %v1839 = vunpack.c.h.b16 %v1700
        %v1840 = vunpack.c.l.b16 %v1701
        %v1841 = vunpack.c.h.b16 %v1701
        %v1842 = vunpack.c.l.b16 %v1702
        %v1843 = vunpack.c.h.b16 %v1702
        %v1844 = vunpack.c.l.b16 %v1703
        %v1845 = vunpack.c.h.b16 %v1703
        %v1846 = vunpack.c.l.b16 %v1704
        %v1847 = vunpack.c.h.b16 %v1704
        %v1848 = vunpack.c.l.b16 %v1705
        %v1849 = vunpack.c.h.b16 %v1705
        %v1850 = vpack.c.b16 %v1756, %v1754
        %v1851 = vpack.c.b16 %v1757, %v1755
        %v1852 = vpack.c.b16 %v1760, %v1758
        %v1853 = vpack.c.b16 %v1761, %v1759
        %v1854 = vpack.c.b16 %v1764, %v1762
        %v1855 = vpack.c.b16 %v1765, %v1763
        %v1856 = vpack.c.b16 %v1768, %v1766
        %v1857 = vpack.c.b16 %v1769, %v1767
        %v1858 = vpack.c.b16 %v1772, %v1770
        %v1859 = vpack.c.b16 %v1773, %v1771
        %v1860 = vpack.c.b16 %v1776, %v1774
        %v1861 = vpack.c.b16 %v1777, %v1775
        %v1862 = vpack.c.b16 %v1780, %v1778
        %v1863 = vpack.c.b16 %v1781, %v1779
        %v1864 = vpack.c.b16 %v1784, %v1782
        %v1865 = vpack.c.b16 %v1785, %v1783
        %v1866 = vpack.c.b16 %v1788, %v1786
        %v1867 = vpack.c.b16 %v1789, %v1787
        %v1868 = vpack.c.b16 %v1792, %v1790
        %v1869 = vpack.c.b16 %v1793, %v1791
        %v1870 = vpack.c.b16 %v1796, %v1794
        %v1871 = vpack.c.b16 %v1797, %v1795
        %v1872 = vpack.c.b16 %v1800, %v1798
        %v1873 = vpack.c.b16 %v1801, %v1799
        %v1874 = vpack.c.b16 %v1804, %v1802
        %v1875 = vpack.c.b16 %v1805, %v1803
        %v1876 = vpack.c.b16 %v1808, %v1806
        %v1877 = vpack.c.b16 %v1809, %v1807
        %v1878 = vpack.c.b16 %v1812, %v1810
        %v1879 = vpack.c.b16 %v1813, %v1811
        %v1880 = vpack.c.b16 %v1816, %v1814
        %v1881 = vpack.c.b16 %v1817, %v1815
        %v1882 = vpack.c.b16 %v1820, %v1818
        %v1883 = vpack.c.b16 %v1821, %v1819
        %v1884 = vpack.c.b16 %v1824, %v1822
        %v1885 = vpack.c.b16 %v1825, %v1823
        %v1886 = vpack.c.b16 %v1828, %v1826
        %v1887 = vpack.c.b16 %v1829, %v1827
        %v1888 = vpack.c.b16 %v1832, %v1830
        %v1889 = vpack.c.b16 %v1833, %v1831
        %v1890 = vpack.c.b16 %v1836, %v1834
        %v1891 = vpack.c.b16 %v1837, %v1835
        %v1892 = vpack.c.b16 %v1840, %v1838
        %v1893 = vpack.c.b16 %v1841, %v1839
        %v1894 = vpack.c.b16 %v1844, %v1842
        %v1895 = vpack.c.b16 %v1845, %v1843
        %v1896 = vpack.c.b16 %v1848, %v1846
        %v1897 = vpack.c.b16 %v1849, %v1847
        %1946 = vmatpush.bf16.msra.mxu0 %v1864
        %1947 = vmatpush.bf16.msra.mxu0 %v1862
        %1948 = vmatpush.bf16.msra.mxu0 %v1860
        %1949 = vmatpush.bf16.msra.mxu0 %v1858
        %1950 = vmatpush.bf16.msra.mxu0 %v1856
        %1951 = vmatpush.bf16.msra.mxu0 %v1854
        %1952 = vmatpush.bf16.msra.mxu0 %v1852
        %1953 = vmatpush.bf16.msra.mxu0 %v1850
        %1954 = vmatmul.bf16.gmra.mxu0 %v1654
        %v1955 = vpop.f32.mrf.mxu0
        %v1956 = vadd.f32 0.0, %v1955
        %v1957 = vpop.f32.mrf.mxu0
        %v1958 = vadd.f32 0.0, %v1957
        %1959 = vdwg.mxu0
        %1960 = vmatpush.bf16.msra.mxu0 %v1880
        %1961 = vmatpush.bf16.msra.mxu0 %v1878
        %1962 = vmatpush.bf16.msra.mxu0 %v1876
        %1963 = vmatpush.bf16.msra.mxu0 %v1874
        %1964 = vmatpush.bf16.msra.mxu0 %v1872
        %1965 = vmatpush.bf16.msra.mxu0 %v1870
        %1966 = vmatpush.bf16.msra.mxu0 %v1868
        %1967 = vmatpush.bf16.msra.mxu0 %v1866
        %1968 = vmatmul.bf16.gmra.mxu0 %v1655
        %v1969 = vpop.f32.mrf.mxu0
        %v1970 = vadd.f32 %v1956, %v1969
        %v1971 = vpop.f32.mrf.mxu0
        %v1972 = vadd.f32 %v1958, %v1971
        %1973 = vdwg.mxu0
        %1974 = vmatpush.bf16.msra.mxu0 %v1896
        %1975 = vmatpush.bf16.msra.mxu0 %v1894
        %1976 = vmatpush.bf16.msra.mxu0 %v1892
        %1977 = vmatpush.bf16.msra.mxu0 %v1890
        %1978 = vmatpush.bf16.msra.mxu0 %v1888
        %1979 = vmatpush.bf16.msra.mxu0 %v1886
        %1980 = vmatpush.bf16.msra.mxu0 %v1884
        %1981 = vmatpush.bf16.msra.mxu0 %v1882
        %1982 = vmatmul.bf16.gmra.mxu0 %v1656
        %v1983 = vpop.f32.mrf.mxu0
        %v1984 = vadd.f32 %v1970, %v1983
        %v1985 = vpop.f32.mrf.mxu0
        %v1986 = vadd.f32 %v1972, %v1985
        %1987 = vdwg.mxu0
        %1988 = vmatpush.bf16.msra.mxu0 %v1865
        %1989 = vmatpush.bf16.msra.mxu0 %v1863
        %1990 = vmatpush.bf16.msra.mxu0 %v1861
        %1991 = vmatpush.bf16.msra.mxu0 %v1859
        %1992 = vmatpush.bf16.msra.mxu0 %v1857
        %1993 = vmatpush.bf16.msra.mxu0 %v1855
        %1994 = vmatpush.bf16.msra.mxu0 %v1853
        %1995 = vmatpush.bf16.msra.mxu0 %v1851
        %1996 = vmatmul.bf16.gmra.mxu0 %v1654
        %v1997 = vpop.f32.mrf.mxu0
        %v1998 = vadd.f32 0.0, %v1997
        %v1999 = vpop.f32.mrf.mxu0
        %v2000 = vadd.f32 0.0, %v1999
        %2001 = vdwg.mxu0
        %2002 = vmatpush.bf16.msra.mxu0 %v1881
        %2003 = vmatpush.bf16.msra.mxu0 %v1879
        %2004 = vmatpush.bf16.msra.mxu0 %v1877
        %2005 = vmatpush.bf16.msra.mxu0 %v1875
        %2006 = vmatpush.bf16.msra.mxu0 %v1873
        %2007 = vmatpush.bf16.msra.mxu0 %v1871
        %2008 = vmatpush.bf16.msra.mxu0 %v1869
        %2009 = vmatpush.bf16.msra.mxu0 %v1867
        %2010 = vmatmul.bf16.gmra.mxu0 %v1655
        %v2011 = vpop.f32.mrf.mxu0
        %v2012 = vadd.f32 %v1998, %v2011
        %v2013 = vpop.f32.mrf.mxu0
        %v2014 = vadd.f32 %v2000, %v2013
        %2015 = vdwg.mxu0
        %2016 = vmatpush.bf16.msra.mxu0 %v1897
        %2017 = vmatpush.bf16.msra.mxu0 %v1895
        %2018 = vmatpush.bf16.msra.mxu0 %v1893
        %2019 = vmatpush.bf16.msra.mxu0 %v1891
        %2020 = vmatpush.bf16.msra.mxu0 %v1889
        %2021 = vmatpush.bf16.msra.mxu0 %v1887
        %2022 = vmatpush.bf16.msra.mxu0 %v1885
        %2023 = vmatpush.bf16.msra.mxu0 %v1883
        %2024 = vmatmul.bf16.gmra.mxu0 %v1656
        %v2025 = vpop.f32.mrf.mxu0
        %v2026 = vadd.f32 %v2012, %v2025
        %v2027 = vpop.f32.mrf.mxu0
        %v2028 = vadd.f32 %v2014, %v2027
        %2029 = vdwg.mxu0
        %v2030 = vadd.f32 %v1528, %v1984
        %v2031 = vadd.f32 %v1570, %v2026
        %v2032 = vadd.f32 %v1530, %v1986
        %v2033 = vadd.f32 %v1572, %v2028
        %s2034 = scalar_lea.vmem %s7, 48
        %v2035 = vld [vmem:[%s2034] sm:$0xff]
        %v2036 = vld [vmem:[%s2034 + $0x8] sm:$0xff]
        %v2037 = vmul.f32 %v2035, %v664
        %v2038 = vmul.f32 %v2036, %v664
        %v2040 = vsel %vm667, %v2037, 0
        %v2043 = vsel %vm667, %v2038, 0
        %2045 = vmatpush.msra.mxu0 0.0
        %2046 = vmatpush.msra.mxu0 0.0
        %2047 = vmatpush.msra.mxu0 0.0
        %2048 = vmatpush.msra.mxu0 0.0
        %2049 = vmatpush.msra.mxu0 0.0
        %2050 = vmatpush.msra.mxu0 0.0
        %2051 = vmatpush.msra.mxu0 0.0
        %2052 = vmatpush.msra.mxu0 0.0
        %2053 = vmatpush.msra.mxu0 %v440
        %2054 = vmatpush.msra.mxu0 %v437
        %2055 = vmatpush.msra.mxu0 %v434
        %2056 = vmatpush.msra.mxu0 %v431
        %2057 = vmatpush.msra.mxu0 %v428
        %2058 = vmatpush.msra.mxu0 %v425
        %2059 = vmatpush.msra.mxu0 %v422
        %2060 = vmatpush.msra.mxu0 %v419
        %2061 = vmatmul.f32.gmra.mxu0 %v2040
        %v2062 = vpop.f32.mrf.mxu0
        %v2063 = vadd.f32 0.0, %v2062
        %2064 = vmatmul.f32.gmra.mxu0 %v2043
        %v2065 = vpop.f32.mrf.mxu0
        %v2066 = vadd.f32 0.0, %v2065
        %2067 = vdwg.mxu0
        %2068 = vmatpush.msra.mxu0 0.0
        %2069 = vmatpush.msra.mxu0 0.0
        %2070 = vmatpush.msra.mxu0 0.0
        %2071 = vmatpush.msra.mxu0 0.0
        %2072 = vmatpush.msra.mxu0 0.0
        %2073 = vmatpush.msra.mxu0 0.0
        %2074 = vmatpush.msra.mxu0 0.0
        %2075 = vmatpush.msra.mxu0 0.0
        %2076 = vmatpush.msra.mxu0 %v441
        %2077 = vmatpush.msra.mxu0 %v438
        %2078 = vmatpush.msra.mxu0 %v435
        %2079 = vmatpush.msra.mxu0 %v432
        %2080 = vmatpush.msra.mxu0 %v429
        %2081 = vmatpush.msra.mxu0 %v426
        %2082 = vmatpush.msra.mxu0 %v423
        %2083 = vmatpush.msra.mxu0 %v420
        %2084 = vmatmul.f32.gmra.mxu0 %v2040
        %v2085 = vpop.f32.mrf.mxu0
        %v2086 = vadd.f32 0.0, %v2085
        %2087 = vmatmul.f32.gmra.mxu0 %v2043
        %v2088 = vpop.f32.mrf.mxu0
        %v2089 = vadd.f32 0.0, %v2088
        %2090 = vdwg.mxu0
        %2091 = vmatpush.msra.mxu0 0.0
        %2092 = vmatpush.msra.mxu0 0.0
        %2093 = vmatpush.msra.mxu0 0.0
        %2094 = vmatpush.msra.mxu0 0.0
        %2095 = vmatpush.msra.mxu0 0.0
        %2096 = vmatpush.msra.mxu0 0.0
        %2097 = vmatpush.msra.mxu0 0.0
        %2098 = vmatpush.msra.mxu0 0.0
        %2099 = vmatpush.msra.mxu0 %v442
        %2100 = vmatpush.msra.mxu0 %v439
        %2101 = vmatpush.msra.mxu0 %v436
        %2102 = vmatpush.msra.mxu0 %v433
        %2103 = vmatpush.msra.mxu0 %v430
        %2104 = vmatpush.msra.mxu0 %v427
        %2105 = vmatpush.msra.mxu0 %v424
        %2106 = vmatpush.msra.mxu0 %v421
        %2107 = vmatmul.f32.gmra.mxu0 %v2040
        %v2108 = vpop.f32.mrf.mxu0
        %v2109 = vadd.f32 0.0, %v2108
        %2110 = vmatmul.f32.gmra.mxu0 %v2043
        %v2111 = vpop.f32.mrf.mxu0
        %v2112 = vadd.f32 0.0, %v2111
        %2113 = vdwg.mxu0
        %v2114 = vpack.c.bf16 %v2066, %v2063
        %v2115 = vpack.c.bf16 %v2089, %v2086
        %v2116 = vpack.c.bf16 %v2112, %v2109
        %s2117 = scalar_lea.vmem %s8, 1152
        %v2118 = vld [vmem:[%s2117] sm:$0xff]
        %v2119 = vld [vmem:[%s2117 + $0x8] sm:$0xff]
        %v2120 = vld [vmem:[%s2117 + $0x10] sm:$0xff]
        %v2121 = vld [vmem:[%s2117 + $0x18] sm:$0xff]
        %v2122 = vld [vmem:[%s2117 + $0x20] sm:$0xff]
        %v2123 = vld [vmem:[%s2117 + $0x28] sm:$0xff]
        %v2124 = vld [vmem:[%s2117 + $0x30] sm:$0xff]
        %v2125 = vld [vmem:[%s2117 + $0x38] sm:$0xff]
        %v2126 = vld [vmem:[%s2117 + $0x40] sm:$0xff]
        %v2127 = vld [vmem:[%s2117 + $0x48] sm:$0xff]
        %v2128 = vld [vmem:[%s2117 + $0x50] sm:$0xff]
        %v2129 = vld [vmem:[%s2117 + $0x58] sm:$0xff]
        %v2130 = vld [vmem:[%s2117 + $0x60] sm:$0xff]
        %v2131 = vld [vmem:[%s2117 + $0x68] sm:$0xff]
        %v2132 = vld [vmem:[%s2117 + $0x70] sm:$0xff]
        %v2133 = vld [vmem:[%s2117 + $0x78] sm:$0xff]
        %v2134 = vld [vmem:[%s2117 + $0x80] sm:$0xff]
        %v2135 = vld [vmem:[%s2117 + $0x88] sm:$0xff]
        %v2136 = vld [vmem:[%s2117 + $0x90] sm:$0xff]
        %v2137 = vld [vmem:[%s2117 + $0x98] sm:$0xff]
        %v2138 = vld [vmem:[%s2117 + $0xa0] sm:$0xff]
        %v2139 = vld [vmem:[%s2117 + $0xa8] sm:$0xff]
        %v2140 = vld [vmem:[%s2117 + $0xb0] sm:$0xff]
        %v2141 = vld [vmem:[%s2117 + $0xb8] sm:$0xff]
        %v2142 = vld [vmem:[%s2117 + $0xc0] sm:$0xff]
        %v2143 = vld [vmem:[%s2117 + $0xc8] sm:$0xff]
        %v2144 = vld [vmem:[%s2117 + $0xd0] sm:$0xff]
        %v2145 = vld [vmem:[%s2117 + $0xd8] sm:$0xff]
        %v2146 = vld [vmem:[%s2117 + $0xe0] sm:$0xff]
        %v2147 = vld [vmem:[%s2117 + $0xe8] sm:$0xff]
        %v2148 = vld [vmem:[%s2117 + $0xf0] sm:$0xff]
        %v2149 = vld [vmem:[%s2117 + $0xf8] sm:$0xff]
        %v2150 = vld [vmem:[%s2117 + $0x100] sm:$0xff]
        %v2151 = vld [vmem:[%s2117 + $0x108] sm:$0xff]
        %v2152 = vld [vmem:[%s2117 + $0x110] sm:$0xff]
        %v2153 = vld [vmem:[%s2117 + $0x118] sm:$0xff]
        %v2154 = vld [vmem:[%s2117 + $0x120] sm:$0xff]
        %v2155 = vld [vmem:[%s2117 + $0x128] sm:$0xff]
        %v2156 = vld [vmem:[%s2117 + $0x130] sm:$0xff]
        %v2157 = vld [vmem:[%s2117 + $0x138] sm:$0xff]
        %v2158 = vld [vmem:[%s2117 + $0x140] sm:$0xff]
        %v2159 = vld [vmem:[%s2117 + $0x148] sm:$0xff]
        %v2160 = vld [vmem:[%s2117 + $0x150] sm:$0xff]
        %v2161 = vld [vmem:[%s2117 + $0x158] sm:$0xff]
        %v2162 = vld [vmem:[%s2117 + $0x160] sm:$0xff]
        %v2163 = vld [vmem:[%s2117 + $0x168] sm:$0xff]
        %v2164 = vld [vmem:[%s2117 + $0x170] sm:$0xff]
        %v2165 = vld [vmem:[%s2117 + $0x178] sm:$0xff]
        %v2214 = vunpack.c.l.b16 %v2118
        %v2215 = vunpack.c.h.b16 %v2118
        %v2216 = vunpack.c.l.b16 %v2119
        %v2217 = vunpack.c.h.b16 %v2119
        %v2218 = vunpack.c.l.b16 %v2120
        %v2219 = vunpack.c.h.b16 %v2120
        %v2220 = vunpack.c.l.b16 %v2121
        %v2221 = vunpack.c.h.b16 %v2121
        %v2222 = vunpack.c.l.b16 %v2122
        %v2223 = vunpack.c.h.b16 %v2122
        %v2224 = vunpack.c.l.b16 %v2123
        %v2225 = vunpack.c.h.b16 %v2123
        %v2226 = vunpack.c.l.b16 %v2124
        %v2227 = vunpack.c.h.b16 %v2124
        %v2228 = vunpack.c.l.b16 %v2125
        %v2229 = vunpack.c.h.b16 %v2125
        %v2230 = vunpack.c.l.b16 %v2126
        %v2231 = vunpack.c.h.b16 %v2126
        %v2232 = vunpack.c.l.b16 %v2127
        %v2233 = vunpack.c.h.b16 %v2127
        %v2234 = vunpack.c.l.b16 %v2128
        %v2235 = vunpack.c.h.b16 %v2128
        %v2236 = vunpack.c.l.b16 %v2129
        %v2237 = vunpack.c.h.b16 %v2129
        %v2238 = vunpack.c.l.b16 %v2130
        %v2239 = vunpack.c.h.b16 %v2130
        %v2240 = vunpack.c.l.b16 %v2131
        %v2241 = vunpack.c.h.b16 %v2131
        %v2242 = vunpack.c.l.b16 %v2132
        %v2243 = vunpack.c.h.b16 %v2132
        %v2244 = vunpack.c.l.b16 %v2133
        %v2245 = vunpack.c.h.b16 %v2133
        %v2246 = vunpack.c.l.b16 %v2134
        %v2247 = vunpack.c.h.b16 %v2134
        %v2248 = vunpack.c.l.b16 %v2135
        %v2249 = vunpack.c.h.b16 %v2135
        %v2250 = vunpack.c.l.b16 %v2136
        %v2251 = vunpack.c.h.b16 %v2136
        %v2252 = vunpack.c.l.b16 %v2137
        %v2253 = vunpack.c.h.b16 %v2137
        %v2254 = vunpack.c.l.b16 %v2138
        %v2255 = vunpack.c.h.b16 %v2138
        %v2256 = vunpack.c.l.b16 %v2139
        %v2257 = vunpack.c.h.b16 %v2139
        %v2258 = vunpack.c.l.b16 %v2140
        %v2259 = vunpack.c.h.b16 %v2140
        %v2260 = vunpack.c.l.b16 %v2141
        %v2261 = vunpack.c.h.b16 %v2141
        %v2262 = vunpack.c.l.b16 %v2142
        %v2263 = vunpack.c.h.b16 %v2142
        %v2264 = vunpack.c.l.b16 %v2143
        %v2265 = vunpack.c.h.b16 %v2143
        %v2266 = vunpack.c.l.b16 %v2144
        %v2267 = vunpack.c.h.b16 %v2144
        %v2268 = vunpack.c.l.b16 %v2145
        %v2269 = vunpack.c.h.b16 %v2145
        %v2270 = vunpack.c.l.b16 %v2146
        %v2271 = vunpack.c.h.b16 %v2146
        %v2272 = vunpack.c.l.b16 %v2147
        %v2273 = vunpack.c.h.b16 %v2147
        %v2274 = vunpack.c.l.b16 %v2148
        %v2275 = vunpack.c.h.b16 %v2148
        %v2276 = vunpack.c.l.b16 %v2149
        %v2277 = vunpack.c.h.b16 %v2149
        %v2278 = vunpack.c.l.b16 %v2150
        %v2279 = vunpack.c.h.b16 %v2150
        %v2280 = vunpack.c.l.b16 %v2151
        %v2281 = vunpack.c.h.b16 %v2151
        %v2282 = vunpack.c.l.b16 %v2152
        %v2283 = vunpack.c.h.b16 %v2152
        %v2284 = vunpack.c.l.b16 %v2153
        %v2285 = vunpack.c.h.b16 %v2153
        %v2286 = vunpack.c.l.b16 %v2154
        %v2287 = vunpack.c.h.b16 %v2154
        %v2288 = vunpack.c.l.b16 %v2155
        %v2289 = vunpack.c.h.b16 %v2155
        %v2290 = vunpack.c.l.b16 %v2156
        %v2291 = vunpack.c.h.b16 %v2156
        %v2292 = vunpack.c.l.b16 %v2157
        %v2293 = vunpack.c.h.b16 %v2157
        %v2294 = vunpack.c.l.b16 %v2158
        %v2295 = vunpack.c.h.b16 %v2158
        %v2296 = vunpack.c.l.b16 %v2159
        %v2297 = vunpack.c.h.b16 %v2159
        %v2298 = vunpack.c.l.b16 %v2160
        %v2299 = vunpack.c.h.b16 %v2160
        %v2300 = vunpack.c.l.b16 %v2161
        %v2301 = vunpack.c.h.b16 %v2161
        %v2302 = vunpack.c.l.b16 %v2162
        %v2303 = vunpack.c.h.b16 %v2162
        %v2304 = vunpack.c.l.b16 %v2163
        %v2305 = vunpack.c.h.b16 %v2163
        %v2306 = vunpack.c.l.b16 %v2164
        %v2307 = vunpack.c.h.b16 %v2164
        %v2308 = vunpack.c.l.b16 %v2165
        %v2309 = vunpack.c.h.b16 %v2165
        %v2310 = vpack.c.b16 %v2216, %v2214
        %v2311 = vpack.c.b16 %v2217, %v2215
        %v2312 = vpack.c.b16 %v2220, %v2218
        %v2313 = vpack.c.b16 %v2221, %v2219
        %v2314 = vpack.c.b16 %v2224, %v2222
        %v2315 = vpack.c.b16 %v2225, %v2223
        %v2316 = vpack.c.b16 %v2228, %v2226
        %v2317 = vpack.c.b16 %v2229, %v2227
        %v2318 = vpack.c.b16 %v2232, %v2230
        %v2319 = vpack.c.b16 %v2233, %v2231
        %v2320 = vpack.c.b16 %v2236, %v2234
        %v2321 = vpack.c.b16 %v2237, %v2235
        %v2322 = vpack.c.b16 %v2240, %v2238
        %v2323 = vpack.c.b16 %v2241, %v2239
        %v2324 = vpack.c.b16 %v2244, %v2242
        %v2325 = vpack.c.b16 %v2245, %v2243
        %v2326 = vpack.c.b16 %v2248, %v2246
        %v2327 = vpack.c.b16 %v2249, %v2247
        %v2328 = vpack.c.b16 %v2252, %v2250
        %v2329 = vpack.c.b16 %v2253, %v2251
        %v2330 = vpack.c.b16 %v2256, %v2254
        %v2331 = vpack.c.b16 %v2257, %v2255
        %v2332 = vpack.c.b16 %v2260, %v2258
        %v2333 = vpack.c.b16 %v2261, %v2259
        %v2334 = vpack.c.b16 %v2264, %v2262
        %v2335 = vpack.c.b16 %v2265, %v2263
        %v2336 = vpack.c.b16 %v2268, %v2266
        %v2337 = vpack.c.b16 %v2269, %v2267
        %v2338 = vpack.c.b16 %v2272, %v2270
        %v2339 = vpack.c.b16 %v2273, %v2271
        %v2340 = vpack.c.b16 %v2276, %v2274
        %v2341 = vpack.c.b16 %v2277, %v2275
        %v2342 = vpack.c.b16 %v2280, %v2278
        %v2343 = vpack.c.b16 %v2281, %v2279
        %v2344 = vpack.c.b16 %v2284, %v2282
        %v2345 = vpack.c.b16 %v2285, %v2283
        %v2346 = vpack.c.b16 %v2288, %v2286
        %v2347 = vpack.c.b16 %v2289, %v2287
        %v2348 = vpack.c.b16 %v2292, %v2290
        %v2349 = vpack.c.b16 %v2293, %v2291
        %v2350 = vpack.c.b16 %v2296, %v2294
        %v2351 = vpack.c.b16 %v2297, %v2295
        %v2352 = vpack.c.b16 %v2300, %v2298
        %v2353 = vpack.c.b16 %v2301, %v2299
        %v2354 = vpack.c.b16 %v2304, %v2302
        %v2355 = vpack.c.b16 %v2305, %v2303
        %v2356 = vpack.c.b16 %v2308, %v2306
        %v2357 = vpack.c.b16 %v2309, %v2307
        %2406 = vmatpush.bf16.msra.mxu0 %v2324
        %2407 = vmatpush.bf16.msra.mxu0 %v2322
        %2408 = vmatpush.bf16.msra.mxu0 %v2320
        %2409 = vmatpush.bf16.msra.mxu0 %v2318
        %2410 = vmatpush.bf16.msra.mxu0 %v2316
        %2411 = vmatpush.bf16.msra.mxu0 %v2314
        %2412 = vmatpush.bf16.msra.mxu0 %v2312
        %2413 = vmatpush.bf16.msra.mxu0 %v2310
        %2414 = vmatmul.bf16.gmra.mxu0 %v2114
        %v2415 = vpop.f32.mrf.mxu0
        %v2416 = vadd.f32 0.0, %v2415
        %v2417 = vpop.f32.mrf.mxu0
        %v2418 = vadd.f32 0.0, %v2417
        %2419 = vdwg.mxu0
        %2420 = vmatpush.bf16.msra.mxu0 %v2340
        %2421 = vmatpush.bf16.msra.mxu0 %v2338
        %2422 = vmatpush.bf16.msra.mxu0 %v2336
        %2423 = vmatpush.bf16.msra.mxu0 %v2334
        %2424 = vmatpush.bf16.msra.mxu0 %v2332
        %2425 = vmatpush.bf16.msra.mxu0 %v2330
        %2426 = vmatpush.bf16.msra.mxu0 %v2328
        %2427 = vmatpush.bf16.msra.mxu0 %v2326
        %2428 = vmatmul.bf16.gmra.mxu0 %v2115
        %v2429 = vpop.f32.mrf.mxu0
        %v2430 = vadd.f32 %v2416, %v2429
        %v2431 = vpop.f32.mrf.mxu0
        %v2432 = vadd.f32 %v2418, %v2431
        %2433 = vdwg.mxu0
        %2434 = vmatpush.bf16.msra.mxu0 %v2356
        %2435 = vmatpush.bf16.msra.mxu0 %v2354
        %2436 = vmatpush.bf16.msra.mxu0 %v2352
        %2437 = vmatpush.bf16.msra.mxu0 %v2350
        %2438 = vmatpush.bf16.msra.mxu0 %v2348
        %2439 = vmatpush.bf16.msra.mxu0 %v2346
        %2440 = vmatpush.bf16.msra.mxu0 %v2344
        %2441 = vmatpush.bf16.msra.mxu0 %v2342
        %2442 = vmatmul.bf16.gmra.mxu0 %v2116
        %v2443 = vpop.f32.mrf.mxu0
        %v2444 = vadd.f32 %v2430, %v2443
        %v2445 = vpop.f32.mrf.mxu0
        %v2446 = vadd.f32 %v2432, %v2445
        %2447 = vdwg.mxu0
        %2448 = vmatpush.bf16.msra.mxu0 %v2325
        %2449 = vmatpush.bf16.msra.mxu0 %v2323
        %2450 = vmatpush.bf16.msra.mxu0 %v2321
        %2451 = vmatpush.bf16.msra.mxu0 %v2319
        %2452 = vmatpush.bf16.msra.mxu0 %v2317
        %2453 = vmatpush.bf16.msra.mxu0 %v2315
        %2454 = vmatpush.bf16.msra.mxu0 %v2313
        %2455 = vmatpush.bf16.msra.mxu0 %v2311
        %2456 = vmatmul.bf16.gmra.mxu0 %v2114
        %v2457 = vpop.f32.mrf.mxu0
        %v2458 = vadd.f32 0.0, %v2457
        %v2459 = vpop.f32.mrf.mxu0
        %v2460 = vadd.f32 0.0, %v2459
        %2461 = vdwg.mxu0
        %2462 = vmatpush.bf16.msra.mxu0 %v2341
        %2463 = vmatpush.bf16.msra.mxu0 %v2339
        %2464 = vmatpush.bf16.msra.mxu0 %v2337
        %2465 = vmatpush.bf16.msra.mxu0 %v2335
        %2466 = vmatpush.bf16.msra.mxu0 %v2333
        %2467 = vmatpush.bf16.msra.mxu0 %v2331
        %2468 = vmatpush.bf16.msra.mxu0 %v2329
        %2469 = vmatpush.bf16.msra.mxu0 %v2327
        %2470 = vmatmul.bf16.gmra.mxu0 %v2115
        %v2471 = vpop.f32.mrf.mxu0
        %v2472 = vadd.f32 %v2458, %v2471
        %v2473 = vpop.f32.mrf.mxu0
        %v2474 = vadd.f32 %v2460, %v2473
        %2475 = vdwg.mxu0
        %2476 = vmatpush.bf16.msra.mxu0 %v2357
        %2477 = vmatpush.bf16.msra.mxu0 %v2355
        %2478 = vmatpush.bf16.msra.mxu0 %v2353
        %2479 = vmatpush.bf16.msra.mxu0 %v2351
        %2480 = vmatpush.bf16.msra.mxu0 %v2349
        %2481 = vmatpush.bf16.msra.mxu0 %v2347
        %2482 = vmatpush.bf16.msra.mxu0 %v2345
        %2483 = vmatpush.bf16.msra.mxu0 %v2343
        %2484 = vmatmul.bf16.gmra.mxu0 %v2116
        %v2485 = vpop.f32.mrf.mxu0
        %v2486 = vadd.f32 %v2472, %v2485
        %v2487 = vpop.f32.mrf.mxu0
        %v2488 = vadd.f32 %v2474, %v2487
        %2489 = vdwg.mxu0
        %v2490 = vadd.f32 %v2030, %v2444
        %v2491 = vadd.f32 %v2031, %v2486
        %v2492 = vadd.f32 %v2032, %v2446
        %v2493 = vadd.f32 %v2033, %v2488
        %s2494 = scalar_lea.vmem %s7, 64
        %v2495 = vld [vmem:[%s2494] sm:$0xff]
        %v2496 = vld [vmem:[%s2494 + $0x8] sm:$0xff]
        %v2497 = vmul.f32 %v2495, %v664
        %v2498 = vmul.f32 %v2496, %v664
        %v2500 = vsel %vm667, %v2497, 0
        %v2503 = vsel %vm667, %v2498, 0
        %2505 = vmatpush.msra.mxu0 0.0
        %2506 = vmatpush.msra.mxu0 0.0
        %2507 = vmatpush.msra.mxu0 0.0
        %2508 = vmatpush.msra.mxu0 0.0
        %2509 = vmatpush.msra.mxu0 0.0
        %2510 = vmatpush.msra.mxu0 0.0
        %2511 = vmatpush.msra.mxu0 0.0
        %2512 = vmatpush.msra.mxu0 0.0
        %2513 = vmatpush.msra.mxu0 %v440
        %2514 = vmatpush.msra.mxu0 %v437
        %2515 = vmatpush.msra.mxu0 %v434
        %2516 = vmatpush.msra.mxu0 %v431
        %2517 = vmatpush.msra.mxu0 %v428
        %2518 = vmatpush.msra.mxu0 %v425
        %2519 = vmatpush.msra.mxu0 %v422
        %2520 = vmatpush.msra.mxu0 %v419
        %2521 = vmatmul.f32.gmra.mxu0 %v2500
        %v2522 = vpop.f32.mrf.mxu0
        %v2523 = vadd.f32 0.0, %v2522
        %2524 = vmatmul.f32.gmra.mxu0 %v2503
        %v2525 = vpop.f32.mrf.mxu0
        %v2526 = vadd.f32 0.0, %v2525
        %2527 = vdwg.mxu0
        %2528 = vmatpush.msra.mxu0 0.0
        %2529 = vmatpush.msra.mxu0 0.0
        %2530 = vmatpush.msra.mxu0 0.0
        %2531 = vmatpush.msra.mxu0 0.0
        %2532 = vmatpush.msra.mxu0 0.0
        %2533 = vmatpush.msra.mxu0 0.0
        %2534 = vmatpush.msra.mxu0 0.0
        %2535 = vmatpush.msra.mxu0 0.0
        %2536 = vmatpush.msra.mxu0 %v441
        %2537 = vmatpush.msra.mxu0 %v438
        %2538 = vmatpush.msra.mxu0 %v435
        %2539 = vmatpush.msra.mxu0 %v432
        %2540 = vmatpush.msra.mxu0 %v429
        %2541 = vmatpush.msra.mxu0 %v426
        %2542 = vmatpush.msra.mxu0 %v423
        %2543 = vmatpush.msra.mxu0 %v420
        %2544 = vmatmul.f32.gmra.mxu0 %v2500
        %v2545 = vpop.f32.mrf.mxu0
        %v2546 = vadd.f32 0.0, %v2545
        %2547 = vmatmul.f32.gmra.mxu0 %v2503
        %v2548 = vpop.f32.mrf.mxu0
        %v2549 = vadd.f32 0.0, %v2548
        %2550 = vdwg.mxu0
        %2551 = vmatpush.msra.mxu0 0.0
        %2552 = vmatpush.msra.mxu0 0.0
        %2553 = vmatpush.msra.mxu0 0.0
        %2554 = vmatpush.msra.mxu0 0.0
        %2555 = vmatpush.msra.mxu0 0.0
        %2556 = vmatpush.msra.mxu0 0.0
        %2557 = vmatpush.msra.mxu0 0.0
        %2558 = vmatpush.msra.mxu0 0.0
        %2559 = vmatpush.msra.mxu0 %v442
        %2560 = vmatpush.msra.mxu0 %v439
        %2561 = vmatpush.msra.mxu0 %v436
        %2562 = vmatpush.msra.mxu0 %v433
        %2563 = vmatpush.msra.mxu0 %v430
        %2564 = vmatpush.msra.mxu0 %v427
        %2565 = vmatpush.msra.mxu0 %v424
        %2566 = vmatpush.msra.mxu0 %v421
        %2567 = vmatmul.f32.gmra.mxu0 %v2500
        %v2568 = vpop.f32.mrf.mxu0
        %v2569 = vadd.f32 0.0, %v2568
        %2570 = vmatmul.f32.gmra.mxu0 %v2503
        %v2571 = vpop.f32.mrf.mxu0
        %v2572 = vadd.f32 0.0, %v2571
        %2573 = vdwg.mxu0
        %v2574 = vpack.c.bf16 %v2526, %v2523
        %v2575 = vpack.c.bf16 %v2549, %v2546
        %v2576 = vpack.c.bf16 %v2572, %v2569
        %s2577 = scalar_lea.vmem %s8, 1536
        %v2578 = vld [vmem:[%s2577] sm:$0xff]
        %v2579 = vld [vmem:[%s2577 + $0x8] sm:$0xff]
        %v2580 = vld [vmem:[%s2577 + $0x10] sm:$0xff]
        %v2581 = vld [vmem:[%s2577 + $0x18] sm:$0xff]
        %v2582 = vld [vmem:[%s2577 + $0x20] sm:$0xff]
        %v2583 = vld [vmem:[%s2577 + $0x28] sm:$0xff]
        %v2584 = vld [vmem:[%s2577 + $0x30] sm:$0xff]
        %v2585 = vld [vmem:[%s2577 + $0x38] sm:$0xff]
        %v2586 = vld [vmem:[%s2577 + $0x40] sm:$0xff]
        %v2587 = vld [vmem:[%s2577 + $0x48] sm:$0xff]
        %v2588 = vld [vmem:[%s2577 + $0x50] sm:$0xff]
        %v2589 = vld [vmem:[%s2577 + $0x58] sm:$0xff]
        %v2590 = vld [vmem:[%s2577 + $0x60] sm:$0xff]
        %v2591 = vld [vmem:[%s2577 + $0x68] sm:$0xff]
        %v2592 = vld [vmem:[%s2577 + $0x70] sm:$0xff]
        %v2593 = vld [vmem:[%s2577 + $0x78] sm:$0xff]
        %v2594 = vld [vmem:[%s2577 + $0x80] sm:$0xff]
        %v2595 = vld [vmem:[%s2577 + $0x88] sm:$0xff]
        %v2596 = vld [vmem:[%s2577 + $0x90] sm:$0xff]
        %v2597 = vld [vmem:[%s2577 + $0x98] sm:$0xff]
        %v2598 = vld [vmem:[%s2577 + $0xa0] sm:$0xff]
        %v2599 = vld [vmem:[%s2577 + $0xa8] sm:$0xff]
        %v2600 = vld [vmem:[%s2577 + $0xb0] sm:$0xff]
        %v2601 = vld [vmem:[%s2577 + $0xb8] sm:$0xff]
        %v2602 = vld [vmem:[%s2577 + $0xc0] sm:$0xff]
        %v2603 = vld [vmem:[%s2577 + $0xc8] sm:$0xff]
        %v2604 = vld [vmem:[%s2577 + $0xd0] sm:$0xff]
        %v2605 = vld [vmem:[%s2577 + $0xd8] sm:$0xff]
        %v2606 = vld [vmem:[%s2577 + $0xe0] sm:$0xff]
        %v2607 = vld [vmem:[%s2577 + $0xe8] sm:$0xff]
        %v2608 = vld [vmem:[%s2577 + $0xf0] sm:$0xff]
        %v2609 = vld [vmem:[%s2577 + $0xf8] sm:$0xff]
        %v2610 = vld [vmem:[%s2577 + $0x100] sm:$0xff]
        %v2611 = vld [vmem:[%s2577 + $0x108] sm:$0xff]
        %v2612 = vld [vmem:[%s2577 + $0x110] sm:$0xff]
        %v2613 = vld [vmem:[%s2577 + $0x118] sm:$0xff]
        %v2614 = vld [vmem:[%s2577 + $0x120] sm:$0xff]
        %v2615 = vld [vmem:[%s2577 + $0x128] sm:$0xff]
        %v2616 = vld [vmem:[%s2577 + $0x130] sm:$0xff]
        %v2617 = vld [vmem:[%s2577 + $0x138] sm:$0xff]
        %v2618 = vld [vmem:[%s2577 + $0x140] sm:$0xff]
        %v2619 = vld [vmem:[%s2577 + $0x148] sm:$0xff]
        %v2620 = vld [vmem:[%s2577 + $0x150] sm:$0xff]
        %v2621 = vld [vmem:[%s2577 + $0x158] sm:$0xff]
        %v2622 = vld [vmem:[%s2577 + $0x160] sm:$0xff]
        %v2623 = vld [vmem:[%s2577 + $0x168] sm:$0xff]
        %v2624 = vld [vmem:[%s2577 + $0x170] sm:$0xff]
        %v2625 = vld [vmem:[%s2577 + $0x178] sm:$0xff]
        %v2674 = vunpack.c.l.b16 %v2578
        %v2675 = vunpack.c.h.b16 %v2578
        %v2676 = vunpack.c.l.b16 %v2579
        %v2677 = vunpack.c.h.b16 %v2579
        %v2678 = vunpack.c.l.b16 %v2580
        %v2679 = vunpack.c.h.b16 %v2580
        %v2680 = vunpack.c.l.b16 %v2581
        %v2681 = vunpack.c.h.b16 %v2581
        %v2682 = vunpack.c.l.b16 %v2582
        %v2683 = vunpack.c.h.b16 %v2582
        %v2684 = vunpack.c.l.b16 %v2583
        %v2685 = vunpack.c.h.b16 %v2583
        %v2686 = vunpack.c.l.b16 %v2584
        %v2687 = vunpack.c.h.b16 %v2584
        %v2688 = vunpack.c.l.b16 %v2585
        %v2689 = vunpack.c.h.b16 %v2585
        %v2690 = vunpack.c.l.b16 %v2586
        %v2691 = vunpack.c.h.b16 %v2586
        %v2692 = vunpack.c.l.b16 %v2587
        %v2693 = vunpack.c.h.b16 %v2587
        %v2694 = vunpack.c.l.b16 %v2588
        %v2695 = vunpack.c.h.b16 %v2588
        %v2696 = vunpack.c.l.b16 %v2589
        %v2697 = vunpack.c.h.b16 %v2589
        %v2698 = vunpack.c.l.b16 %v2590
        %v2699 = vunpack.c.h.b16 %v2590
        %v2700 = vunpack.c.l.b16 %v2591
        %v2701 = vunpack.c.h.b16 %v2591
        %v2702 = vunpack.c.l.b16 %v2592
        %v2703 = vunpack.c.h.b16 %v2592
        %v2704 = vunpack.c.l.b16 %v2593
        %v2705 = vunpack.c.h.b16 %v2593
        %v2706 = vunpack.c.l.b16 %v2594
        %v2707 = vunpack.c.h.b16 %v2594
        %v2708 = vunpack.c.l.b16 %v2595
        %v2709 = vunpack.c.h.b16 %v2595
        %v2710 = vunpack.c.l.b16 %v2596
        %v2711 = vunpack.c.h.b16 %v2596
        %v2712 = vunpack.c.l.b16 %v2597
        %v2713 = vunpack.c.h.b16 %v2597
        %v2714 = vunpack.c.l.b16 %v2598
        %v2715 = vunpack.c.h.b16 %v2598
        %v2716 = vunpack.c.l.b16 %v2599
        %v2717 = vunpack.c.h.b16 %v2599
        %v2718 = vunpack.c.l.b16 %v2600
        %v2719 = vunpack.c.h.b16 %v2600
        %v2720 = vunpack.c.l.b16 %v2601
        %v2721 = vunpack.c.h.b16 %v2601
        %v2722 = vunpack.c.l.b16 %v2602
        %v2723 = vunpack.c.h.b16 %v2602
        %v2724 = vunpack.c.l.b16 %v2603
        %v2725 = vunpack.c.h.b16 %v2603
        %v2726 = vunpack.c.l.b16 %v2604
        %v2727 = vunpack.c.h.b16 %v2604
        %v2728 = vunpack.c.l.b16 %v2605
        %v2729 = vunpack.c.h.b16 %v2605
        %v2730 = vunpack.c.l.b16 %v2606
        %v2731 = vunpack.c.h.b16 %v2606
        %v2732 = vunpack.c.l.b16 %v2607
        %v2733 = vunpack.c.h.b16 %v2607
        %v2734 = vunpack.c.l.b16 %v2608
        %v2735 = vunpack.c.h.b16 %v2608
        %v2736 = vunpack.c.l.b16 %v2609
        %v2737 = vunpack.c.h.b16 %v2609
        %v2738 = vunpack.c.l.b16 %v2610
        %v2739 = vunpack.c.h.b16 %v2610
        %v2740 = vunpack.c.l.b16 %v2611
        %v2741 = vunpack.c.h.b16 %v2611
        %v2742 = vunpack.c.l.b16 %v2612
        %v2743 = vunpack.c.h.b16 %v2612
        %v2744 = vunpack.c.l.b16 %v2613
        %v2745 = vunpack.c.h.b16 %v2613
        %v2746 = vunpack.c.l.b16 %v2614
        %v2747 = vunpack.c.h.b16 %v2614
        %v2748 = vunpack.c.l.b16 %v2615
        %v2749 = vunpack.c.h.b16 %v2615
        %v2750 = vunpack.c.l.b16 %v2616
        %v2751 = vunpack.c.h.b16 %v2616
        %v2752 = vunpack.c.l.b16 %v2617
        %v2753 = vunpack.c.h.b16 %v2617
        %v2754 = vunpack.c.l.b16 %v2618
        %v2755 = vunpack.c.h.b16 %v2618
        %v2756 = vunpack.c.l.b16 %v2619
        %v2757 = vunpack.c.h.b16 %v2619
        %v2758 = vunpack.c.l.b16 %v2620
        %v2759 = vunpack.c.h.b16 %v2620
        %v2760 = vunpack.c.l.b16 %v2621
        %v2761 = vunpack.c.h.b16 %v2621
        %v2762 = vunpack.c.l.b16 %v2622
        %v2763 = vunpack.c.h.b16 %v2622
        %v2764 = vunpack.c.l.b16 %v2623
        %v2765 = vunpack.c.h.b16 %v2623
        %v2766 = vunpack.c.l.b16 %v2624
        %v2767 = vunpack.c.h.b16 %v2624
        %v2768 = vunpack.c.l.b16 %v2625
        %v2769 = vunpack.c.h.b16 %v2625
        %v2770 = vpack.c.b16 %v2676, %v2674
        %v2771 = vpack.c.b16 %v2677, %v2675
        %v2772 = vpack.c.b16 %v2680, %v2678
        %v2773 = vpack.c.b16 %v2681, %v2679
        %v2774 = vpack.c.b16 %v2684, %v2682
        %v2775 = vpack.c.b16 %v2685, %v2683
        %v2776 = vpack.c.b16 %v2688, %v2686
        %v2777 = vpack.c.b16 %v2689, %v2687
        %v2778 = vpack.c.b16 %v2692, %v2690
        %v2779 = vpack.c.b16 %v2693, %v2691
        %v2780 = vpack.c.b16 %v2696, %v2694
        %v2781 = vpack.c.b16 %v2697, %v2695
        %v2782 = vpack.c.b16 %v2700, %v2698
        %v2783 = vpack.c.b16 %v2701, %v2699
        %v2784 = vpack.c.b16 %v2704, %v2702
        %v2785 = vpack.c.b16 %v2705, %v2703
        %v2786 = vpack.c.b16 %v2708, %v2706
        %v2787 = vpack.c.b16 %v2709, %v2707
        %v2788 = vpack.c.b16 %v2712, %v2710
        %v2789 = vpack.c.b16 %v2713, %v2711
        %v2790 = vpack.c.b16 %v2716, %v2714
        %v2791 = vpack.c.b16 %v2717, %v2715
        %v2792 = vpack.c.b16 %v2720, %v2718
        %v2793 = vpack.c.b16 %v2721, %v2719
        %v2794 = vpack.c.b16 %v2724, %v2722
        %v2795 = vpack.c.b16 %v2725, %v2723
        %v2796 = vpack.c.b16 %v2728, %v2726
        %v2797 = vpack.c.b16 %v2729, %v2727
        %v2798 = vpack.c.b16 %v2732, %v2730
        %v2799 = vpack.c.b16 %v2733, %v2731
        %v2800 = vpack.c.b16 %v2736, %v2734
        %v2801 = vpack.c.b16 %v2737, %v2735
        %v2802 = vpack.c.b16 %v2740, %v2738
        %v2803 = vpack.c.b16 %v2741, %v2739
        %v2804 = vpack.c.b16 %v2744, %v2742
        %v2805 = vpack.c.b16 %v2745, %v2743
        %v2806 = vpack.c.b16 %v2748, %v2746
        %v2807 = vpack.c.b16 %v2749, %v2747
        %v2808 = vpack.c.b16 %v2752, %v2750
        %v2809 = vpack.c.b16 %v2753, %v2751
        %v2810 = vpack.c.b16 %v2756, %v2754
        %v2811 = vpack.c.b16 %v2757, %v2755
        %v2812 = vpack.c.b16 %v2760, %v2758
        %v2813 = vpack.c.b16 %v2761, %v2759
        %v2814 = vpack.c.b16 %v2764, %v2762
        %v2815 = vpack.c.b16 %v2765, %v2763
        %v2816 = vpack.c.b16 %v2768, %v2766
        %v2817 = vpack.c.b16 %v2769, %v2767
        %2866 = vmatpush.bf16.msra.mxu0 %v2784
        %2867 = vmatpush.bf16.msra.mxu0 %v2782
        %2868 = vmatpush.bf16.msra.mxu0 %v2780
        %2869 = vmatpush.bf16.msra.mxu0 %v2778
        %2870 = vmatpush.bf16.msra.mxu0 %v2776
        %2871 = vmatpush.bf16.msra.mxu0 %v2774
        %2872 = vmatpush.bf16.msra.mxu0 %v2772
        %2873 = vmatpush.bf16.msra.mxu0 %v2770
        %2874 = vmatmul.bf16.gmra.mxu0 %v2574
        %v2875 = vpop.f32.mrf.mxu0
        %v2876 = vadd.f32 0.0, %v2875
        %v2877 = vpop.f32.mrf.mxu0
        %v2878 = vadd.f32 0.0, %v2877
        %2879 = vdwg.mxu0
        %2880 = vmatpush.bf16.msra.mxu0 %v2800
        %2881 = vmatpush.bf16.msra.mxu0 %v2798
        %2882 = vmatpush.bf16.msra.mxu0 %v2796
        %2883 = vmatpush.bf16.msra.mxu0 %v2794
        %2884 = vmatpush.bf16.msra.mxu0 %v2792
        %2885 = vmatpush.bf16.msra.mxu0 %v2790
        %2886 = vmatpush.bf16.msra.mxu0 %v2788
        %2887 = vmatpush.bf16.msra.mxu0 %v2786
        %2888 = vmatmul.bf16.gmra.mxu0 %v2575
        %v2889 = vpop.f32.mrf.mxu0
        %v2890 = vadd.f32 %v2876, %v2889
        %v2891 = vpop.f32.mrf.mxu0
        %v2892 = vadd.f32 %v2878, %v2891
        %2893 = vdwg.mxu0
        %2894 = vmatpush.bf16.msra.mxu0 %v2816
        %2895 = vmatpush.bf16.msra.mxu0 %v2814
        %2896 = vmatpush.bf16.msra.mxu0 %v2812
        %2897 = vmatpush.bf16.msra.mxu0 %v2810
        %2898 = vmatpush.bf16.msra.mxu0 %v2808
        %2899 = vmatpush.bf16.msra.mxu0 %v2806
        %2900 = vmatpush.bf16.msra.mxu0 %v2804
        %2901 = vmatpush.bf16.msra.mxu0 %v2802
        %2902 = vmatmul.bf16.gmra.mxu0 %v2576
        %v2903 = vpop.f32.mrf.mxu0
        %v2904 = vadd.f32 %v2890, %v2903
        %v2905 = vpop.f32.mrf.mxu0
        %v2906 = vadd.f32 %v2892, %v2905
        %2907 = vdwg.mxu0
        %2908 = vmatpush.bf16.msra.mxu0 %v2785
        %2909 = vmatpush.bf16.msra.mxu0 %v2783
        %2910 = vmatpush.bf16.msra.mxu0 %v2781
        %2911 = vmatpush.bf16.msra.mxu0 %v2779
        %2912 = vmatpush.bf16.msra.mxu0 %v2777
        %2913 = vmatpush.bf16.msra.mxu0 %v2775
        %2914 = vmatpush.bf16.msra.mxu0 %v2773
        %2915 = vmatpush.bf16.msra.mxu0 %v2771
        %2916 = vmatmul.bf16.gmra.mxu0 %v2574
        %v2917 = vpop.f32.mrf.mxu0
        %v2918 = vadd.f32 0.0, %v2917
        %v2919 = vpop.f32.mrf.mxu0
        %v2920 = vadd.f32 0.0, %v2919
        %2921 = vdwg.mxu0
        %2922 = vmatpush.bf16.msra.mxu0 %v2801
        %2923 = vmatpush.bf16.msra.mxu0 %v2799
        %2924 = vmatpush.bf16.msra.mxu0 %v2797
        %2925 = vmatpush.bf16.msra.mxu0 %v2795
        %2926 = vmatpush.bf16.msra.mxu0 %v2793
        %2927 = vmatpush.bf16.msra.mxu0 %v2791
        %2928 = vmatpush.bf16.msra.mxu0 %v2789
        %2929 = vmatpush.bf16.msra.mxu0 %v2787
        %2930 = vmatmul.bf16.gmra.mxu0 %v2575
        %v2931 = vpop.f32.mrf.mxu0
        %v2932 = vadd.f32 %v2918, %v2931
        %v2933 = vpop.f32.mrf.mxu0
        %v2934 = vadd.f32 %v2920, %v2933
        %2935 = vdwg.mxu0
        %2936 = vmatpush.bf16.msra.mxu0 %v2817
        %2937 = vmatpush.bf16.msra.mxu0 %v2815
        %2938 = vmatpush.bf16.msra.mxu0 %v2813
        %2939 = vmatpush.bf16.msra.mxu0 %v2811
        %2940 = vmatpush.bf16.msra.mxu0 %v2809
        %2941 = vmatpush.bf16.msra.mxu0 %v2807
        %2942 = vmatpush.bf16.msra.mxu0 %v2805
        %2943 = vmatpush.bf16.msra.mxu0 %v2803
        %2944 = vmatmul.bf16.gmra.mxu0 %v2576
        %v2945 = vpop.f32.mrf.mxu0
        %v2946 = vadd.f32 %v2932, %v2945
        %v2947 = vpop.f32.mrf.mxu0
        %v2948 = vadd.f32 %v2934, %v2947
        %2949 = vdwg.mxu0
        %v2950 = vadd.f32 %v2490, %v2904
        %v2951 = vadd.f32 %v2491, %v2946
        %v2952 = vadd.f32 %v2492, %v2906
        %v2953 = vadd.f32 %v2493, %v2948
        %s2954 = scalar_lea.vmem %s7, 80
        %v2955 = vld [vmem:[%s2954] sm:$0xff]
        %v2956 = vld [vmem:[%s2954 + $0x8] sm:$0xff]
        %v2957 = vmul.f32 %v2955, %v664
        %v2958 = vmul.f32 %v2956, %v664
        %v2960 = vsel %vm667, %v2957, 0
        %v2963 = vsel %vm667, %v2958, 0
        %2965 = vmatpush.msra.mxu0 0.0
        %2966 = vmatpush.msra.mxu0 0.0
        %2967 = vmatpush.msra.mxu0 0.0
        %2968 = vmatpush.msra.mxu0 0.0
        %2969 = vmatpush.msra.mxu0 0.0
        %2970 = vmatpush.msra.mxu0 0.0
        %2971 = vmatpush.msra.mxu0 0.0
        %2972 = vmatpush.msra.mxu0 0.0
        %2973 = vmatpush.msra.mxu0 %v440
        %2974 = vmatpush.msra.mxu0 %v437
        %2975 = vmatpush.msra.mxu0 %v434
        %2976 = vmatpush.msra.mxu0 %v431
        %2977 = vmatpush.msra.mxu0 %v428
        %2978 = vmatpush.msra.mxu0 %v425
        %2979 = vmatpush.msra.mxu0 %v422
        %2980 = vmatpush.msra.mxu0 %v419
        %2981 = vmatmul.f32.gmra.mxu0 %v2960
        %v2982 = vpop.f32.mrf.mxu0
        %v2983 = vadd.f32 0.0, %v2982
        %2984 = vmatmul.f32.gmra.mxu0 %v2963
        %v2985 = vpop.f32.mrf.mxu0
        %v2986 = vadd.f32 0.0, %v2985
        %2987 = vdwg.mxu0
        %2988 = vmatpush.msra.mxu0 0.0
        %2989 = vmatpush.msra.mxu0 0.0
        %2990 = vmatpush.msra.mxu0 0.0
        %2991 = vmatpush.msra.mxu0 0.0
        %2992 = vmatpush.msra.mxu0 0.0
        %2993 = vmatpush.msra.mxu0 0.0
        %2994 = vmatpush.msra.mxu0 0.0
        %2995 = vmatpush.msra.mxu0 0.0
        %2996 = vmatpush.msra.mxu0 %v441
        %2997 = vmatpush.msra.mxu0 %v438
        %2998 = vmatpush.msra.mxu0 %v435
        %2999 = vmatpush.msra.mxu0 %v432
        %3000 = vmatpush.msra.mxu0 %v429
        %3001 = vmatpush.msra.mxu0 %v426
        %3002 = vmatpush.msra.mxu0 %v423
        %3003 = vmatpush.msra.mxu0 %v420
        %3004 = vmatmul.f32.gmra.mxu0 %v2960
        %v3005 = vpop.f32.mrf.mxu0
        %v3006 = vadd.f32 0.0, %v3005
        %3007 = vmatmul.f32.gmra.mxu0 %v2963
        %v3008 = vpop.f32.mrf.mxu0
        %v3009 = vadd.f32 0.0, %v3008
        %3010 = vdwg.mxu0
        %3011 = vmatpush.msra.mxu0 0.0
        %3012 = vmatpush.msra.mxu0 0.0
        %3013 = vmatpush.msra.mxu0 0.0
        %3014 = vmatpush.msra.mxu0 0.0
        %3015 = vmatpush.msra.mxu0 0.0
        %3016 = vmatpush.msra.mxu0 0.0
        %3017 = vmatpush.msra.mxu0 0.0
        %3018 = vmatpush.msra.mxu0 0.0
        %3019 = vmatpush.msra.mxu0 %v442
        %3020 = vmatpush.msra.mxu0 %v439
        %3021 = vmatpush.msra.mxu0 %v436
        %3022 = vmatpush.msra.mxu0 %v433
        %3023 = vmatpush.msra.mxu0 %v430
        %3024 = vmatpush.msra.mxu0 %v427
        %3025 = vmatpush.msra.mxu0 %v424
        %3026 = vmatpush.msra.mxu0 %v421
        %3027 = vmatmul.f32.gmra.mxu0 %v2960
        %v3028 = vpop.f32.mrf.mxu0
        %v3029 = vadd.f32 0.0, %v3028
        %3030 = vmatmul.f32.gmra.mxu0 %v2963
        %v3031 = vpop.f32.mrf.mxu0
        %v3032 = vadd.f32 0.0, %v3031
        %3033 = vdwg.mxu0
        %v3034 = vpack.c.bf16 %v2986, %v2983
        %v3035 = vpack.c.bf16 %v3009, %v3006
        %v3036 = vpack.c.bf16 %v3032, %v3029
        %s3037 = scalar_lea.vmem %s8, 1920
        %v3038 = vld [vmem:[%s3037] sm:$0xff]
        %v3039 = vld [vmem:[%s3037 + $0x8] sm:$0xff]
        %v3040 = vld [vmem:[%s3037 + $0x10] sm:$0xff]
        %v3041 = vld [vmem:[%s3037 + $0x18] sm:$0xff]
        %v3042 = vld [vmem:[%s3037 + $0x20] sm:$0xff]
        %v3043 = vld [vmem:[%s3037 + $0x28] sm:$0xff]
        %v3044 = vld [vmem:[%s3037 + $0x30] sm:$0xff]
        %v3045 = vld [vmem:[%s3037 + $0x38] sm:$0xff]
        %v3046 = vld [vmem:[%s3037 + $0x40] sm:$0xff]
        %v3047 = vld [vmem:[%s3037 + $0x48] sm:$0xff]
        %v3048 = vld [vmem:[%s3037 + $0x50] sm:$0xff]
        %v3049 = vld [vmem:[%s3037 + $0x58] sm:$0xff]
        %v3050 = vld [vmem:[%s3037 + $0x60] sm:$0xff]
        %v3051 = vld [vmem:[%s3037 + $0x68] sm:$0xff]
        %v3052 = vld [vmem:[%s3037 + $0x70] sm:$0xff]
        %v3053 = vld [vmem:[%s3037 + $0x78] sm:$0xff]
        %v3054 = vld [vmem:[%s3037 + $0x80] sm:$0xff]
        %v3055 = vld [vmem:[%s3037 + $0x88] sm:$0xff]
        %v3056 = vld [vmem:[%s3037 + $0x90] sm:$0xff]
        %v3057 = vld [vmem:[%s3037 + $0x98] sm:$0xff]
        %v3058 = vld [vmem:[%s3037 + $0xa0] sm:$0xff]
        %v3059 = vld [vmem:[%s3037 + $0xa8] sm:$0xff]
        %v3060 = vld [vmem:[%s3037 + $0xb0] sm:$0xff]
        %v3061 = vld [vmem:[%s3037 + $0xb8] sm:$0xff]
        %v3062 = vld [vmem:[%s3037 + $0xc0] sm:$0xff]
        %v3063 = vld [vmem:[%s3037 + $0xc8] sm:$0xff]
        %v3064 = vld [vmem:[%s3037 + $0xd0] sm:$0xff]
        %v3065 = vld [vmem:[%s3037 + $0xd8] sm:$0xff]
        %v3066 = vld [vmem:[%s3037 + $0xe0] sm:$0xff]
        %v3067 = vld [vmem:[%s3037 + $0xe8] sm:$0xff]
        %v3068 = vld [vmem:[%s3037 + $0xf0] sm:$0xff]
        %v3069 = vld [vmem:[%s3037 + $0xf8] sm:$0xff]
        %v3070 = vld [vmem:[%s3037 + $0x100] sm:$0xff]
        %v3071 = vld [vmem:[%s3037 + $0x108] sm:$0xff]
        %v3072 = vld [vmem:[%s3037 + $0x110] sm:$0xff]
        %v3073 = vld [vmem:[%s3037 + $0x118] sm:$0xff]
        %v3074 = vld [vmem:[%s3037 + $0x120] sm:$0xff]
        %v3075 = vld [vmem:[%s3037 + $0x128] sm:$0xff]
        %v3076 = vld [vmem:[%s3037 + $0x130] sm:$0xff]
        %v3077 = vld [vmem:[%s3037 + $0x138] sm:$0xff]
        %v3078 = vld [vmem:[%s3037 + $0x140] sm:$0xff]
        %v3079 = vld [vmem:[%s3037 + $0x148] sm:$0xff]
        %v3080 = vld [vmem:[%s3037 + $0x150] sm:$0xff]
        %v3081 = vld [vmem:[%s3037 + $0x158] sm:$0xff]
        %v3082 = vld [vmem:[%s3037 + $0x160] sm:$0xff]
        %v3083 = vld [vmem:[%s3037 + $0x168] sm:$0xff]
        %v3084 = vld [vmem:[%s3037 + $0x170] sm:$0xff]
        %v3085 = vld [vmem:[%s3037 + $0x178] sm:$0xff]
        %v3134 = vunpack.c.l.b16 %v3038
        %v3135 = vunpack.c.h.b16 %v3038
        %v3136 = vunpack.c.l.b16 %v3039
        %v3137 = vunpack.c.h.b16 %v3039
        %v3138 = vunpack.c.l.b16 %v3040
        %v3139 = vunpack.c.h.b16 %v3040
        %v3140 = vunpack.c.l.b16 %v3041
        %v3141 = vunpack.c.h.b16 %v3041
        %v3142 = vunpack.c.l.b16 %v3042
        %v3143 = vunpack.c.h.b16 %v3042
        %v3144 = vunpack.c.l.b16 %v3043
        %v3145 = vunpack.c.h.b16 %v3043
        %v3146 = vunpack.c.l.b16 %v3044
        %v3147 = vunpack.c.h.b16 %v3044
        %v3148 = vunpack.c.l.b16 %v3045
        %v3149 = vunpack.c.h.b16 %v3045
        %v3150 = vunpack.c.l.b16 %v3046
        %v3151 = vunpack.c.h.b16 %v3046
        %v3152 = vunpack.c.l.b16 %v3047
        %v3153 = vunpack.c.h.b16 %v3047
        %v3154 = vunpack.c.l.b16 %v3048
        %v3155 = vunpack.c.h.b16 %v3048
        %v3156 = vunpack.c.l.b16 %v3049
        %v3157 = vunpack.c.h.b16 %v3049
        %v3158 = vunpack.c.l.b16 %v3050
        %v3159 = vunpack.c.h.b16 %v3050
        %v3160 = vunpack.c.l.b16 %v3051
        %v3161 = vunpack.c.h.b16 %v3051
        %v3162 = vunpack.c.l.b16 %v3052
        %v3163 = vunpack.c.h.b16 %v3052
        %v3164 = vunpack.c.l.b16 %v3053
        %v3165 = vunpack.c.h.b16 %v3053
        %v3166 = vunpack.c.l.b16 %v3054
        %v3167 = vunpack.c.h.b16 %v3054
        %v3168 = vunpack.c.l.b16 %v3055
        %v3169 = vunpack.c.h.b16 %v3055
        %v3170 = vunpack.c.l.b16 %v3056
        %v3171 = vunpack.c.h.b16 %v3056
        %v3172 = vunpack.c.l.b16 %v3057
        %v3173 = vunpack.c.h.b16 %v3057
        %v3174 = vunpack.c.l.b16 %v3058
        %v3175 = vunpack.c.h.b16 %v3058
        %v3176 = vunpack.c.l.b16 %v3059
        %v3177 = vunpack.c.h.b16 %v3059
        %v3178 = vunpack.c.l.b16 %v3060
        %v3179 = vunpack.c.h.b16 %v3060
        %v3180 = vunpack.c.l.b16 %v3061
        %v3181 = vunpack.c.h.b16 %v3061
        %v3182 = vunpack.c.l.b16 %v3062
        %v3183 = vunpack.c.h.b16 %v3062
        %v3184 = vunpack.c.l.b16 %v3063
        %v3185 = vunpack.c.h.b16 %v3063
        %v3186 = vunpack.c.l.b16 %v3064
        %v3187 = vunpack.c.h.b16 %v3064
        %v3188 = vunpack.c.l.b16 %v3065
        %v3189 = vunpack.c.h.b16 %v3065
        %v3190 = vunpack.c.l.b16 %v3066
        %v3191 = vunpack.c.h.b16 %v3066
        %v3192 = vunpack.c.l.b16 %v3067
        %v3193 = vunpack.c.h.b16 %v3067
        %v3194 = vunpack.c.l.b16 %v3068
        %v3195 = vunpack.c.h.b16 %v3068
        %v3196 = vunpack.c.l.b16 %v3069
        %v3197 = vunpack.c.h.b16 %v3069
        %v3198 = vunpack.c.l.b16 %v3070
        %v3199 = vunpack.c.h.b16 %v3070
        %v3200 = vunpack.c.l.b16 %v3071
        %v3201 = vunpack.c.h.b16 %v3071
        %v3202 = vunpack.c.l.b16 %v3072
        %v3203 = vunpack.c.h.b16 %v3072
        %v3204 = vunpack.c.l.b16 %v3073
        %v3205 = vunpack.c.h.b16 %v3073
        %v3206 = vunpack.c.l.b16 %v3074
        %v3207 = vunpack.c.h.b16 %v3074
        %v3208 = vunpack.c.l.b16 %v3075
        %v3209 = vunpack.c.h.b16 %v3075
        %v3210 = vunpack.c.l.b16 %v3076
        %v3211 = vunpack.c.h.b16 %v3076
        %v3212 = vunpack.c.l.b16 %v3077
        %v3213 = vunpack.c.h.b16 %v3077
        %v3214 = vunpack.c.l.b16 %v3078
        %v3215 = vunpack.c.h.b16 %v3078
        %v3216 = vunpack.c.l.b16 %v3079
        %v3217 = vunpack.c.h.b16 %v3079
        %v3218 = vunpack.c.l.b16 %v3080
        %v3219 = vunpack.c.h.b16 %v3080
        %v3220 = vunpack.c.l.b16 %v3081
        %v3221 = vunpack.c.h.b16 %v3081
        %v3222 = vunpack.c.l.b16 %v3082
        %v3223 = vunpack.c.h.b16 %v3082
        %v3224 = vunpack.c.l.b16 %v3083
        %v3225 = vunpack.c.h.b16 %v3083
        %v3226 = vunpack.c.l.b16 %v3084
        %v3227 = vunpack.c.h.b16 %v3084
        %v3228 = vunpack.c.l.b16 %v3085
        %v3229 = vunpack.c.h.b16 %v3085
        %v3230 = vpack.c.b16 %v3136, %v3134
        %v3231 = vpack.c.b16 %v3137, %v3135
        %v3232 = vpack.c.b16 %v3140, %v3138
        %v3233 = vpack.c.b16 %v3141, %v3139
        %v3234 = vpack.c.b16 %v3144, %v3142
        %v3235 = vpack.c.b16 %v3145, %v3143
        %v3236 = vpack.c.b16 %v3148, %v3146
        %v3237 = vpack.c.b16 %v3149, %v3147
        %v3238 = vpack.c.b16 %v3152, %v3150
        %v3239 = vpack.c.b16 %v3153, %v3151
        %v3240 = vpack.c.b16 %v3156, %v3154
        %v3241 = vpack.c.b16 %v3157, %v3155
        %v3242 = vpack.c.b16 %v3160, %v3158
        %v3243 = vpack.c.b16 %v3161, %v3159
        %v3244 = vpack.c.b16 %v3164, %v3162
        %v3245 = vpack.c.b16 %v3165, %v3163
        %v3246 = vpack.c.b16 %v3168, %v3166
        %v3247 = vpack.c.b16 %v3169, %v3167
        %v3248 = vpack.c.b16 %v3172, %v3170
        %v3249 = vpack.c.b16 %v3173, %v3171
        %v3250 = vpack.c.b16 %v3176, %v3174
        %v3251 = vpack.c.b16 %v3177, %v3175
        %v3252 = vpack.c.b16 %v3180, %v3178
        %v3253 = vpack.c.b16 %v3181, %v3179
        %v3254 = vpack.c.b16 %v3184, %v3182
        %v3255 = vpack.c.b16 %v3185, %v3183
        %v3256 = vpack.c.b16 %v3188, %v3186
        %v3257 = vpack.c.b16 %v3189, %v3187
        %v3258 = vpack.c.b16 %v3192, %v3190
        %v3259 = vpack.c.b16 %v3193, %v3191
        %v3260 = vpack.c.b16 %v3196, %v3194
        %v3261 = vpack.c.b16 %v3197, %v3195
        %v3262 = vpack.c.b16 %v3200, %v3198
        %v3263 = vpack.c.b16 %v3201, %v3199
        %v3264 = vpack.c.b16 %v3204, %v3202
        %v3265 = vpack.c.b16 %v3205, %v3203
        %v3266 = vpack.c.b16 %v3208, %v3206
        %v3267 = vpack.c.b16 %v3209, %v3207
        %v3268 = vpack.c.b16 %v3212, %v3210
        %v3269 = vpack.c.b16 %v3213, %v3211
        %v3270 = vpack.c.b16 %v3216, %v3214
        %v3271 = vpack.c.b16 %v3217, %v3215
        %v3272 = vpack.c.b16 %v3220, %v3218
        %v3273 = vpack.c.b16 %v3221, %v3219
        %v3274 = vpack.c.b16 %v3224, %v3222
        %v3275 = vpack.c.b16 %v3225, %v3223
        %v3276 = vpack.c.b16 %v3228, %v3226
        %v3277 = vpack.c.b16 %v3229, %v3227
        %3326 = vmatpush.bf16.msra.mxu0 %v3244
        %3327 = vmatpush.bf16.msra.mxu0 %v3242
        %3328 = vmatpush.bf16.msra.mxu0 %v3240
        %3329 = vmatpush.bf16.msra.mxu0 %v3238
        %3330 = vmatpush.bf16.msra.mxu0 %v3236
        %3331 = vmatpush.bf16.msra.mxu0 %v3234
        %3332 = vmatpush.bf16.msra.mxu0 %v3232
        %3333 = vmatpush.bf16.msra.mxu0 %v3230
        %3334 = vmatmul.bf16.gmra.mxu0 %v3034
        %v3335 = vpop.f32.mrf.mxu0
        %v3336 = vadd.f32 0.0, %v3335
        %v3337 = vpop.f32.mrf.mxu0
        %v3338 = vadd.f32 0.0, %v3337
        %3339 = vdwg.mxu0
        %3340 = vmatpush.bf16.msra.mxu0 %v3260
        %3341 = vmatpush.bf16.msra.mxu0 %v3258
        %3342 = vmatpush.bf16.msra.mxu0 %v3256
        %3343 = vmatpush.bf16.msra.mxu0 %v3254
        %3344 = vmatpush.bf16.msra.mxu0 %v3252
        %3345 = vmatpush.bf16.msra.mxu0 %v3250
        %3346 = vmatpush.bf16.msra.mxu0 %v3248
        %3347 = vmatpush.bf16.msra.mxu0 %v3246
        %3348 = vmatmul.bf16.gmra.mxu0 %v3035
        %v3349 = vpop.f32.mrf.mxu0
        %v3350 = vadd.f32 %v3336, %v3349
        %v3351 = vpop.f32.mrf.mxu0
        %v3352 = vadd.f32 %v3338, %v3351
        %3353 = vdwg.mxu0
        %3354 = vmatpush.bf16.msra.mxu0 %v3276
        %3355 = vmatpush.bf16.msra.mxu0 %v3274
        %3356 = vmatpush.bf16.msra.mxu0 %v3272
        %3357 = vmatpush.bf16.msra.mxu0 %v3270
        %3358 = vmatpush.bf16.msra.mxu0 %v3268
        %3359 = vmatpush.bf16.msra.mxu0 %v3266
        %3360 = vmatpush.bf16.msra.mxu0 %v3264
        %3361 = vmatpush.bf16.msra.mxu0 %v3262
        %3362 = vmatmul.bf16.gmra.mxu0 %v3036
        %v3363 = vpop.f32.mrf.mxu0
        %v3364 = vadd.f32 %v3350, %v3363
        %v3365 = vpop.f32.mrf.mxu0
        %v3366 = vadd.f32 %v3352, %v3365
        %3367 = vdwg.mxu0
        %3368 = vmatpush.bf16.msra.mxu0 %v3245
        %3369 = vmatpush.bf16.msra.mxu0 %v3243
        %3370 = vmatpush.bf16.msra.mxu0 %v3241
        %3371 = vmatpush.bf16.msra.mxu0 %v3239
        %3372 = vmatpush.bf16.msra.mxu0 %v3237
        %3373 = vmatpush.bf16.msra.mxu0 %v3235
        %3374 = vmatpush.bf16.msra.mxu0 %v3233
        %3375 = vmatpush.bf16.msra.mxu0 %v3231
        %3376 = vmatmul.bf16.gmra.mxu0 %v3034
        %v3377 = vpop.f32.mrf.mxu0
        %v3378 = vadd.f32 0.0, %v3377
        %v3379 = vpop.f32.mrf.mxu0
        %v3380 = vadd.f32 0.0, %v3379
        %3381 = vdwg.mxu0
        %3382 = vmatpush.bf16.msra.mxu0 %v3261
        %3383 = vmatpush.bf16.msra.mxu0 %v3259
        %3384 = vmatpush.bf16.msra.mxu0 %v3257
        %3385 = vmatpush.bf16.msra.mxu0 %v3255
        %3386 = vmatpush.bf16.msra.mxu0 %v3253
        %3387 = vmatpush.bf16.msra.mxu0 %v3251
        %3388 = vmatpush.bf16.msra.mxu0 %v3249
        %3389 = vmatpush.bf16.msra.mxu0 %v3247
        %3390 = vmatmul.bf16.gmra.mxu0 %v3035
        %v3391 = vpop.f32.mrf.mxu0
        %v3392 = vadd.f32 %v3378, %v3391
        %v3393 = vpop.f32.mrf.mxu0
        %v3394 = vadd.f32 %v3380, %v3393
        %3395 = vdwg.mxu0
        %3396 = vmatpush.bf16.msra.mxu0 %v3277
        %3397 = vmatpush.bf16.msra.mxu0 %v3275
        %3398 = vmatpush.bf16.msra.mxu0 %v3273
        %3399 = vmatpush.bf16.msra.mxu0 %v3271
        %3400 = vmatpush.bf16.msra.mxu0 %v3269
        %3401 = vmatpush.bf16.msra.mxu0 %v3267
        %3402 = vmatpush.bf16.msra.mxu0 %v3265
        %3403 = vmatpush.bf16.msra.mxu0 %v3263
        %3404 = vmatmul.bf16.gmra.mxu0 %v3036
        %v3405 = vpop.f32.mrf.mxu0
        %v3406 = vadd.f32 %v3392, %v3405
        %v3407 = vpop.f32.mrf.mxu0
        %v3408 = vadd.f32 %v3394, %v3407
        %3409 = vdwg.mxu0
        %v3410 = vadd.f32 %v2950, %v3364
        %v3411 = vadd.f32 %v2951, %v3406
        %v3412 = vadd.f32 %v2952, %v3366
        %v3413 = vadd.f32 %v2953, %v3408
        %s3414 = scalar_lea.vmem %s7, 96
        %v3415 = vld [vmem:[%s3414] sm:$0xff]
        %v3416 = vld [vmem:[%s3414 + $0x8] sm:$0xff]
        %v3417 = vmul.f32 %v3415, %v664
        %v3418 = vmul.f32 %v3416, %v664
        %v3420 = vsel %vm667, %v3417, 0
        %v3423 = vsel %vm667, %v3418, 0
        %3425 = vmatpush.msra.mxu0 0.0
        %3426 = vmatpush.msra.mxu0 0.0
        %3427 = vmatpush.msra.mxu0 0.0
        %3428 = vmatpush.msra.mxu0 0.0
        %3429 = vmatpush.msra.mxu0 0.0
        %3430 = vmatpush.msra.mxu0 0.0
        %3431 = vmatpush.msra.mxu0 0.0
        %3432 = vmatpush.msra.mxu0 0.0
        %3433 = vmatpush.msra.mxu0 %v440
        %3434 = vmatpush.msra.mxu0 %v437
        %3435 = vmatpush.msra.mxu0 %v434
        %3436 = vmatpush.msra.mxu0 %v431
        %3437 = vmatpush.msra.mxu0 %v428
        %3438 = vmatpush.msra.mxu0 %v425
        %3439 = vmatpush.msra.mxu0 %v422
        %3440 = vmatpush.msra.mxu0 %v419
        %3441 = vmatmul.f32.gmra.mxu0 %v3420
        %v3442 = vpop.f32.mrf.mxu0
        %v3443 = vadd.f32 0.0, %v3442
        %3444 = vmatmul.f32.gmra.mxu0 %v3423
        %v3445 = vpop.f32.mrf.mxu0
        %v3446 = vadd.f32 0.0, %v3445
        %3447 = vdwg.mxu0
        %3448 = vmatpush.msra.mxu0 0.0
        %3449 = vmatpush.msra.mxu0 0.0
        %3450 = vmatpush.msra.mxu0 0.0
        %3451 = vmatpush.msra.mxu0 0.0
        %3452 = vmatpush.msra.mxu0 0.0
        %3453 = vmatpush.msra.mxu0 0.0
        %3454 = vmatpush.msra.mxu0 0.0
        %3455 = vmatpush.msra.mxu0 0.0
        %3456 = vmatpush.msra.mxu0 %v441
        %3457 = vmatpush.msra.mxu0 %v438
        %3458 = vmatpush.msra.mxu0 %v435
        %3459 = vmatpush.msra.mxu0 %v432
        %3460 = vmatpush.msra.mxu0 %v429
        %3461 = vmatpush.msra.mxu0 %v426
        %3462 = vmatpush.msra.mxu0 %v423
        %3463 = vmatpush.msra.mxu0 %v420
        %3464 = vmatmul.f32.gmra.mxu0 %v3420
        %v3465 = vpop.f32.mrf.mxu0
        %v3466 = vadd.f32 0.0, %v3465
        %3467 = vmatmul.f32.gmra.mxu0 %v3423
        %v3468 = vpop.f32.mrf.mxu0
        %v3469 = vadd.f32 0.0, %v3468
        %3470 = vdwg.mxu0
        %3471 = vmatpush.msra.mxu0 0.0
        %3472 = vmatpush.msra.mxu0 0.0
        %3473 = vmatpush.msra.mxu0 0.0
        %3474 = vmatpush.msra.mxu0 0.0
        %3475 = vmatpush.msra.mxu0 0.0
        %3476 = vmatpush.msra.mxu0 0.0
        %3477 = vmatpush.msra.mxu0 0.0
        %3478 = vmatpush.msra.mxu0 0.0
        %3479 = vmatpush.msra.mxu0 %v442
        %3480 = vmatpush.msra.mxu0 %v439
        %3481 = vmatpush.msra.mxu0 %v436
        %3482 = vmatpush.msra.mxu0 %v433
        %3483 = vmatpush.msra.mxu0 %v430
        %3484 = vmatpush.msra.mxu0 %v427
        %3485 = vmatpush.msra.mxu0 %v424
        %3486 = vmatpush.msra.mxu0 %v421
        %3487 = vmatmul.f32.gmra.mxu0 %v3420
        %v3488 = vpop.f32.mrf.mxu0
        %v3489 = vadd.f32 0.0, %v3488
        %3490 = vmatmul.f32.gmra.mxu0 %v3423
        %v3491 = vpop.f32.mrf.mxu0
        %v3492 = vadd.f32 0.0, %v3491
        %3493 = vdwg.mxu0
        %v3494 = vpack.c.bf16 %v3446, %v3443
        %v3495 = vpack.c.bf16 %v3469, %v3466
        %v3496 = vpack.c.bf16 %v3492, %v3489
        %s3497 = scalar_lea.vmem %s8, 2304
        %v3498 = vld [vmem:[%s3497] sm:$0xff]
        %v3499 = vld [vmem:[%s3497 + $0x8] sm:$0xff]
        %v3500 = vld [vmem:[%s3497 + $0x10] sm:$0xff]
        %v3501 = vld [vmem:[%s3497 + $0x18] sm:$0xff]
        %v3502 = vld [vmem:[%s3497 + $0x20] sm:$0xff]
        %v3503 = vld [vmem:[%s3497 + $0x28] sm:$0xff]
        %v3504 = vld [vmem:[%s3497 + $0x30] sm:$0xff]
        %v3505 = vld [vmem:[%s3497 + $0x38] sm:$0xff]
        %v3506 = vld [vmem:[%s3497 + $0x40] sm:$0xff]
        %v3507 = vld [vmem:[%s3497 + $0x48] sm:$0xff]
        %v3508 = vld [vmem:[%s3497 + $0x50] sm:$0xff]
        %v3509 = vld [vmem:[%s3497 + $0x58] sm:$0xff]
        %v3510 = vld [vmem:[%s3497 + $0x60] sm:$0xff]
        %v3511 = vld [vmem:[%s3497 + $0x68] sm:$0xff]
        %v3512 = vld [vmem:[%s3497 + $0x70] sm:$0xff]
        %v3513 = vld [vmem:[%s3497 + $0x78] sm:$0xff]
        %v3514 = vld [vmem:[%s3497 + $0x80] sm:$0xff]
        %v3515 = vld [vmem:[%s3497 + $0x88] sm:$0xff]
        %v3516 = vld [vmem:[%s3497 + $0x90] sm:$0xff]
        %v3517 = vld [vmem:[%s3497 + $0x98] sm:$0xff]
        %v3518 = vld [vmem:[%s3497 + $0xa0] sm:$0xff]
        %v3519 = vld [vmem:[%s3497 + $0xa8] sm:$0xff]
        %v3520 = vld [vmem:[%s3497 + $0xb0] sm:$0xff]
        %v3521 = vld [vmem:[%s3497 + $0xb8] sm:$0xff]
        %v3522 = vld [vmem:[%s3497 + $0xc0] sm:$0xff]
        %v3523 = vld [vmem:[%s3497 + $0xc8] sm:$0xff]
        %v3524 = vld [vmem:[%s3497 + $0xd0] sm:$0xff]
        %v3525 = vld [vmem:[%s3497 + $0xd8] sm:$0xff]
        %v3526 = vld [vmem:[%s3497 + $0xe0] sm:$0xff]
        %v3527 = vld [vmem:[%s3497 + $0xe8] sm:$0xff]
        %v3528 = vld [vmem:[%s3497 + $0xf0] sm:$0xff]
        %v3529 = vld [vmem:[%s3497 + $0xf8] sm:$0xff]
        %v3530 = vld [vmem:[%s3497 + $0x100] sm:$0xff]
        %v3531 = vld [vmem:[%s3497 + $0x108] sm:$0xff]
        %v3532 = vld [vmem:[%s3497 + $0x110] sm:$0xff]
        %v3533 = vld [vmem:[%s3497 + $0x118] sm:$0xff]
        %v3534 = vld [vmem:[%s3497 + $0x120] sm:$0xff]
        %v3535 = vld [vmem:[%s3497 + $0x128] sm:$0xff]
        %v3536 = vld [vmem:[%s3497 + $0x130] sm:$0xff]
        %v3537 = vld [vmem:[%s3497 + $0x138] sm:$0xff]
        %v3538 = vld [vmem:[%s3497 + $0x140] sm:$0xff]
        %v3539 = vld [vmem:[%s3497 + $0x148] sm:$0xff]
        %v3540 = vld [vmem:[%s3497 + $0x150] sm:$0xff]
        %v3541 = vld [vmem:[%s3497 + $0x158] sm:$0xff]
        %v3542 = vld [vmem:[%s3497 + $0x160] sm:$0xff]
        %v3543 = vld [vmem:[%s3497 + $0x168] sm:$0xff]
        %v3544 = vld [vmem:[%s3497 + $0x170] sm:$0xff]
        %v3545 = vld [vmem:[%s3497 + $0x178] sm:$0xff]
        %v3594 = vunpack.c.l.b16 %v3498
        %v3595 = vunpack.c.h.b16 %v3498
        %v3596 = vunpack.c.l.b16 %v3499
        %v3597 = vunpack.c.h.b16 %v3499
        %v3598 = vunpack.c.l.b16 %v3500
        %v3599 = vunpack.c.h.b16 %v3500
        %v3600 = vunpack.c.l.b16 %v3501
        %v3601 = vunpack.c.h.b16 %v3501
        %v3602 = vunpack.c.l.b16 %v3502
        %v3603 = vunpack.c.h.b16 %v3502
        %v3604 = vunpack.c.l.b16 %v3503
        %v3605 = vunpack.c.h.b16 %v3503
        %v3606 = vunpack.c.l.b16 %v3504
        %v3607 = vunpack.c.h.b16 %v3504
        %v3608 = vunpack.c.l.b16 %v3505
        %v3609 = vunpack.c.h.b16 %v3505
        %v3610 = vunpack.c.l.b16 %v3506
        %v3611 = vunpack.c.h.b16 %v3506
        %v3612 = vunpack.c.l.b16 %v3507
        %v3613 = vunpack.c.h.b16 %v3507
        %v3614 = vunpack.c.l.b16 %v3508
        %v3615 = vunpack.c.h.b16 %v3508
        %v3616 = vunpack.c.l.b16 %v3509
        %v3617 = vunpack.c.h.b16 %v3509
        %v3618 = vunpack.c.l.b16 %v3510
        %v3619 = vunpack.c.h.b16 %v3510
        %v3620 = vunpack.c.l.b16 %v3511
        %v3621 = vunpack.c.h.b16 %v3511
        %v3622 = vunpack.c.l.b16 %v3512
        %v3623 = vunpack.c.h.b16 %v3512
        %v3624 = vunpack.c.l.b16 %v3513
        %v3625 = vunpack.c.h.b16 %v3513
        %v3626 = vunpack.c.l.b16 %v3514
        %v3627 = vunpack.c.h.b16 %v3514
        %v3628 = vunpack.c.l.b16 %v3515
        %v3629 = vunpack.c.h.b16 %v3515
        %v3630 = vunpack.c.l.b16 %v3516
        %v3631 = vunpack.c.h.b16 %v3516
        %v3632 = vunpack.c.l.b16 %v3517
        %v3633 = vunpack.c.h.b16 %v3517
        %v3634 = vunpack.c.l.b16 %v3518
        %v3635 = vunpack.c.h.b16 %v3518
        %v3636 = vunpack.c.l.b16 %v3519
        %v3637 = vunpack.c.h.b16 %v3519
        %v3638 = vunpack.c.l.b16 %v3520
        %v3639 = vunpack.c.h.b16 %v3520
        %v3640 = vunpack.c.l.b16 %v3521
        %v3641 = vunpack.c.h.b16 %v3521
        %v3642 = vunpack.c.l.b16 %v3522
        %v3643 = vunpack.c.h.b16 %v3522
        %v3644 = vunpack.c.l.b16 %v3523
        %v3645 = vunpack.c.h.b16 %v3523
        %v3646 = vunpack.c.l.b16 %v3524
        %v3647 = vunpack.c.h.b16 %v3524
        %v3648 = vunpack.c.l.b16 %v3525
        %v3649 = vunpack.c.h.b16 %v3525
        %v3650 = vunpack.c.l.b16 %v3526
        %v3651 = vunpack.c.h.b16 %v3526
        %v3652 = vunpack.c.l.b16 %v3527
        %v3653 = vunpack.c.h.b16 %v3527
        %v3654 = vunpack.c.l.b16 %v3528
        %v3655 = vunpack.c.h.b16 %v3528
        %v3656 = vunpack.c.l.b16 %v3529
        %v3657 = vunpack.c.h.b16 %v3529
        %v3658 = vunpack.c.l.b16 %v3530
        %v3659 = vunpack.c.h.b16 %v3530
        %v3660 = vunpack.c.l.b16 %v3531
        %v3661 = vunpack.c.h.b16 %v3531
        %v3662 = vunpack.c.l.b16 %v3532
        %v3663 = vunpack.c.h.b16 %v3532
        %v3664 = vunpack.c.l.b16 %v3533
        %v3665 = vunpack.c.h.b16 %v3533
        %v3666 = vunpack.c.l.b16 %v3534
        %v3667 = vunpack.c.h.b16 %v3534
        %v3668 = vunpack.c.l.b16 %v3535
        %v3669 = vunpack.c.h.b16 %v3535
        %v3670 = vunpack.c.l.b16 %v3536
        %v3671 = vunpack.c.h.b16 %v3536
        %v3672 = vunpack.c.l.b16 %v3537
        %v3673 = vunpack.c.h.b16 %v3537
        %v3674 = vunpack.c.l.b16 %v3538
        %v3675 = vunpack.c.h.b16 %v3538
        %v3676 = vunpack.c.l.b16 %v3539
        %v3677 = vunpack.c.h.b16 %v3539
        %v3678 = vunpack.c.l.b16 %v3540
        %v3679 = vunpack.c.h.b16 %v3540
        %v3680 = vunpack.c.l.b16 %v3541
        %v3681 = vunpack.c.h.b16 %v3541
        %v3682 = vunpack.c.l.b16 %v3542
        %v3683 = vunpack.c.h.b16 %v3542
        %v3684 = vunpack.c.l.b16 %v3543
        %v3685 = vunpack.c.h.b16 %v3543
        %v3686 = vunpack.c.l.b16 %v3544
        %v3687 = vunpack.c.h.b16 %v3544
        %v3688 = vunpack.c.l.b16 %v3545
        %v3689 = vunpack.c.h.b16 %v3545
        %v3690 = vpack.c.b16 %v3596, %v3594
        %v3691 = vpack.c.b16 %v3597, %v3595
        %v3692 = vpack.c.b16 %v3600, %v3598
        %v3693 = vpack.c.b16 %v3601, %v3599
        %v3694 = vpack.c.b16 %v3604, %v3602
        %v3695 = vpack.c.b16 %v3605, %v3603
        %v3696 = vpack.c.b16 %v3608, %v3606
        %v3697 = vpack.c.b16 %v3609, %v3607
        %v3698 = vpack.c.b16 %v3612, %v3610
        %v3699 = vpack.c.b16 %v3613, %v3611
        %v3700 = vpack.c.b16 %v3616, %v3614
        %v3701 = vpack.c.b16 %v3617, %v3615
        %v3702 = vpack.c.b16 %v3620, %v3618
        %v3703 = vpack.c.b16 %v3621, %v3619
        %v3704 = vpack.c.b16 %v3624, %v3622
        %v3705 = vpack.c.b16 %v3625, %v3623
        %v3706 = vpack.c.b16 %v3628, %v3626
        %v3707 = vpack.c.b16 %v3629, %v3627
        %v3708 = vpack.c.b16 %v3632, %v3630
        %v3709 = vpack.c.b16 %v3633, %v3631
        %v3710 = vpack.c.b16 %v3636, %v3634
        %v3711 = vpack.c.b16 %v3637, %v3635
        %v3712 = vpack.c.b16 %v3640, %v3638
        %v3713 = vpack.c.b16 %v3641, %v3639
        %v3714 = vpack.c.b16 %v3644, %v3642
        %v3715 = vpack.c.b16 %v3645, %v3643
        %v3716 = vpack.c.b16 %v3648, %v3646
        %v3717 = vpack.c.b16 %v3649, %v3647
        %v3718 = vpack.c.b16 %v3652, %v3650
        %v3719 = vpack.c.b16 %v3653, %v3651
        %v3720 = vpack.c.b16 %v3656, %v3654
        %v3721 = vpack.c.b16 %v3657, %v3655
        %v3722 = vpack.c.b16 %v3660, %v3658
        %v3723 = vpack.c.b16 %v3661, %v3659
        %v3724 = vpack.c.b16 %v3664, %v3662
        %v3725 = vpack.c.b16 %v3665, %v3663
        %v3726 = vpack.c.b16 %v3668, %v3666
        %v3727 = vpack.c.b16 %v3669, %v3667
        %v3728 = vpack.c.b16 %v3672, %v3670
        %v3729 = vpack.c.b16 %v3673, %v3671
        %v3730 = vpack.c.b16 %v3676, %v3674
        %v3731 = vpack.c.b16 %v3677, %v3675
        %v3732 = vpack.c.b16 %v3680, %v3678
        %v3733 = vpack.c.b16 %v3681, %v3679
        %v3734 = vpack.c.b16 %v3684, %v3682
        %v3735 = vpack.c.b16 %v3685, %v3683
        %v3736 = vpack.c.b16 %v3688, %v3686
        %v3737 = vpack.c.b16 %v3689, %v3687
        %3786 = vmatpush.bf16.msra.mxu0 %v3704
        %3787 = vmatpush.bf16.msra.mxu0 %v3702
        %3788 = vmatpush.bf16.msra.mxu0 %v3700
        %3789 = vmatpush.bf16.msra.mxu0 %v3698
        %3790 = vmatpush.bf16.msra.mxu0 %v3696
        %3791 = vmatpush.bf16.msra.mxu0 %v3694
        %3792 = vmatpush.bf16.msra.mxu0 %v3692
        %3793 = vmatpush.bf16.msra.mxu0 %v3690
        %3794 = vmatmul.bf16.gmra.mxu0 %v3494
        %v3795 = vpop.f32.mrf.mxu0
        %v3796 = vadd.f32 0.0, %v3795
        %v3797 = vpop.f32.mrf.mxu0
        %v3798 = vadd.f32 0.0, %v3797
        %3799 = vdwg.mxu0
        %3800 = vmatpush.bf16.msra.mxu0 %v3720
        %3801 = vmatpush.bf16.msra.mxu0 %v3718
        %3802 = vmatpush.bf16.msra.mxu0 %v3716
        %3803 = vmatpush.bf16.msra.mxu0 %v3714
        %3804 = vmatpush.bf16.msra.mxu0 %v3712
        %3805 = vmatpush.bf16.msra.mxu0 %v3710
        %3806 = vmatpush.bf16.msra.mxu0 %v3708
        %3807 = vmatpush.bf16.msra.mxu0 %v3706
        %3808 = vmatmul.bf16.gmra.mxu0 %v3495
        %v3809 = vpop.f32.mrf.mxu0
        %v3810 = vadd.f32 %v3796, %v3809
        %v3811 = vpop.f32.mrf.mxu0
        %v3812 = vadd.f32 %v3798, %v3811
        %3813 = vdwg.mxu0
        %3814 = vmatpush.bf16.msra.mxu0 %v3736
        %3815 = vmatpush.bf16.msra.mxu0 %v3734
        %3816 = vmatpush.bf16.msra.mxu0 %v3732
        %3817 = vmatpush.bf16.msra.mxu0 %v3730
        %3818 = vmatpush.bf16.msra.mxu0 %v3728
        %3819 = vmatpush.bf16.msra.mxu0 %v3726
        %3820 = vmatpush.bf16.msra.mxu0 %v3724
        %3821 = vmatpush.bf16.msra.mxu0 %v3722
        %3822 = vmatmul.bf16.gmra.mxu0 %v3496
        %v3823 = vpop.f32.mrf.mxu0
        %v3824 = vadd.f32 %v3810, %v3823
        %v3825 = vpop.f32.mrf.mxu0
        %v3826 = vadd.f32 %v3812, %v3825
        %3827 = vdwg.mxu0
        %3828 = vmatpush.bf16.msra.mxu0 %v3705
        %3829 = vmatpush.bf16.msra.mxu0 %v3703
        %3830 = vmatpush.bf16.msra.mxu0 %v3701
        %3831 = vmatpush.bf16.msra.mxu0 %v3699
        %3832 = vmatpush.bf16.msra.mxu0 %v3697
        %3833 = vmatpush.bf16.msra.mxu0 %v3695
        %3834 = vmatpush.bf16.msra.mxu0 %v3693
        %3835 = vmatpush.bf16.msra.mxu0 %v3691
        %3836 = vmatmul.bf16.gmra.mxu0 %v3494
        %v3837 = vpop.f32.mrf.mxu0
        %v3838 = vadd.f32 0.0, %v3837
        %v3839 = vpop.f32.mrf.mxu0
        %v3840 = vadd.f32 0.0, %v3839
        %3841 = vdwg.mxu0
        %3842 = vmatpush.bf16.msra.mxu0 %v3721
        %3843 = vmatpush.bf16.msra.mxu0 %v3719
        %3844 = vmatpush.bf16.msra.mxu0 %v3717
        %3845 = vmatpush.bf16.msra.mxu0 %v3715
        %3846 = vmatpush.bf16.msra.mxu0 %v3713
        %3847 = vmatpush.bf16.msra.mxu0 %v3711
        %3848 = vmatpush.bf16.msra.mxu0 %v3709
        %3849 = vmatpush.bf16.msra.mxu0 %v3707
        %3850 = vmatmul.bf16.gmra.mxu0 %v3495
        %v3851 = vpop.f32.mrf.mxu0
        %v3852 = vadd.f32 %v3838, %v3851
        %v3853 = vpop.f32.mrf.mxu0
        %v3854 = vadd.f32 %v3840, %v3853
        %3855 = vdwg.mxu0
        %3856 = vmatpush.bf16.msra.mxu0 %v3737
        %3857 = vmatpush.bf16.msra.mxu0 %v3735
        %3858 = vmatpush.bf16.msra.mxu0 %v3733
        %3859 = vmatpush.bf16.msra.mxu0 %v3731
        %3860 = vmatpush.bf16.msra.mxu0 %v3729
        %3861 = vmatpush.bf16.msra.mxu0 %v3727
        %3862 = vmatpush.bf16.msra.mxu0 %v3725
        %3863 = vmatpush.bf16.msra.mxu0 %v3723
        %3864 = vmatmul.bf16.gmra.mxu0 %v3496
        %v3865 = vpop.f32.mrf.mxu0
        %v3866 = vadd.f32 %v3852, %v3865
        %v3867 = vpop.f32.mrf.mxu0
        %v3868 = vadd.f32 %v3854, %v3867
        %3869 = vdwg.mxu0
        %v3870 = vadd.f32 %v3410, %v3824
        %v3871 = vadd.f32 %v3411, %v3866
        %v3872 = vadd.f32 %v3412, %v3826
        %v3873 = vadd.f32 %v3413, %v3868
        %s3874 = scalar_lea.vmem %s7, 112
        %v3875 = vld [vmem:[%s3874] sm:$0xff]
        %v3876 = vld [vmem:[%s3874 + $0x8] sm:$0xff]
        %v3877 = vmul.f32 %v3875, %v664
        %v3878 = vmul.f32 %v3876, %v664
        %v3880 = vsel %vm667, %v3877, 0
        %v3883 = vsel %vm667, %v3878, 0
        %3885 = vmatpush.msra.mxu0 0.0
        %3886 = vmatpush.msra.mxu0 0.0
        %3887 = vmatpush.msra.mxu0 0.0
        %3888 = vmatpush.msra.mxu0 0.0
        %3889 = vmatpush.msra.mxu0 0.0
        %3890 = vmatpush.msra.mxu0 0.0
        %3891 = vmatpush.msra.mxu0 0.0
        %3892 = vmatpush.msra.mxu0 0.0
        %3893 = vmatpush.msra.mxu0 %v440
        %3894 = vmatpush.msra.mxu0 %v437
        %3895 = vmatpush.msra.mxu0 %v434
        %3896 = vmatpush.msra.mxu0 %v431
        %3897 = vmatpush.msra.mxu0 %v428
        %3898 = vmatpush.msra.mxu0 %v425
        %3899 = vmatpush.msra.mxu0 %v422
        %3900 = vmatpush.msra.mxu0 %v419
        %3901 = vmatmul.f32.gmra.mxu0 %v3880
        %v3902 = vpop.f32.mrf.mxu0
        %v3903 = vadd.f32 0.0, %v3902
        %3904 = vmatmul.f32.gmra.mxu0 %v3883
        %v3905 = vpop.f32.mrf.mxu0
        %v3906 = vadd.f32 0.0, %v3905
        %3907 = vdwg.mxu0
        %3908 = vmatpush.msra.mxu0 0.0
        %3909 = vmatpush.msra.mxu0 0.0
        %3910 = vmatpush.msra.mxu0 0.0
        %3911 = vmatpush.msra.mxu0 0.0
        %3912 = vmatpush.msra.mxu0 0.0
        %3913 = vmatpush.msra.mxu0 0.0
        %3914 = vmatpush.msra.mxu0 0.0
        %3915 = vmatpush.msra.mxu0 0.0
        %3916 = vmatpush.msra.mxu0 %v441
        %3917 = vmatpush.msra.mxu0 %v438
        %3918 = vmatpush.msra.mxu0 %v435
        %3919 = vmatpush.msra.mxu0 %v432
        %3920 = vmatpush.msra.mxu0 %v429
        %3921 = vmatpush.msra.mxu0 %v426
        %3922 = vmatpush.msra.mxu0 %v423
        %3923 = vmatpush.msra.mxu0 %v420
        %3924 = vmatmul.f32.gmra.mxu0 %v3880
        %v3925 = vpop.f32.mrf.mxu0
        %v3926 = vadd.f32 0.0, %v3925
        %3927 = vmatmul.f32.gmra.mxu0 %v3883
        %v3928 = vpop.f32.mrf.mxu0
        %v3929 = vadd.f32 0.0, %v3928
        %3930 = vdwg.mxu0
        %3931 = vmatpush.msra.mxu0 0.0
        %3932 = vmatpush.msra.mxu0 0.0
        %3933 = vmatpush.msra.mxu0 0.0
        %3934 = vmatpush.msra.mxu0 0.0
        %3935 = vmatpush.msra.mxu0 0.0
        %3936 = vmatpush.msra.mxu0 0.0
        %3937 = vmatpush.msra.mxu0 0.0
        %3938 = vmatpush.msra.mxu0 0.0
        %3939 = vmatpush.msra.mxu0 %v442
        %3940 = vmatpush.msra.mxu0 %v439
        %3941 = vmatpush.msra.mxu0 %v436
        %3942 = vmatpush.msra.mxu0 %v433
        %3943 = vmatpush.msra.mxu0 %v430
        %3944 = vmatpush.msra.mxu0 %v427
        %3945 = vmatpush.msra.mxu0 %v424
        %3946 = vmatpush.msra.mxu0 %v421
        %3947 = vmatmul.f32.gmra.mxu0 %v3880
        %v3948 = vpop.f32.mrf.mxu0
        %v3949 = vadd.f32 0.0, %v3948
        %3950 = vmatmul.f32.gmra.mxu0 %v3883
        %v3951 = vpop.f32.mrf.mxu0
        %v3952 = vadd.f32 0.0, %v3951
        %3953 = vdwg.mxu0
        %v3954 = vpack.c.bf16 %v3906, %v3903
        %v3955 = vpack.c.bf16 %v3929, %v3926
        %v3956 = vpack.c.bf16 %v3952, %v3949
        %s3957 = scalar_lea.vmem %s8, 2688
        %v3958 = vld [vmem:[%s3957] sm:$0xff]
        %v3959 = vld [vmem:[%s3957 + $0x8] sm:$0xff]
        %v3960 = vld [vmem:[%s3957 + $0x10] sm:$0xff]
        %v3961 = vld [vmem:[%s3957 + $0x18] sm:$0xff]
        %v3962 = vld [vmem:[%s3957 + $0x20] sm:$0xff]
        %v3963 = vld [vmem:[%s3957 + $0x28] sm:$0xff]
        %v3964 = vld [vmem:[%s3957 + $0x30] sm:$0xff]
        %v3965 = vld [vmem:[%s3957 + $0x38] sm:$0xff]
        %v3966 = vld [vmem:[%s3957 + $0x40] sm:$0xff]
        %v3967 = vld [vmem:[%s3957 + $0x48] sm:$0xff]
        %v3968 = vld [vmem:[%s3957 + $0x50] sm:$0xff]
        %v3969 = vld [vmem:[%s3957 + $0x58] sm:$0xff]
        %v3970 = vld [vmem:[%s3957 + $0x60] sm:$0xff]
        %v3971 = vld [vmem:[%s3957 + $0x68] sm:$0xff]
        %v3972 = vld [vmem:[%s3957 + $0x70] sm:$0xff]
        %v3973 = vld [vmem:[%s3957 + $0x78] sm:$0xff]
        %v3974 = vld [vmem:[%s3957 + $0x80] sm:$0xff]
        %v3975 = vld [vmem:[%s3957 + $0x88] sm:$0xff]
        %v3976 = vld [vmem:[%s3957 + $0x90] sm:$0xff]
        %v3977 = vld [vmem:[%s3957 + $0x98] sm:$0xff]
        %v3978 = vld [vmem:[%s3957 + $0xa0] sm:$0xff]
        %v3979 = vld [vmem:[%s3957 + $0xa8] sm:$0xff]
        %v3980 = vld [vmem:[%s3957 + $0xb0] sm:$0xff]
        %v3981 = vld [vmem:[%s3957 + $0xb8] sm:$0xff]
        %v3982 = vld [vmem:[%s3957 + $0xc0] sm:$0xff]
        %v3983 = vld [vmem:[%s3957 + $0xc8] sm:$0xff]
        %v3984 = vld [vmem:[%s3957 + $0xd0] sm:$0xff]
        %v3985 = vld [vmem:[%s3957 + $0xd8] sm:$0xff]
        %v3986 = vld [vmem:[%s3957 + $0xe0] sm:$0xff]
        %v3987 = vld [vmem:[%s3957 + $0xe8] sm:$0xff]
        %v3988 = vld [vmem:[%s3957 + $0xf0] sm:$0xff]
        %v3989 = vld [vmem:[%s3957 + $0xf8] sm:$0xff]
        %v3990 = vld [vmem:[%s3957 + $0x100] sm:$0xff]
        %v3991 = vld [vmem:[%s3957 + $0x108] sm:$0xff]
        %v3992 = vld [vmem:[%s3957 + $0x110] sm:$0xff]
        %v3993 = vld [vmem:[%s3957 + $0x118] sm:$0xff]
        %v3994 = vld [vmem:[%s3957 + $0x120] sm:$0xff]
        %v3995 = vld [vmem:[%s3957 + $0x128] sm:$0xff]
        %v3996 = vld [vmem:[%s3957 + $0x130] sm:$0xff]
        %v3997 = vld [vmem:[%s3957 + $0x138] sm:$0xff]
        %v3998 = vld [vmem:[%s3957 + $0x140] sm:$0xff]
        %v3999 = vld [vmem:[%s3957 + $0x148] sm:$0xff]
        %v4000 = vld [vmem:[%s3957 + $0x150] sm:$0xff]
        %v4001 = vld [vmem:[%s3957 + $0x158] sm:$0xff]
        %v4002 = vld [vmem:[%s3957 + $0x160] sm:$0xff]
        %v4003 = vld [vmem:[%s3957 + $0x168] sm:$0xff]
        %v4004 = vld [vmem:[%s3957 + $0x170] sm:$0xff]
        %v4005 = vld [vmem:[%s3957 + $0x178] sm:$0xff]
        %v4054 = vunpack.c.l.b16 %v3958
        %v4055 = vunpack.c.h.b16 %v3958
        %v4056 = vunpack.c.l.b16 %v3959
        %v4057 = vunpack.c.h.b16 %v3959
        %v4058 = vunpack.c.l.b16 %v3960
        %v4059 = vunpack.c.h.b16 %v3960
        %v4060 = vunpack.c.l.b16 %v3961
        %v4061 = vunpack.c.h.b16 %v3961
        %v4062 = vunpack.c.l.b16 %v3962
        %v4063 = vunpack.c.h.b16 %v3962
        %v4064 = vunpack.c.l.b16 %v3963
        %v4065 = vunpack.c.h.b16 %v3963
        %v4066 = vunpack.c.l.b16 %v3964
        %v4067 = vunpack.c.h.b16 %v3964
        %v4068 = vunpack.c.l.b16 %v3965
        %v4069 = vunpack.c.h.b16 %v3965
        %v4070 = vunpack.c.l.b16 %v3966
        %v4071 = vunpack.c.h.b16 %v3966
        %v4072 = vunpack.c.l.b16 %v3967
        %v4073 = vunpack.c.h.b16 %v3967
        %v4074 = vunpack.c.l.b16 %v3968
        %v4075 = vunpack.c.h.b16 %v3968
        %v4076 = vunpack.c.l.b16 %v3969
        %v4077 = vunpack.c.h.b16 %v3969
        %v4078 = vunpack.c.l.b16 %v3970
        %v4079 = vunpack.c.h.b16 %v3970
        %v4080 = vunpack.c.l.b16 %v3971
        %v4081 = vunpack.c.h.b16 %v3971
        %v4082 = vunpack.c.l.b16 %v3972
        %v4083 = vunpack.c.h.b16 %v3972
        %v4084 = vunpack.c.l.b16 %v3973
        %v4085 = vunpack.c.h.b16 %v3973
        %v4086 = vunpack.c.l.b16 %v3974
        %v4087 = vunpack.c.h.b16 %v3974
        %v4088 = vunpack.c.l.b16 %v3975
        %v4089 = vunpack.c.h.b16 %v3975
        %v4090 = vunpack.c.l.b16 %v3976
        %v4091 = vunpack.c.h.b16 %v3976
        %v4092 = vunpack.c.l.b16 %v3977
        %v4093 = vunpack.c.h.b16 %v3977
        %v4094 = vunpack.c.l.b16 %v3978
        %v4095 = vunpack.c.h.b16 %v3978
        %v4096 = vunpack.c.l.b16 %v3979
        %v4097 = vunpack.c.h.b16 %v3979
        %v4098 = vunpack.c.l.b16 %v3980
        %v4099 = vunpack.c.h.b16 %v3980
        %v4100 = vunpack.c.l.b16 %v3981
        %v4101 = vunpack.c.h.b16 %v3981
        %v4102 = vunpack.c.l.b16 %v3982
        %v4103 = vunpack.c.h.b16 %v3982
        %v4104 = vunpack.c.l.b16 %v3983
        %v4105 = vunpack.c.h.b16 %v3983
        %v4106 = vunpack.c.l.b16 %v3984
        %v4107 = vunpack.c.h.b16 %v3984
        %v4108 = vunpack.c.l.b16 %v3985
        %v4109 = vunpack.c.h.b16 %v3985
        %v4110 = vunpack.c.l.b16 %v3986
        %v4111 = vunpack.c.h.b16 %v3986
        %v4112 = vunpack.c.l.b16 %v3987
        %v4113 = vunpack.c.h.b16 %v3987
        %v4114 = vunpack.c.l.b16 %v3988
        %v4115 = vunpack.c.h.b16 %v3988
        %v4116 = vunpack.c.l.b16 %v3989
        %v4117 = vunpack.c.h.b16 %v3989
        %v4118 = vunpack.c.l.b16 %v3990
        %v4119 = vunpack.c.h.b16 %v3990
        %v4120 = vunpack.c.l.b16 %v3991
        %v4121 = vunpack.c.h.b16 %v3991
        %v4122 = vunpack.c.l.b16 %v3992
        %v4123 = vunpack.c.h.b16 %v3992
        %v4124 = vunpack.c.l.b16 %v3993
        %v4125 = vunpack.c.h.b16 %v3993
        %v4126 = vunpack.c.l.b16 %v3994
        %v4127 = vunpack.c.h.b16 %v3994
        %v4128 = vunpack.c.l.b16 %v3995
        %v4129 = vunpack.c.h.b16 %v3995
        %v4130 = vunpack.c.l.b16 %v3996
        %v4131 = vunpack.c.h.b16 %v3996
        %v4132 = vunpack.c.l.b16 %v3997
        %v4133 = vunpack.c.h.b16 %v3997
        %v4134 = vunpack.c.l.b16 %v3998
        %v4135 = vunpack.c.h.b16 %v3998
        %v4136 = vunpack.c.l.b16 %v3999
        %v4137 = vunpack.c.h.b16 %v3999
        %v4138 = vunpack.c.l.b16 %v4000
        %v4139 = vunpack.c.h.b16 %v4000
        %v4140 = vunpack.c.l.b16 %v4001
        %v4141 = vunpack.c.h.b16 %v4001
        %v4142 = vunpack.c.l.b16 %v4002
        %v4143 = vunpack.c.h.b16 %v4002
        %v4144 = vunpack.c.l.b16 %v4003
        %v4145 = vunpack.c.h.b16 %v4003
        %v4146 = vunpack.c.l.b16 %v4004
        %v4147 = vunpack.c.h.b16 %v4004
        %v4148 = vunpack.c.l.b16 %v4005
        %v4149 = vunpack.c.h.b16 %v4005
        %v4150 = vpack.c.b16 %v4056, %v4054
        %v4151 = vpack.c.b16 %v4057, %v4055
        %v4152 = vpack.c.b16 %v4060, %v4058
        %v4153 = vpack.c.b16 %v4061, %v4059
        %v4154 = vpack.c.b16 %v4064, %v4062
        %v4155 = vpack.c.b16 %v4065, %v4063
        %v4156 = vpack.c.b16 %v4068, %v4066
        %v4157 = vpack.c.b16 %v4069, %v4067
        %v4158 = vpack.c.b16 %v4072, %v4070
        %v4159 = vpack.c.b16 %v4073, %v4071
        %v4160 = vpack.c.b16 %v4076, %v4074
        %v4161 = vpack.c.b16 %v4077, %v4075
        %v4162 = vpack.c.b16 %v4080, %v4078
        %v4163 = vpack.c.b16 %v4081, %v4079
        %v4164 = vpack.c.b16 %v4084, %v4082
        %v4165 = vpack.c.b16 %v4085, %v4083
        %v4166 = vpack.c.b16 %v4088, %v4086
        %v4167 = vpack.c.b16 %v4089, %v4087
        %v4168 = vpack.c.b16 %v4092, %v4090
        %v4169 = vpack.c.b16 %v4093, %v4091
        %v4170 = vpack.c.b16 %v4096, %v4094
        %v4171 = vpack.c.b16 %v4097, %v4095
        %v4172 = vpack.c.b16 %v4100, %v4098
        %v4173 = vpack.c.b16 %v4101, %v4099
        %v4174 = vpack.c.b16 %v4104, %v4102
        %v4175 = vpack.c.b16 %v4105, %v4103
        %v4176 = vpack.c.b16 %v4108, %v4106
        %v4177 = vpack.c.b16 %v4109, %v4107
        %v4178 = vpack.c.b16 %v4112, %v4110
        %v4179 = vpack.c.b16 %v4113, %v4111
        %v4180 = vpack.c.b16 %v4116, %v4114
        %v4181 = vpack.c.b16 %v4117, %v4115
        %v4182 = vpack.c.b16 %v4120, %v4118
        %v4183 = vpack.c.b16 %v4121, %v4119
        %v4184 = vpack.c.b16 %v4124, %v4122
        %v4185 = vpack.c.b16 %v4125, %v4123
        %v4186 = vpack.c.b16 %v4128, %v4126
        %v4187 = vpack.c.b16 %v4129, %v4127
        %v4188 = vpack.c.b16 %v4132, %v4130
        %v4189 = vpack.c.b16 %v4133, %v4131
        %v4190 = vpack.c.b16 %v4136, %v4134
        %v4191 = vpack.c.b16 %v4137, %v4135
        %v4192 = vpack.c.b16 %v4140, %v4138
        %v4193 = vpack.c.b16 %v4141, %v4139
        %v4194 = vpack.c.b16 %v4144, %v4142
        %v4195 = vpack.c.b16 %v4145, %v4143
        %v4196 = vpack.c.b16 %v4148, %v4146
        %v4197 = vpack.c.b16 %v4149, %v4147
        %4246 = vmatpush.bf16.msra.mxu0 %v4164
        %4247 = vmatpush.bf16.msra.mxu0 %v4162
        %4248 = vmatpush.bf16.msra.mxu0 %v4160
        %4249 = vmatpush.bf16.msra.mxu0 %v4158
        %4250 = vmatpush.bf16.msra.mxu0 %v4156
        %4251 = vmatpush.bf16.msra.mxu0 %v4154
        %4252 = vmatpush.bf16.msra.mxu0 %v4152
        %4253 = vmatpush.bf16.msra.mxu0 %v4150
        %4254 = vmatmul.bf16.gmra.mxu0 %v3954
        %v4255 = vpop.f32.mrf.mxu0
        %v4256 = vadd.f32 0.0, %v4255
        %v4257 = vpop.f32.mrf.mxu0
        %v4258 = vadd.f32 0.0, %v4257
        %4259 = vdwg.mxu0
        %4260 = vmatpush.bf16.msra.mxu0 %v4180
        %4261 = vmatpush.bf16.msra.mxu0 %v4178
        %4262 = vmatpush.bf16.msra.mxu0 %v4176
        %4263 = vmatpush.bf16.msra.mxu0 %v4174
        %4264 = vmatpush.bf16.msra.mxu0 %v4172
        %4265 = vmatpush.bf16.msra.mxu0 %v4170
        %4266 = vmatpush.bf16.msra.mxu0 %v4168
        %4267 = vmatpush.bf16.msra.mxu0 %v4166
        %4268 = vmatmul.bf16.gmra.mxu0 %v3955
        %v4269 = vpop.f32.mrf.mxu0
        %v4270 = vadd.f32 %v4256, %v4269
        %v4271 = vpop.f32.mrf.mxu0
        %v4272 = vadd.f32 %v4258, %v4271
        %4273 = vdwg.mxu0
        %4274 = vmatpush.bf16.msra.mxu0 %v4196
        %4275 = vmatpush.bf16.msra.mxu0 %v4194
        %4276 = vmatpush.bf16.msra.mxu0 %v4192
        %4277 = vmatpush.bf16.msra.mxu0 %v4190
        %4278 = vmatpush.bf16.msra.mxu0 %v4188
        %4279 = vmatpush.bf16.msra.mxu0 %v4186
        %4280 = vmatpush.bf16.msra.mxu0 %v4184
        %4281 = vmatpush.bf16.msra.mxu0 %v4182
        %4282 = vmatmul.bf16.gmra.mxu0 %v3956
        %v4283 = vpop.f32.mrf.mxu0
        %v4284 = vadd.f32 %v4270, %v4283
        %v4285 = vpop.f32.mrf.mxu0
        %v4286 = vadd.f32 %v4272, %v4285
        %4287 = vdwg.mxu0
        %4288 = vmatpush.bf16.msra.mxu0 %v4165
        %4289 = vmatpush.bf16.msra.mxu0 %v4163
        %4290 = vmatpush.bf16.msra.mxu0 %v4161
        %4291 = vmatpush.bf16.msra.mxu0 %v4159
        %4292 = vmatpush.bf16.msra.mxu0 %v4157
        %4293 = vmatpush.bf16.msra.mxu0 %v4155
        %4294 = vmatpush.bf16.msra.mxu0 %v4153
        %4295 = vmatpush.bf16.msra.mxu0 %v4151
        %4296 = vmatmul.bf16.gmra.mxu0 %v3954
        %v4297 = vpop.f32.mrf.mxu0
        %v4298 = vadd.f32 0.0, %v4297
        %v4299 = vpop.f32.mrf.mxu0
        %v4300 = vadd.f32 0.0, %v4299
        %4301 = vdwg.mxu0
        %4302 = vmatpush.bf16.msra.mxu0 %v4181
        %4303 = vmatpush.bf16.msra.mxu0 %v4179
        %4304 = vmatpush.bf16.msra.mxu0 %v4177
        %4305 = vmatpush.bf16.msra.mxu0 %v4175
        %4306 = vmatpush.bf16.msra.mxu0 %v4173
        %4307 = vmatpush.bf16.msra.mxu0 %v4171
        %4308 = vmatpush.bf16.msra.mxu0 %v4169
        %4309 = vmatpush.bf16.msra.mxu0 %v4167
        %4310 = vmatmul.bf16.gmra.mxu0 %v3955
        %v4311 = vpop.f32.mrf.mxu0
        %v4312 = vadd.f32 %v4298, %v4311
        %v4313 = vpop.f32.mrf.mxu0
        %v4314 = vadd.f32 %v4300, %v4313
        %4315 = vdwg.mxu0
        %4316 = vmatpush.bf16.msra.mxu0 %v4197
        %4317 = vmatpush.bf16.msra.mxu0 %v4195
        %4318 = vmatpush.bf16.msra.mxu0 %v4193
        %4319 = vmatpush.bf16.msra.mxu0 %v4191
        %4320 = vmatpush.bf16.msra.mxu0 %v4189
        %4321 = vmatpush.bf16.msra.mxu0 %v4187
        %4322 = vmatpush.bf16.msra.mxu0 %v4185
        %4323 = vmatpush.bf16.msra.mxu0 %v4183
        %4324 = vmatmul.bf16.gmra.mxu0 %v3956
        %v4325 = vpop.f32.mrf.mxu0
        %v4326 = vadd.f32 %v4312, %v4325
        %v4327 = vpop.f32.mrf.mxu0
        %v4328 = vadd.f32 %v4314, %v4327
        %4329 = vdwg.mxu0
        %v4330 = vadd.f32 %v3870, %v4284
        %v4331 = vadd.f32 %v3871, %v4326
        %v4332 = vadd.f32 %v3872, %v4286
        %v4333 = vadd.f32 %v3873, %v4328
        %s4334 = scalar_lea.vmem %s7, 128
        %v4335 = vld [vmem:[%s4334] sm:$0xff]
        %v4336 = vld [vmem:[%s4334 + $0x8] sm:$0xff]
        %v4337 = vmul.f32 %v4335, %v664
        %v4338 = vmul.f32 %v4336, %v664
        %v4340 = vsel %vm667, %v4337, 0
        %v4343 = vsel %vm667, %v4338, 0
        %4345 = vmatpush.msra.mxu0 0.0
        %4346 = vmatpush.msra.mxu0 0.0
        %4347 = vmatpush.msra.mxu0 0.0
        %4348 = vmatpush.msra.mxu0 0.0
        %4349 = vmatpush.msra.mxu0 0.0
        %4350 = vmatpush.msra.mxu0 0.0
        %4351 = vmatpush.msra.mxu0 0.0
        %4352 = vmatpush.msra.mxu0 0.0
        %4353 = vmatpush.msra.mxu0 %v440
        %4354 = vmatpush.msra.mxu0 %v437
        %4355 = vmatpush.msra.mxu0 %v434
        %4356 = vmatpush.msra.mxu0 %v431
        %4357 = vmatpush.msra.mxu0 %v428
        %4358 = vmatpush.msra.mxu0 %v425
        %4359 = vmatpush.msra.mxu0 %v422
        %4360 = vmatpush.msra.mxu0 %v419
        %4361 = vmatmul.f32.gmra.mxu0 %v4340
        %v4362 = vpop.f32.mrf.mxu0
        %v4363 = vadd.f32 0.0, %v4362
        %4364 = vmatmul.f32.gmra.mxu0 %v4343
        %v4365 = vpop.f32.mrf.mxu0
        %v4366 = vadd.f32 0.0, %v4365
        %4367 = vdwg.mxu0
        %4368 = vmatpush.msra.mxu0 0.0
        %4369 = vmatpush.msra.mxu0 0.0
        %4370 = vmatpush.msra.mxu0 0.0
        %4371 = vmatpush.msra.mxu0 0.0
        %4372 = vmatpush.msra.mxu0 0.0
        %4373 = vmatpush.msra.mxu0 0.0
        %4374 = vmatpush.msra.mxu0 0.0
        %4375 = vmatpush.msra.mxu0 0.0
        %4376 = vmatpush.msra.mxu0 %v441
        %4377 = vmatpush.msra.mxu0 %v438
        %4378 = vmatpush.msra.mxu0 %v435
        %4379 = vmatpush.msra.mxu0 %v432
        %4380 = vmatpush.msra.mxu0 %v429
        %4381 = vmatpush.msra.mxu0 %v426
        %4382 = vmatpush.msra.mxu0 %v423
        %4383 = vmatpush.msra.mxu0 %v420
        %4384 = vmatmul.f32.gmra.mxu0 %v4340
        %v4385 = vpop.f32.mrf.mxu0
        %v4386 = vadd.f32 0.0, %v4385
        %4387 = vmatmul.f32.gmra.mxu0 %v4343
        %v4388 = vpop.f32.mrf.mxu0
        %v4389 = vadd.f32 0.0, %v4388
        %4390 = vdwg.mxu0
        %4391 = vmatpush.msra.mxu0 0.0
        %4392 = vmatpush.msra.mxu0 0.0
        %4393 = vmatpush.msra.mxu0 0.0
        %4394 = vmatpush.msra.mxu0 0.0
        %4395 = vmatpush.msra.mxu0 0.0
        %4396 = vmatpush.msra.mxu0 0.0
        %4397 = vmatpush.msra.mxu0 0.0
        %4398 = vmatpush.msra.mxu0 0.0
        %4399 = vmatpush.msra.mxu0 %v442
        %4400 = vmatpush.msra.mxu0 %v439
        %4401 = vmatpush.msra.mxu0 %v436
        %4402 = vmatpush.msra.mxu0 %v433
        %4403 = vmatpush.msra.mxu0 %v430
        %4404 = vmatpush.msra.mxu0 %v427
        %4405 = vmatpush.msra.mxu0 %v424
        %4406 = vmatpush.msra.mxu0 %v421
        %4407 = vmatmul.f32.gmra.mxu0 %v4340
        %v4408 = vpop.f32.mrf.mxu0
        %v4409 = vadd.f32 0.0, %v4408
        %4410 = vmatmul.f32.gmra.mxu0 %v4343
        %v4411 = vpop.f32.mrf.mxu0
        %v4412 = vadd.f32 0.0, %v4411
        %4413 = vdwg.mxu0
        %v4414 = vpack.c.bf16 %v4366, %v4363
        %v4415 = vpack.c.bf16 %v4389, %v4386
        %v4416 = vpack.c.bf16 %v4412, %v4409
        %s4417 = scalar_lea.vmem %s8, 3072
        %v4418 = vld [vmem:[%s4417] sm:$0xff]
        %v4419 = vld [vmem:[%s4417 + $0x8] sm:$0xff]
        %v4420 = vld [vmem:[%s4417 + $0x10] sm:$0xff]
        %v4421 = vld [vmem:[%s4417 + $0x18] sm:$0xff]
        %v4422 = vld [vmem:[%s4417 + $0x20] sm:$0xff]
        %v4423 = vld [vmem:[%s4417 + $0x28] sm:$0xff]
        %v4424 = vld [vmem:[%s4417 + $0x30] sm:$0xff]
        %v4425 = vld [vmem:[%s4417 + $0x38] sm:$0xff]
        %v4426 = vld [vmem:[%s4417 + $0x40] sm:$0xff]
        %v4427 = vld [vmem:[%s4417 + $0x48] sm:$0xff]
        %v4428 = vld [vmem:[%s4417 + $0x50] sm:$0xff]
        %v4429 = vld [vmem:[%s4417 + $0x58] sm:$0xff]
        %v4430 = vld [vmem:[%s4417 + $0x60] sm:$0xff]
        %v4431 = vld [vmem:[%s4417 + $0x68] sm:$0xff]
        %v4432 = vld [vmem:[%s4417 + $0x70] sm:$0xff]
        %v4433 = vld [vmem:[%s4417 + $0x78] sm:$0xff]
        %v4434 = vld [vmem:[%s4417 + $0x80] sm:$0xff]
        %v4435 = vld [vmem:[%s4417 + $0x88] sm:$0xff]
        %v4436 = vld [vmem:[%s4417 + $0x90] sm:$0xff]
        %v4437 = vld [vmem:[%s4417 + $0x98] sm:$0xff]
        %v4438 = vld [vmem:[%s4417 + $0xa0] sm:$0xff]
        %v4439 = vld [vmem:[%s4417 + $0xa8] sm:$0xff]
        %v4440 = vld [vmem:[%s4417 + $0xb0] sm:$0xff]
        %v4441 = vld [vmem:[%s4417 + $0xb8] sm:$0xff]
        %v4442 = vld [vmem:[%s4417 + $0xc0] sm:$0xff]
        %v4443 = vld [vmem:[%s4417 + $0xc8] sm:$0xff]
        %v4444 = vld [vmem:[%s4417 + $0xd0] sm:$0xff]
        %v4445 = vld [vmem:[%s4417 + $0xd8] sm:$0xff]
        %v4446 = vld [vmem:[%s4417 + $0xe0] sm:$0xff]
        %v4447 = vld [vmem:[%s4417 + $0xe8] sm:$0xff]
        %v4448 = vld [vmem:[%s4417 + $0xf0] sm:$0xff]
        %v4449 = vld [vmem:[%s4417 + $0xf8] sm:$0xff]
        %v4450 = vld [vmem:[%s4417 + $0x100] sm:$0xff]
        %v4451 = vld [vmem:[%s4417 + $0x108] sm:$0xff]
        %v4452 = vld [vmem:[%s4417 + $0x110] sm:$0xff]
        %v4453 = vld [vmem:[%s4417 + $0x118] sm:$0xff]
        %v4454 = vld [vmem:[%s4417 + $0x120] sm:$0xff]
        %v4455 = vld [vmem:[%s4417 + $0x128] sm:$0xff]
        %v4456 = vld [vmem:[%s4417 + $0x130] sm:$0xff]
        %v4457 = vld [vmem:[%s4417 + $0x138] sm:$0xff]
        %v4458 = vld [vmem:[%s4417 + $0x140] sm:$0xff]
        %v4459 = vld [vmem:[%s4417 + $0x148] sm:$0xff]
        %v4460 = vld [vmem:[%s4417 + $0x150] sm:$0xff]
        %v4461 = vld [vmem:[%s4417 + $0x158] sm:$0xff]
        %v4462 = vld [vmem:[%s4417 + $0x160] sm:$0xff]
        %v4463 = vld [vmem:[%s4417 + $0x168] sm:$0xff]
        %v4464 = vld [vmem:[%s4417 + $0x170] sm:$0xff]
        %v4465 = vld [vmem:[%s4417 + $0x178] sm:$0xff]
        %v4514 = vunpack.c.l.b16 %v4418
        %v4515 = vunpack.c.h.b16 %v4418
        %v4516 = vunpack.c.l.b16 %v4419
        %v4517 = vunpack.c.h.b16 %v4419
        %v4518 = vunpack.c.l.b16 %v4420
        %v4519 = vunpack.c.h.b16 %v4420
        %v4520 = vunpack.c.l.b16 %v4421
        %v4521 = vunpack.c.h.b16 %v4421
        %v4522 = vunpack.c.l.b16 %v4422
        %v4523 = vunpack.c.h.b16 %v4422
        %v4524 = vunpack.c.l.b16 %v4423
        %v4525 = vunpack.c.h.b16 %v4423
        %v4526 = vunpack.c.l.b16 %v4424
        %v4527 = vunpack.c.h.b16 %v4424
        %v4528 = vunpack.c.l.b16 %v4425
        %v4529 = vunpack.c.h.b16 %v4425
        %v4530 = vunpack.c.l.b16 %v4426
        %v4531 = vunpack.c.h.b16 %v4426
        %v4532 = vunpack.c.l.b16 %v4427
        %v4533 = vunpack.c.h.b16 %v4427
        %v4534 = vunpack.c.l.b16 %v4428
        %v4535 = vunpack.c.h.b16 %v4428
        %v4536 = vunpack.c.l.b16 %v4429
        %v4537 = vunpack.c.h.b16 %v4429
        %v4538 = vunpack.c.l.b16 %v4430
        %v4539 = vunpack.c.h.b16 %v4430
        %v4540 = vunpack.c.l.b16 %v4431
        %v4541 = vunpack.c.h.b16 %v4431
        %v4542 = vunpack.c.l.b16 %v4432
        %v4543 = vunpack.c.h.b16 %v4432
        %v4544 = vunpack.c.l.b16 %v4433
        %v4545 = vunpack.c.h.b16 %v4433
        %v4546 = vunpack.c.l.b16 %v4434
        %v4547 = vunpack.c.h.b16 %v4434
        %v4548 = vunpack.c.l.b16 %v4435
        %v4549 = vunpack.c.h.b16 %v4435
        %v4550 = vunpack.c.l.b16 %v4436
        %v4551 = vunpack.c.h.b16 %v4436
        %v4552 = vunpack.c.l.b16 %v4437
        %v4553 = vunpack.c.h.b16 %v4437
        %v4554 = vunpack.c.l.b16 %v4438
        %v4555 = vunpack.c.h.b16 %v4438
        %v4556 = vunpack.c.l.b16 %v4439
        %v4557 = vunpack.c.h.b16 %v4439
        %v4558 = vunpack.c.l.b16 %v4440
        %v4559 = vunpack.c.h.b16 %v4440
        %v4560 = vunpack.c.l.b16 %v4441
        %v4561 = vunpack.c.h.b16 %v4441
        %v4562 = vunpack.c.l.b16 %v4442
        %v4563 = vunpack.c.h.b16 %v4442
        %v4564 = vunpack.c.l.b16 %v4443
        %v4565 = vunpack.c.h.b16 %v4443
        %v4566 = vunpack.c.l.b16 %v4444
        %v4567 = vunpack.c.h.b16 %v4444
        %v4568 = vunpack.c.l.b16 %v4445
        %v4569 = vunpack.c.h.b16 %v4445
        %v4570 = vunpack.c.l.b16 %v4446
        %v4571 = vunpack.c.h.b16 %v4446
        %v4572 = vunpack.c.l.b16 %v4447
        %v4573 = vunpack.c.h.b16 %v4447
        %v4574 = vunpack.c.l.b16 %v4448
        %v4575 = vunpack.c.h.b16 %v4448
        %v4576 = vunpack.c.l.b16 %v4449
        %v4577 = vunpack.c.h.b16 %v4449
        %v4578 = vunpack.c.l.b16 %v4450
        %v4579 = vunpack.c.h.b16 %v4450
        %v4580 = vunpack.c.l.b16 %v4451
        %v4581 = vunpack.c.h.b16 %v4451
        %v4582 = vunpack.c.l.b16 %v4452
        %v4583 = vunpack.c.h.b16 %v4452
        %v4584 = vunpack.c.l.b16 %v4453
        %v4585 = vunpack.c.h.b16 %v4453
        %v4586 = vunpack.c.l.b16 %v4454
        %v4587 = vunpack.c.h.b16 %v4454
        %v4588 = vunpack.c.l.b16 %v4455
        %v4589 = vunpack.c.h.b16 %v4455
        %v4590 = vunpack.c.l.b16 %v4456
        %v4591 = vunpack.c.h.b16 %v4456
        %v4592 = vunpack.c.l.b16 %v4457
        %v4593 = vunpack.c.h.b16 %v4457
        %v4594 = vunpack.c.l.b16 %v4458
        %v4595 = vunpack.c.h.b16 %v4458
        %v4596 = vunpack.c.l.b16 %v4459
        %v4597 = vunpack.c.h.b16 %v4459
        %v4598 = vunpack.c.l.b16 %v4460
        %v4599 = vunpack.c.h.b16 %v4460
        %v4600 = vunpack.c.l.b16 %v4461
        %v4601 = vunpack.c.h.b16 %v4461
        %v4602 = vunpack.c.l.b16 %v4462
        %v4603 = vunpack.c.h.b16 %v4462
        %v4604 = vunpack.c.l.b16 %v4463
        %v4605 = vunpack.c.h.b16 %v4463
        %v4606 = vunpack.c.l.b16 %v4464
        %v4607 = vunpack.c.h.b16 %v4464
        %v4608 = vunpack.c.l.b16 %v4465
        %v4609 = vunpack.c.h.b16 %v4465
        %v4610 = vpack.c.b16 %v4516, %v4514
        %v4611 = vpack.c.b16 %v4517, %v4515
        %v4612 = vpack.c.b16 %v4520, %v4518
        %v4613 = vpack.c.b16 %v4521, %v4519
        %v4614 = vpack.c.b16 %v4524, %v4522
        %v4615 = vpack.c.b16 %v4525, %v4523
        %v4616 = vpack.c.b16 %v4528, %v4526
        %v4617 = vpack.c.b16 %v4529, %v4527
        %v4618 = vpack.c.b16 %v4532, %v4530
        %v4619 = vpack.c.b16 %v4533, %v4531
        %v4620 = vpack.c.b16 %v4536, %v4534
        %v4621 = vpack.c.b16 %v4537, %v4535
        %v4622 = vpack.c.b16 %v4540, %v4538
        %v4623 = vpack.c.b16 %v4541, %v4539
        %v4624 = vpack.c.b16 %v4544, %v4542
        %v4625 = vpack.c.b16 %v4545, %v4543
        %v4626 = vpack.c.b16 %v4548, %v4546
        %v4627 = vpack.c.b16 %v4549, %v4547
        %v4628 = vpack.c.b16 %v4552, %v4550
        %v4629 = vpack.c.b16 %v4553, %v4551
        %v4630 = vpack.c.b16 %v4556, %v4554
        %v4631 = vpack.c.b16 %v4557, %v4555
        %v4632 = vpack.c.b16 %v4560, %v4558
        %v4633 = vpack.c.b16 %v4561, %v4559
        %v4634 = vpack.c.b16 %v4564, %v4562
        %v4635 = vpack.c.b16 %v4565, %v4563
        %v4636 = vpack.c.b16 %v4568, %v4566
        %v4637 = vpack.c.b16 %v4569, %v4567
        %v4638 = vpack.c.b16 %v4572, %v4570
        %v4639 = vpack.c.b16 %v4573, %v4571
        %v4640 = vpack.c.b16 %v4576, %v4574
        %v4641 = vpack.c.b16 %v4577, %v4575
        %v4642 = vpack.c.b16 %v4580, %v4578
        %v4643 = vpack.c.b16 %v4581, %v4579
        %v4644 = vpack.c.b16 %v4584, %v4582
        %v4645 = vpack.c.b16 %v4585, %v4583
        %v4646 = vpack.c.b16 %v4588, %v4586
        %v4647 = vpack.c.b16 %v4589, %v4587
        %v4648 = vpack.c.b16 %v4592, %v4590
        %v4649 = vpack.c.b16 %v4593, %v4591
        %v4650 = vpack.c.b16 %v4596, %v4594
        %v4651 = vpack.c.b16 %v4597, %v4595
        %v4652 = vpack.c.b16 %v4600, %v4598
        %v4653 = vpack.c.b16 %v4601, %v4599
        %v4654 = vpack.c.b16 %v4604, %v4602
        %v4655 = vpack.c.b16 %v4605, %v4603
        %v4656 = vpack.c.b16 %v4608, %v4606
        %v4657 = vpack.c.b16 %v4609, %v4607
        %4706 = vmatpush.bf16.msra.mxu0 %v4624
        %4707 = vmatpush.bf16.msra.mxu0 %v4622
        %4708 = vmatpush.bf16.msra.mxu0 %v4620
        %4709 = vmatpush.bf16.msra.mxu0 %v4618
        %4710 = vmatpush.bf16.msra.mxu0 %v4616
        %4711 = vmatpush.bf16.msra.mxu0 %v4614
        %4712 = vmatpush.bf16.msra.mxu0 %v4612
        %4713 = vmatpush.bf16.msra.mxu0 %v4610
        %4714 = vmatmul.bf16.gmra.mxu0 %v4414
        %v4715 = vpop.f32.mrf.mxu0
        %v4716 = vadd.f32 0.0, %v4715
        %v4717 = vpop.f32.mrf.mxu0
        %v4718 = vadd.f32 0.0, %v4717
        %4719 = vdwg.mxu0
        %4720 = vmatpush.bf16.msra.mxu0 %v4640
        %4721 = vmatpush.bf16.msra.mxu0 %v4638
        %4722 = vmatpush.bf16.msra.mxu0 %v4636
        %4723 = vmatpush.bf16.msra.mxu0 %v4634
        %4724 = vmatpush.bf16.msra.mxu0 %v4632
        %4725 = vmatpush.bf16.msra.mxu0 %v4630
        %4726 = vmatpush.bf16.msra.mxu0 %v4628
        %4727 = vmatpush.bf16.msra.mxu0 %v4626
        %4728 = vmatmul.bf16.gmra.mxu0 %v4415
        %v4729 = vpop.f32.mrf.mxu0
        %v4730 = vadd.f32 %v4716, %v4729
        %v4731 = vpop.f32.mrf.mxu0
        %v4732 = vadd.f32 %v4718, %v4731
        %4733 = vdwg.mxu0
        %4734 = vmatpush.bf16.msra.mxu0 %v4656
        %4735 = vmatpush.bf16.msra.mxu0 %v4654
        %4736 = vmatpush.bf16.msra.mxu0 %v4652
        %4737 = vmatpush.bf16.msra.mxu0 %v4650
        %4738 = vmatpush.bf16.msra.mxu0 %v4648
        %4739 = vmatpush.bf16.msra.mxu0 %v4646
        %4740 = vmatpush.bf16.msra.mxu0 %v4644
        %4741 = vmatpush.bf16.msra.mxu0 %v4642
        %4742 = vmatmul.bf16.gmra.mxu0 %v4416
        %v4743 = vpop.f32.mrf.mxu0
        %v4744 = vadd.f32 %v4730, %v4743
        %v4745 = vpop.f32.mrf.mxu0
        %v4746 = vadd.f32 %v4732, %v4745
        %4747 = vdwg.mxu0
        %4748 = vmatpush.bf16.msra.mxu0 %v4625
        %4749 = vmatpush.bf16.msra.mxu0 %v4623
        %4750 = vmatpush.bf16.msra.mxu0 %v4621
        %4751 = vmatpush.bf16.msra.mxu0 %v4619
        %4752 = vmatpush.bf16.msra.mxu0 %v4617
        %4753 = vmatpush.bf16.msra.mxu0 %v4615
        %4754 = vmatpush.bf16.msra.mxu0 %v4613
        %4755 = vmatpush.bf16.msra.mxu0 %v4611
        %4756 = vmatmul.bf16.gmra.mxu0 %v4414
        %v4757 = vpop.f32.mrf.mxu0
        %v4758 = vadd.f32 0.0, %v4757
        %v4759 = vpop.f32.mrf.mxu0
        %v4760 = vadd.f32 0.0, %v4759
        %4761 = vdwg.mxu0
        %4762 = vmatpush.bf16.msra.mxu0 %v4641
        %4763 = vmatpush.bf16.msra.mxu0 %v4639
        %4764 = vmatpush.bf16.msra.mxu0 %v4637
        %4765 = vmatpush.bf16.msra.mxu0 %v4635
        %4766 = vmatpush.bf16.msra.mxu0 %v4633
        %4767 = vmatpush.bf16.msra.mxu0 %v4631
        %4768 = vmatpush.bf16.msra.mxu0 %v4629
        %4769 = vmatpush.bf16.msra.mxu0 %v4627
        %4770 = vmatmul.bf16.gmra.mxu0 %v4415
        %v4771 = vpop.f32.mrf.mxu0
        %v4772 = vadd.f32 %v4758, %v4771
        %v4773 = vpop.f32.mrf.mxu0
        %v4774 = vadd.f32 %v4760, %v4773
        %4775 = vdwg.mxu0
        %4776 = vmatpush.bf16.msra.mxu0 %v4657
        %4777 = vmatpush.bf16.msra.mxu0 %v4655
        %4778 = vmatpush.bf16.msra.mxu0 %v4653
        %4779 = vmatpush.bf16.msra.mxu0 %v4651
        %4780 = vmatpush.bf16.msra.mxu0 %v4649
        %4781 = vmatpush.bf16.msra.mxu0 %v4647
        %4782 = vmatpush.bf16.msra.mxu0 %v4645
        %4783 = vmatpush.bf16.msra.mxu0 %v4643
        %4784 = vmatmul.bf16.gmra.mxu0 %v4416
        %v4785 = vpop.f32.mrf.mxu0
        %v4786 = vadd.f32 %v4772, %v4785
        %v4787 = vpop.f32.mrf.mxu0
        %v4788 = vadd.f32 %v4774, %v4787
        %4789 = vdwg.mxu0
        %v4790 = vadd.f32 %v4330, %v4744
        %v4791 = vadd.f32 %v4331, %v4786
        %v4792 = vadd.f32 %v4332, %v4746
        %v4793 = vadd.f32 %v4333, %v4788
        %v4794 = vld [vmem:[%s9] sm:$0x3]
        %v4796 = vperm.slane %v4794, 0
        %v4797 = vperm.slane %v4794, 1
        %v4800 = vadd.f32 %v4790, %v4796
        %v4801 = vadd.f32 %v4791, %v4797
        %v4802 = vadd.f32 %v4792, %v4796
        %v4803 = vadd.f32 %v4793, %v4797
        %v4804 = vmax.f32 %v4800, 0.0
        %v4805 = vmax.f32 %v4801, 0.0
        %v4806 = vmax.f32 %v4802, 0.0
        %v4807 = vmax.f32 %v4803, 0.0
        %4808 = vst [vmem:[%s394] sm:$0xff] %v4804
        %4809 = vst.msk [vmem:[%s394 + $0x8] sm:$0xff] %vm667, %v4805
        %4810 = vst [vmem:[%s394 + $0x10] sm:$0xff] %v4806
        %4811 = vst.msk [vmem:[%s394 + $0x18] sm:$0xff] %vm667, %v4807
        %s4812 = sand.u32 %s258, 1
        %s4813 = scalar_lea.sflag [#allocation3], %s4812
        %s4814 = sand.u32 %s258, 1
        %s4815 = smul.addr %s4814, 32
        %s4816 = scalar_lea.vmem [#allocation5], %s4815
        // Predicated region
        $region65: #{tpu_custom_call.1} parent=59 // pred_check
          %p4817 = pneg %p268
        $region66: #{tpu_custom_call.1} parent=59 // pred_check_branch
          %4819 = sbr.rel (%p4817) target = $region68
        $region67: #{tpu_custom_call.1} parent=59 // pred_region
          %4821 = vsyncadd %s4813, 0
          %s4822 = smul.addr %s25, 4
          %s4823 = smul.addr %s4822, 8
          %s4824 = scalar_lea.hbm %s10, %s4823
          %s4825 = sshll.u32 %s4816, 4
          %s4826 = int_to_ptr.vmem [resolvable:$true] %s4825
          %s4827 = sshll.u32 %s4824, 4
          %s4828 = int_to_ptr.hbm [resolvable:$true] %s4827
          %4833 = dma.vmem_to_hbm [thread:$0]  %s4826, 512, %s4828, %s4813, 256, 256, 16
        $region68: #{tpu_custom_call.1} parent=59 // pred_fallthru
          _
      $region60: #{tpu_custom_call.1} parent=5 // pred_fallthru
        _
      %p4834 = scmp.le.s32.totalorder 2, %s20
      // Predicated region
      $region69: #{tpu_custom_call.1} parent=5 // pred_check
        %p4835 = pneg %p4834
      $region70: #{tpu_custom_call.1} parent=5 // pred_check_branch
        %4837 = sbr.rel (%p4835) target = $region72
      $region71: #{tpu_custom_call.1} parent=5 // pred_region
        %s4838 = ssub.s32 %s20, 2
        // Predicated region
        $region73: #{tpu_custom_call.1} parent=71 // pred_check
          %p4839 = pneg %p274
        $region74: #{tpu_custom_call.1} parent=71 // pred_check_branch
          %4841 = sbr.rel (%p4839) target = $region76
        $region75: #{tpu_custom_call.1} parent=71 // pred_region
          %s4842 = sand.u32 %s259, 1
          %s4843 = scalar_lea.sflag [#allocation3], %s4842
          %s4844 = sand.u32 %s259, 1
          %s4845 = smul.addr %s4844, 32
          %s4846 = scalar_lea.vmem [#allocation5], %s4845
          %4848 = dma.done %s4843, 512
        $region76: #{tpu_custom_call.1} parent=71 // pred_fallthru
          _
      $region72: #{tpu_custom_call.1} parent=5 // pred_fallthru
        _
    $region6: #{tpu_custom_call.1} parent=1 // loop_footer
      %s24 = sadd.s32 1, %s20
    $region7: #{tpu_custom_call.1} parent=1 // loop_footer_branch
      %19 = sbr.rel target = $region3
    $region8: #{tpu_custom_call.1} parent=1 // loop_exit
      _
    %4849 = vsyncpa [#allocation3], 1
    %s4850 = scalar_lea.sflag [#allocation3], 1
    %4851 = vsyncpa %s4850, 1
    %4852 = vsyncpa [#allocation4], 1
    %s4853 = scalar_lea.sflag [#allocation4], 1
    %4854 = vsyncpa %s4853, 1

</llo_original>
